<compile_context>
chip_gen: v6e
topology: v6e:2x2x1
jax: 0.10.0
libtpu: 0.0.40
codegen_flags: <defaults>
</compile_context>

<pallas_src>
import math

import jax
import jax.numpy as jnp
from jax import lax
from jax.experimental import pallas as pl
from jax.experimental.pallas import tpu as pltpu

# ---- model hyper-parameters --------------------------------------------------
D_MODEL = 32
N_HEADS = 2
D_K = D_MODEL // N_HEADS
D_FF = 64
N_LAYERS = 2
EPS = 1e-6

# packed-lane offsets inside wcat / brow
_QKV_END = 3 * D_MODEL            # 96  : end of [Wq|Wk|Wv]
_WO_END = 4 * D_MODEL             # 128 : end of Wo
_W1_END = 4 * D_MODEL + D_FF      # 192 : end of W1
_B1_END = 3 * D_MODEL + D_FF      # 160 : end of [bqkv|b1]


# ---- in-kernel helpers -------------------------------------------------------
def _layer_norm(x, gamma, beta, eps=EPS):
    # Reference LayerNorm: mean over last dim, unbiased std (ddof=1), eps added to std.
    d = x.shape[-1]
    mean = jnp.mean(x, axis=-1, keepdims=True)
    diff = x - mean
    var = jnp.sum(diff * diff, axis=-1, keepdims=True) * (1.0 / (d - 1))
    std = jnp.sqrt(var)
    return gamma * diff * pl.reciprocal(std + eps) + beta


# ---- fused Pallas kernel -----------------------------------------------------
def _make_encoder_kernel(batch, seq):
    def encoder_kernel(x_ref, mbias_ref, wcat_ref, w2_ref, brow_ref, vecs_ref, o_ref):
        x = x_ref[...]            # (batch*seq, D)  -- whole flattened batch
        mb = mbias_ref[...]       # (batch, seq) additive bias: 0 = attend, -1e9 = masked
        fin_g = fin_b = None

        for l in range(N_LAYERS):                 # static unroll; params resident in VMEM
            vecs = vecs_ref[l]                    # (8, D)
            ln1_g, ln1_b = vecs[0:1, :], vecs[1:2, :]
            ln2_g, ln2_b = vecs[2:3, :], vecs[3:4, :]
            bo, b2 = vecs[4:5, :], vecs[5:6, :]
            if l == 0:                            # final-norm params ride on layer 0
                fin_g, fin_b = vecs[6:7, :], vecs[7:8, :]

            wcat = wcat_ref[l]                    # (D, 192) = [Wq*scale|Wk|Wv|Wo|W1]
            wqkv = wcat[:, 0:_QKV_END]            # (D, 3D)
            wo = wcat[:, _QKV_END:_WO_END]        # (D, D)
            w1 = wcat[:, _WO_END:_W1_END]         # (D, D_FF)
            brow = brow_ref[l]                    # (1, 160) = [bq*scale|bk|bv|b1]
            bqkv = brow[:, 0:_QKV_END]            # (1, 3D)
            b1 = brow[:, _QKV_END:_B1_END]        # (1, D_FF)
            w2 = w2_ref[l]                        # (D_FF, D)

            # --- sublayer 1: x + self_attn(norm(x))  (dropout = identity) --------
            xn = _layer_norm(x, ln1_g, ln1_b)
            qkv = jnp.dot(xn, wqkv, preferred_element_type=jnp.float32) + bqkv  # (BS,3D)

            attn_parts = []
            for b in range(batch):                # static unroll over batch
                r0 = b * seq
                mb_b = mb[b:b + 1, :]             # (1, seq)
                acc = bo                          # (1, D), broadcasts over rows
                for h in range(N_HEADS):          # static unroll over heads
                    lo = h * D_K
                    qh = qkv[r0:r0 + seq, lo:lo + D_K]
                    kh = qkv[r0:r0 + seq, D_MODEL + lo:D_MODEL + lo + D_K]
                    vh = qkv[r0:r0 + seq, 2 * D_MODEL + lo:2 * D_MODEL + lo + D_K]
                    # contract on last dims -> no explicit transpose; scale already
                    # folded into the Q columns of wqkv at pack time.
                    scores = lax.dot_general(
                        qh, kh, (((1,), (1,)), ((), ())),
                        preferred_element_type=jnp.float32)          # (S, S)
                    scores = scores + mb_b
                    scores = scores - jnp.max(scores, axis=-1, keepdims=True)
                    p = jnp.exp(scores)
                    p = p * pl.reciprocal(jnp.sum(p, axis=-1, keepdims=True))
                    pv = jnp.dot(p, vh, preferred_element_type=jnp.float32)   # (S, D_K)
                    # fold the head merge into the output projection (no concat)
                    acc = acc + jnp.dot(pv, wo[lo:lo + D_K, :],
                                        preferred_element_type=jnp.float32)   # (S, D)
                attn_parts.append(acc)
            attn = attn_parts[0] if batch == 1 else jnp.concatenate(attn_parts, axis=0)
            x = x + attn

            # --- sublayer 2: x + ffn(norm(x)) ------------------------------------
            xn2 = _layer_norm(x, ln2_g, ln2_b)
            h1 = jnp.maximum(
                jnp.dot(xn2, w1, preferred_element_type=jnp.float32) + b1, 0.0)
            x = x + jnp.dot(h1, w2, preferred_element_type=jnp.float32) + b2

        # --- final LayerNorm fused as epilogue ------------------------------------
        o_ref[...] = _layer_norm(x, fin_g, fin_b)

    return encoder_kernel


# ---- wrapper ------------------------------------------------------------------
def transformer_encoder(x, mask, packed):
    B, S, D = x.shape
    x_flat = x.reshape(B * S, D)                       # flatten rows: one block, one step
    mbias = (mask.reshape(B, S) - 1.0) * 1e9           # additive mask bias

    def full_spec(shape):
        nd = len(shape)
        return pl.BlockSpec(shape, lambda i, _nd=nd: (0,) * _nd)

    operands = (x_flat, mbias,
                packed["wcat"], packed["w2"], packed["brow"], packed["vecs"])

    out = pl.pallas_call(
        _make_encoder_kernel(B, S),
        out_shape=jax.ShapeDtypeStruct((B * S, D), jnp.float32),
        grid_spec=pltpu.PrefetchScalarGridSpec(
            num_scalar_prefetch=0,
            grid=(1,),                                  # single step: whole batch fused
            in_specs=[full_spec(a.shape) for a in operands],
            out_specs=pl.BlockSpec((B * S, D), lambda i: (0, 0))),
        compiler_params=pltpu.CompilerParams(
            dimension_semantics=("arbitrary",)),
    )(*operands)
    return out.reshape(B, S, D)


# ---- deterministic parameter construction & packing ---------------------------
def init_params(key, num_layers, d_model, d_ff):
    layers = []
    for l in range(num_layers):
        k = jax.random.fold_in(key, l)
        ks = jax.random.split(k, 8)
        s_attn = 1.0 / math.sqrt(d_model)
        s_ff = 1.0 / math.sqrt(d_ff)
        p = {
            # Linear weights stored as (in, out); y = x @ W + b
            "wq": jax.random.normal(ks[0], (d_model, d_model), jnp.float32) * s_attn,
            "bq": jnp.zeros((d_model,), jnp.float32),
            "wk": jax.random.normal(ks[1], (d_model, d_model), jnp.float32) * s_attn,
            "bk": jnp.zeros((d_model,), jnp.float32),
            "wv": jax.random.normal(ks[2], (d_model, d_model), jnp.float32) * s_attn,
            "bv": jnp.zeros((d_model,), jnp.float32),
            "wo": jax.random.normal(ks[3], (d_model, d_model), jnp.float32) * s_attn,
            "bo": jnp.zeros((d_model,), jnp.float32),
            "ln1_g": jnp.ones((d_model,), jnp.float32),
            "ln1_b": jnp.zeros((d_model,), jnp.float32),
            "ln2_g": jnp.ones((d_model,), jnp.float32),
            "ln2_b": jnp.zeros((d_model,), jnp.float32),
            "w1": jax.random.normal(ks[4], (d_model, d_ff), jnp.float32) * s_attn,
            "b1": jnp.zeros((d_ff,), jnp.float32),
            "w2": jax.random.normal(ks[5], (d_ff, d_model), jnp.float32) * s_ff,
            "b2": jnp.zeros((d_model,), jnp.float32),
        }
        layers.append(p)
    final_g = jnp.ones((d_model,), jnp.float32)
    final_b = jnp.zeros((d_model,), jnp.float32)
    return layers, final_g, final_b


def pack_params(layer_params, final_g, final_b):
    scale = 1.0 / math.sqrt(D_K)                       # folded into Q weights/bias
    wcat_l, w2_l, brow_l, vecs_l = [], [], [], []
    for li, p in enumerate(layer_params):
        wqkv = jnp.concatenate([p["wq"] * scale, p["wk"], p["wv"]], axis=1)   # (D, 3D)
        wcat_l.append(jnp.concatenate([wqkv, p["wo"], p["w1"]], axis=1))      # (D, 192)
        w2_l.append(p["w2"])                                                  # (D_FF, D)
        brow_l.append(jnp.concatenate(
            [p["bq"] * scale, p["bk"], p["bv"], p["b1"]], axis=0)[None, :])   # (1, 160)
        vecs_l.append(jnp.stack(
            [p["ln1_g"], p["ln1_b"], p["ln2_g"], p["ln2_b"], p["bo"], p["b2"],
             final_g if li == 0 else jnp.zeros_like(final_g),
             final_b if li == 0 else jnp.zeros_like(final_b)], axis=0))       # (8, D)
    return {
        "wcat": jnp.stack(wcat_l, axis=0),   # (L, D, 192)
        "w2": jnp.stack(w2_l, axis=0),       # (L, D_FF, D)
        "brow": jnp.stack(brow_l, axis=0),   # (L, 1, 160)
        "vecs": jnp.stack(vecs_l, axis=0),   # (L, 8, D)
    }


# ---- main ---------------------------------------------------------------------
if __name__ == "__main__":
    B, S = 2, 8
    key = jax.random.PRNGKey(0)
    kx, kp = jax.random.split(key)

    x = jax.random.normal(kx, (B, S, D_MODEL), jnp.float32)
    # padding mask: batch 0 attends everywhere, batch 1 masks the last 2 keys
    mask = jnp.ones((B, 1, S), jnp.float32)
    mask = mask.at[1, 0, S - 2:].set(0.0)

    layer_params, final_g, final_b = init_params(kp, N_LAYERS, D_MODEL, D_FF)
    packed = pack_params(layer_params, final_g, final_b)

    out = transformer_encoder(x, mask, packed)
    out = jax.block_until_ready(out)
    assert out.shape == (B, S, D_MODEL)
    assert bool(jnp.all(jnp.isfinite(out)))
    print("KERNEL_OK")
</pallas_src>

<mosaic_0001>
module attributes {stable_mosaic.version = 11 : i64} {
  func.func @encoder_kernel(%arg0: i32, %arg1: memref<16x32xf32, #tpu.memory_space<vmem>>, %arg2: memref<2x8xf32, #tpu.memory_space<vmem>>, %arg3: memref<2x32x192xf32, #tpu.memory_space<vmem>>, %arg4: memref<2x64x32xf32, #tpu.memory_space<vmem>>, %arg5: memref<2x1x160xf32, #tpu.memory_space<vmem>>, %arg6: memref<2x8x32xf32, #tpu.memory_space<vmem>>, %arg7: memref<16x32xf32, #tpu.memory_space<vmem>>) attributes {dimension_semantics = [#tpu.dimension_semantics<arbitrary>], iteration_bounds = array<i64: 1>, scalar_prefetch = 0 : i64, scratch_operands = 0 : i64, tpu.core_type = #tpu.core_type<tc>, window_params = [{pipeline_mode = #tpu.pipeline_mode<synchronous>, transform_indices = @transform_0, window_bounds = array<i64: 16, 32>}, {pipeline_mode = #tpu.pipeline_mode<synchronous>, transform_indices = @transform_1, window_bounds = array<i64: 2, 8>}, {pipeline_mode = #tpu.pipeline_mode<synchronous>, transform_indices = @transform_2, window_bounds = array<i64: 2, 32, 192>}, {pipeline_mode = #tpu.pipeline_mode<synchronous>, transform_indices = @transform_3, window_bounds = array<i64: 2, 64, 32>}, {pipeline_mode = #tpu.pipeline_mode<synchronous>, transform_indices = @transform_4, window_bounds = array<i64: 2, 1, 160>}, {pipeline_mode = #tpu.pipeline_mode<synchronous>, transform_indices = @transform_5, window_bounds = array<i64: 2, 8, 32>}, {pipeline_mode = #tpu.pipeline_mode<synchronous>, transform_indices = @transform_6, window_bounds = array<i64: 16, 32>}]} {
    %c0 = arith.constant 0 : index
    %c0_0 = arith.constant 0 : index
    %0 = vector.load %arg1[%c0, %c0_0] : memref<16x32xf32, #tpu.memory_space<vmem>>, vector<16x32xf32>
    %c0_1 = arith.constant 0 : index
    %c0_2 = arith.constant 0 : index
    %1 = vector.load %arg2[%c0_1, %c0_2] : memref<2x8xf32, #tpu.memory_space<vmem>>, vector<2x8xf32>
    %c0_3 = arith.constant 0 : index
    %c0_4 = arith.constant 0 : index
    %c0_5 = arith.constant 0 : index
    %2 = vector.load %arg6[%c0_3, %c0_4, %c0_5] : memref<2x8x32xf32, #tpu.memory_space<vmem>>, vector<1x8x32xf32>
    %3 = vector.shape_cast %2 : vector<1x8x32xf32> to vector<8x32xf32>
    %4 = vector.extract_strided_slice %3 {offsets = [0, 0], sizes = [1, 32], strides = [1, 1]} : vector<8x32xf32> to vector<1x32xf32>
    %5 = vector.extract_strided_slice %3 {offsets = [1, 0], sizes = [1, 32], strides = [1, 1]} : vector<8x32xf32> to vector<1x32xf32>
    %6 = vector.extract_strided_slice %3 {offsets = [2, 0], sizes = [1, 32], strides = [1, 1]} : vector<8x32xf32> to vector<1x32xf32>
    %7 = vector.extract_strided_slice %3 {offsets = [3, 0], sizes = [1, 32], strides = [1, 1]} : vector<8x32xf32> to vector<1x32xf32>
    %8 = vector.extract_strided_slice %3 {offsets = [4, 0], sizes = [1, 32], strides = [1, 1]} : vector<8x32xf32> to vector<1x32xf32>
    %9 = vector.extract_strided_slice %3 {offsets = [5, 0], sizes = [1, 32], strides = [1, 1]} : vector<8x32xf32> to vector<1x32xf32>
    %10 = vector.extract_strided_slice %3 {offsets = [6, 0], sizes = [1, 32], strides = [1, 1]} : vector<8x32xf32> to vector<1x32xf32>
    %11 = vector.extract_strided_slice %3 {offsets = [7, 0], sizes = [1, 32], strides = [1, 1]} : vector<8x32xf32> to vector<1x32xf32>
    %c0_6 = arith.constant 0 : index
    %c0_7 = arith.constant 0 : index
    %c0_8 = arith.constant 0 : index
    %12 = vector.load %arg3[%c0_6, %c0_7, %c0_8] : memref<2x32x192xf32, #tpu.memory_space<vmem>>, vector<1x32x192xf32>
    %13 = vector.shape_cast %12 : vector<1x32x192xf32> to vector<32x192xf32>
    %14 = vector.extract_strided_slice %13 {offsets = [0, 0], sizes = [32, 96], strides = [1, 1]} : vector<32x192xf32> to vector<32x96xf32>
    %15 = vector.extract_strided_slice %13 {offsets = [0, 96], sizes = [32, 32], strides = [1, 1]} : vector<32x192xf32> to vector<32x32xf32>
    %16 = vector.extract_strided_slice %13 {offsets = [0, 128], sizes = [32, 64], strides = [1, 1]} : vector<32x192xf32> to vector<32x64xf32>
    %c0_9 = arith.constant 0 : index
    %c0_10 = arith.constant 0 : index
    %c0_11 = arith.constant 0 : index
    %17 = vector.load %arg5[%c0_9, %c0_10, %c0_11] : memref<2x1x160xf32, #tpu.memory_space<vmem>>, vector<1x1x160xf32>
    %18 = vector.shape_cast %17 : vector<1x1x160xf32> to vector<1x160xf32>
    %19 = vector.extract_strided_slice %18 {offsets = [0, 0], sizes = [1, 96], strides = [1, 1]} : vector<1x160xf32> to vector<1x96xf32>
    %20 = vector.extract_strided_slice %18 {offsets = [0, 96], sizes = [1, 64], strides = [1, 1]} : vector<1x160xf32> to vector<1x64xf32>
    %c0_12 = arith.constant 0 : index
    %c0_13 = arith.constant 0 : index
    %c0_14 = arith.constant 0 : index
    %21 = vector.load %arg4[%c0_12, %c0_13, %c0_14] : memref<2x64x32xf32, #tpu.memory_space<vmem>>, vector<1x64x32xf32>
    %22 = vector.shape_cast %21 : vector<1x64x32xf32> to vector<64x32xf32>
    %cst = arith.constant dense<0.000000e+00> : vector<16xf32>
    %23 = vector.multi_reduction <add>, %0, %cst [1] : vector<16x32xf32> to vector<16xf32>
    %24 = vector.shape_cast %23 : vector<16xf32> to vector<16x1xf32>
    %cst_15 = arith.constant 3.200000e+01 : f32
    %25 = vector.broadcast %cst_15 : f32 to vector<16x1xf32>
    %26 = arith.divf %24, %25 : vector<16x1xf32>
    %27 = vector.broadcast %26 : vector<16x1xf32> to vector<16x32xf32>
    %28 = arith.subf %0, %27 : vector<16x32xf32>
    %29 = arith.mulf %28, %28 : vector<16x32xf32>
    %cst_16 = arith.constant dense<0.000000e+00> : vector<16xf32>
    %30 = vector.multi_reduction <add>, %29, %cst_16 [1] : vector<16x32xf32> to vector<16xf32>
    %31 = vector.shape_cast %30 : vector<16xf32> to vector<16x1xf32>
    %cst_17 = arith.constant 0.0322580636 : f32
    %32 = vector.broadcast %cst_17 : f32 to vector<16x1xf32>
    %33 = arith.mulf %31, %32 : vector<16x1xf32>
    %34 = math.sqrt %33 : vector<16x1xf32>
    %35 = vector.broadcast %4 : vector<1x32xf32> to vector<16x32xf32>
    %36 = arith.mulf %35, %28 : vector<16x32xf32>
    %cst_18 = arith.constant 9.99999997E-7 : f32
    %37 = vector.broadcast %cst_18 : f32 to vector<16x1xf32>
    %38 = arith.addf %34, %37 : vector<16x1xf32>
    %39 = tpu.reciprocal %38 : vector<16x1xf32> -> vector<16x1xf32>
    %40 = vector.broadcast %39 : vector<16x1xf32> to vector<16x32xf32>
    %41 = arith.mulf %36, %40 : vector<16x32xf32>
    %42 = vector.broadcast %5 : vector<1x32xf32> to vector<16x32xf32>
    %43 = arith.addf %41, %42 : vector<16x32xf32>
    %cst_19 = arith.constant dense<0.000000e+00> : vector<16x96xf32>
    %44 = tpu.matmul %43, %14, %cst_19 {dimension_numbers = #tpu.dot_dimension_numbers<[1], [0], [0], [1], [0, 0, 1, 1], [], []>} : vector<16x32xf32>, vector<32x96xf32>, vector<16x96xf32> -> vector<16x96xf32>
    %45 = vector.broadcast %19 : vector<1x96xf32> to vector<16x96xf32>
    %46 = arith.addf %44, %45 : vector<16x96xf32>
    %47 = vector.extract_strided_slice %1 {offsets = [0, 0], sizes = [1, 8], strides = [1, 1]} : vector<2x8xf32> to vector<1x8xf32>
    %48 = vector.extract_strided_slice %46 {offsets = [0, 0], sizes = [8, 16], strides = [1, 1]} : vector<16x96xf32> to vector<8x16xf32>
    %49 = vector.extract_strided_slice %46 {offsets = [0, 32], sizes = [8, 16], strides = [1, 1]} : vector<16x96xf32> to vector<8x16xf32>
    %50 = vector.extract_strided_slice %46 {offsets = [0, 64], sizes = [8, 16], strides = [1, 1]} : vector<16x96xf32> to vector<8x16xf32>
    %cst_20 = arith.constant dense<0.000000e+00> : vector<8x8xf32>
    %51 = tpu.matmul %48, %49, %cst_20 {dimension_numbers = #tpu.dot_dimension_numbers<[1], [1], [0], [0], [0, 0, 1, 0], [], []>} : vector<8x16xf32>, vector<8x16xf32>, vector<8x8xf32> -> vector<8x8xf32>
    %52 = vector.broadcast %47 : vector<1x8xf32> to vector<8x8xf32>
    %53 = arith.addf %51, %52 : vector<8x8xf32>
    %cst_21 = arith.constant dense<0xFF800000> : vector<8xf32>
    %54 = vector.multi_reduction <maximumf>, %53, %cst_21 [1] : vector<8x8xf32> to vector<8xf32>
    %55 = vector.shape_cast %54 : vector<8xf32> to vector<8x1xf32>
    %56 = vector.broadcast %55 : vector<8x1xf32> to vector<8x8xf32>
    %57 = arith.subf %53, %56 : vector<8x8xf32>
    %58 = math.exp %57 : vector<8x8xf32>
    %cst_22 = arith.constant dense<0.000000e+00> : vector<8xf32>
    %59 = vector.multi_reduction <add>, %58, %cst_22 [1] : vector<8x8xf32> to vector<8xf32>
    %60 = vector.shape_cast %59 : vector<8xf32> to vector<8x1xf32>
    %61 = tpu.reciprocal %60 : vector<8x1xf32> -> vector<8x1xf32>
    %62 = vector.broadcast %61 : vector<8x1xf32> to vector<8x8xf32>
    %63 = arith.mulf %58, %62 : vector<8x8xf32>
    %cst_23 = arith.constant dense<0.000000e+00> : vector<8x16xf32>
    %64 = tpu.matmul %63, %50, %cst_23 {dimension_numbers = #tpu.dot_dimension_numbers<[1], [0], [0], [1], [0, 0, 1, 1], [], []>} : vector<8x8xf32>, vector<8x16xf32>, vector<8x16xf32> -> vector<8x16xf32>
    %65 = vector.extract_strided_slice %15 {offsets = [0, 0], sizes = [16, 32], strides = [1, 1]} : vector<32x32xf32> to vector<16x32xf32>
    %cst_24 = arith.constant dense<0.000000e+00> : vector<8x32xf32>
    %66 = tpu.matmul %64, %65, %cst_24 {dimension_numbers = #tpu.dot_dimension_numbers<[1], [0], [0], [1], [0, 0, 1, 1], [], []>} : vector<8x16xf32>, vector<16x32xf32>, vector<8x32xf32> -> vector<8x32xf32>
    %67 = vector.broadcast %8 : vector<1x32xf32> to vector<8x32xf32>
    %68 = arith.addf %67, %66 : vector<8x32xf32>
    %69 = vector.extract_strided_slice %46 {offsets = [0, 16], sizes = [8, 16], strides = [1, 1]} : vector<16x96xf32> to vector<8x16xf32>
    %70 = vector.extract_strided_slice %46 {offsets = [0, 48], sizes = [8, 16], strides = [1, 1]} : vector<16x96xf32> to vector<8x16xf32>
    %71 = vector.extract_strided_slice %46 {offsets = [0, 80], sizes = [8, 16], strides = [1, 1]} : vector<16x96xf32> to vector<8x16xf32>
    %cst_25 = arith.constant dense<0.000000e+00> : vector<8x8xf32>
    %72 = tpu.matmul %69, %70, %cst_25 {dimension_numbers = #tpu.dot_dimension_numbers<[1], [1], [0], [0], [0, 0, 1, 0], [], []>} : vector<8x16xf32>, vector<8x16xf32>, vector<8x8xf32> -> vector<8x8xf32>
    %73 = vector.broadcast %47 : vector<1x8xf32> to vector<8x8xf32>
    %74 = arith.addf %72, %73 : vector<8x8xf32>
    %cst_26 = arith.constant dense<0xFF800000> : vector<8xf32>
    %75 = vector.multi_reduction <maximumf>, %74, %cst_26 [1] : vector<8x8xf32> to vector<8xf32>
    %76 = vector.shape_cast %75 : vector<8xf32> to vector<8x1xf32>
    %77 = vector.broadcast %76 : vector<8x1xf32> to vector<8x8xf32>
    %78 = arith.subf %74, %77 : vector<8x8xf32>
    %79 = math.exp %78 : vector<8x8xf32>
    %cst_27 = arith.constant dense<0.000000e+00> : vector<8xf32>
    %80 = vector.multi_reduction <add>, %79, %cst_27 [1] : vector<8x8xf32> to vector<8xf32>
    %81 = vector.shape_cast %80 : vector<8xf32> to vector<8x1xf32>
    %82 = tpu.reciprocal %81 : vector<8x1xf32> -> vector<8x1xf32>
    %83 = vector.broadcast %82 : vector<8x1xf32> to vector<8x8xf32>
    %84 = arith.mulf %79, %83 : vector<8x8xf32>
    %cst_28 = arith.constant dense<0.000000e+00> : vector<8x16xf32>
    %85 = tpu.matmul %84, %71, %cst_28 {dimension_numbers = #tpu.dot_dimension_numbers<[1], [0], [0], [1], [0, 0, 1, 1], [], []>} : vector<8x8xf32>, vector<8x16xf32>, vector<8x16xf32> -> vector<8x16xf32>
    %86 = vector.extract_strided_slice %15 {offsets = [16, 0], sizes = [16, 32], strides = [1, 1]} : vector<32x32xf32> to vector<16x32xf32>
    %cst_29 = arith.constant dense<0.000000e+00> : vector<8x32xf32>
    %87 = tpu.matmul %85, %86, %cst_29 {dimension_numbers = #tpu.dot_dimension_numbers<[1], [0], [0], [1], [0, 0, 1, 1], [], []>} : vector<8x16xf32>, vector<16x32xf32>, vector<8x32xf32> -> vector<8x32xf32>
    %88 = arith.addf %68, %87 : vector<8x32xf32>
    %89 = vector.extract_strided_slice %1 {offsets = [1, 0], sizes = [1, 8], strides = [1, 1]} : vector<2x8xf32> to vector<1x8xf32>
    %90 = vector.extract_strided_slice %46 {offsets = [8, 0], sizes = [8, 16], strides = [1, 1]} : vector<16x96xf32> to vector<8x16xf32>
    %91 = vector.extract_strided_slice %46 {offsets = [8, 32], sizes = [8, 16], strides = [1, 1]} : vector<16x96xf32> to vector<8x16xf32>
    %92 = vector.extract_strided_slice %46 {offsets = [8, 64], sizes = [8, 16], strides = [1, 1]} : vector<16x96xf32> to vector<8x16xf32>
    %cst_30 = arith.constant dense<0.000000e+00> : vector<8x8xf32>
    %93 = tpu.matmul %90, %91, %cst_30 {dimension_numbers = #tpu.dot_dimension_numbers<[1], [1], [0], [0], [0, 0, 1, 0], [], []>} : vector<8x16xf32>, vector<8x16xf32>, vector<8x8xf32> -> vector<8x8xf32>
    %94 = vector.broadcast %89 : vector<1x8xf32> to vector<8x8xf32>
    %95 = arith.addf %93, %94 : vector<8x8xf32>
    %cst_31 = arith.constant dense<0xFF800000> : vector<8xf32>
    %96 = vector.multi_reduction <maximumf>, %95, %cst_31 [1] : vector<8x8xf32> to vector<8xf32>
    %97 = vector.shape_cast %96 : vector<8xf32> to vector<8x1xf32>
    %98 = vector.broadcast %97 : vector<8x1xf32> to vector<8x8xf32>
    %99 = arith.subf %95, %98 : vector<8x8xf32>
    %100 = math.exp %99 : vector<8x8xf32>
    %cst_32 = arith.constant dense<0.000000e+00> : vector<8xf32>
    %101 = vector.multi_reduction <add>, %100, %cst_32 [1] : vector<8x8xf32> to vector<8xf32>
    %102 = vector.shape_cast %101 : vector<8xf32> to vector<8x1xf32>
    %103 = tpu.reciprocal %102 : vector<8x1xf32> -> vector<8x1xf32>
    %104 = vector.broadcast %103 : vector<8x1xf32> to vector<8x8xf32>
    %105 = arith.mulf %100, %104 : vector<8x8xf32>
    %cst_33 = arith.constant dense<0.000000e+00> : vector<8x16xf32>
    %106 = tpu.matmul %105, %92, %cst_33 {dimension_numbers = #tpu.dot_dimension_numbers<[1], [0], [0], [1], [0, 0, 1, 1], [], []>} : vector<8x8xf32>, vector<8x16xf32>, vector<8x16xf32> -> vector<8x16xf32>
    %107 = vector.extract_strided_slice %15 {offsets = [0, 0], sizes = [16, 32], strides = [1, 1]} : vector<32x32xf32> to vector<16x32xf32>
    %cst_34 = arith.constant dense<0.000000e+00> : vector<8x32xf32>
    %108 = tpu.matmul %106, %107, %cst_34 {dimension_numbers = #tpu.dot_dimension_numbers<[1], [0], [0], [1], [0, 0, 1, 1], [], []>} : vector<8x16xf32>, vector<16x32xf32>, vector<8x32xf32> -> vector<8x32xf32>
    %109 = vector.broadcast %8 : vector<1x32xf32> to vector<8x32xf32>
    %110 = arith.addf %109, %108 : vector<8x32xf32>
    %111 = vector.extract_strided_slice %46 {offsets = [8, 16], sizes = [8, 16], strides = [1, 1]} : vector<16x96xf32> to vector<8x16xf32>
    %112 = vector.extract_strided_slice %46 {offsets = [8, 48], sizes = [8, 16], strides = [1, 1]} : vector<16x96xf32> to vector<8x16xf32>
    %113 = vector.extract_strided_slice %46 {offsets = [8, 80], sizes = [8, 16], strides = [1, 1]} : vector<16x96xf32> to vector<8x16xf32>
    %cst_35 = arith.constant dense<0.000000e+00> : vector<8x8xf32>
    %114 = tpu.matmul %111, %112, %cst_35 {dimension_numbers = #tpu.dot_dimension_numbers<[1], [1], [0], [0], [0, 0, 1, 0], [], []>} : vector<8x16xf32>, vector<8x16xf32>, vector<8x8xf32> -> vector<8x8xf32>
    %115 = vector.broadcast %89 : vector<1x8xf32> to vector<8x8xf32>
    %116 = arith.addf %114, %115 : vector<8x8xf32>
    %cst_36 = arith.constant dense<0xFF800000> : vector<8xf32>
    %117 = vector.multi_reduction <maximumf>, %116, %cst_36 [1] : vector<8x8xf32> to vector<8xf32>
    %118 = vector.shape_cast %117 : vector<8xf32> to vector<8x1xf32>
    %119 = vector.broadcast %118 : vector<8x1xf32> to vector<8x8xf32>
    %120 = arith.subf %116, %119 : vector<8x8xf32>
    %121 = math.exp %120 : vector<8x8xf32>
    %cst_37 = arith.constant dense<0.000000e+00> : vector<8xf32>
    %122 = vector.multi_reduction <add>, %121, %cst_37 [1] : vector<8x8xf32> to vector<8xf32>
    %123 = vector.shape_cast %122 : vector<8xf32> to vector<8x1xf32>
    %124 = tpu.reciprocal %123 : vector<8x1xf32> -> vector<8x1xf32>
    %125 = vector.broadcast %124 : vector<8x1xf32> to vector<8x8xf32>
    %126 = arith.mulf %121, %125 : vector<8x8xf32>
    %cst_38 = arith.constant dense<0.000000e+00> : vector<8x16xf32>
    %127 = tpu.matmul %126, %113, %cst_38 {dimension_numbers = #tpu.dot_dimension_numbers<[1], [0], [0], [1], [0, 0, 1, 1], [], []>} : vector<8x8xf32>, vector<8x16xf32>, vector<8x16xf32> -> vector<8x16xf32>
    %128 = vector.extract_strided_slice %15 {offsets = [16, 0], sizes = [16, 32], strides = [1, 1]} : vector<32x32xf32> to vector<16x32xf32>
    %cst_39 = arith.constant dense<0.000000e+00> : vector<8x32xf32>
    %129 = tpu.matmul %127, %128, %cst_39 {dimension_numbers = #tpu.dot_dimension_numbers<[1], [0], [0], [1], [0, 0, 1, 1], [], []>} : vector<8x16xf32>, vector<16x32xf32>, vector<8x32xf32> -> vector<8x32xf32>
    %130 = arith.addf %110, %129 : vector<8x32xf32>
    %131 = tpu.concatenate %88, %130 in 0 : vector<8x32xf32>, vector<8x32xf32> -> vector<16x32xf32>
    %132 = arith.addf %0, %131 : vector<16x32xf32>
    %cst_40 = arith.constant dense<0.000000e+00> : vector<16xf32>
    %133 = vector.multi_reduction <add>, %132, %cst_40 [1] : vector<16x32xf32> to vector<16xf32>
    %134 = vector.shape_cast %133 : vector<16xf32> to vector<16x1xf32>
    %cst_41 = arith.constant 3.200000e+01 : f32
    %135 = vector.broadcast %cst_41 : f32 to vector<16x1xf32>
    %136 = arith.divf %134, %135 : vector<16x1xf32>
    %137 = vector.broadcast %136 : vector<16x1xf32> to vector<16x32xf32>
    %138 = arith.subf %132, %137 : vector<16x32xf32>
    %139 = arith.mulf %138, %138 : vector<16x32xf32>
    %cst_42 = arith.constant dense<0.000000e+00> : vector<16xf32>
    %140 = vector.multi_reduction <add>, %139, %cst_42 [1] : vector<16x32xf32> to vector<16xf32>
    %141 = vector.shape_cast %140 : vector<16xf32> to vector<16x1xf32>
    %cst_43 = arith.constant 0.0322580636 : f32
    %142 = vector.broadcast %cst_43 : f32 to vector<16x1xf32>
    %143 = arith.mulf %141, %142 : vector<16x1xf32>
    %144 = math.sqrt %143 : vector<16x1xf32>
    %145 = vector.broadcast %6 : vector<1x32xf32> to vector<16x32xf32>
    %146 = arith.mulf %145, %138 : vector<16x32xf32>
    %cst_44 = arith.constant 9.99999997E-7 : f32
    %147 = vector.broadcast %cst_44 : f32 to vector<16x1xf32>
    %148 = arith.addf %144, %147 : vector<16x1xf32>
    %149 = tpu.reciprocal %148 : vector<16x1xf32> -> vector<16x1xf32>
    %150 = vector.broadcast %149 : vector<16x1xf32> to vector<16x32xf32>
    %151 = arith.mulf %146, %150 : vector<16x32xf32>
    %152 = vector.broadcast %7 : vector<1x32xf32> to vector<16x32xf32>
    %153 = arith.addf %151, %152 : vector<16x32xf32>
    %cst_45 = arith.constant dense<0.000000e+00> : vector<16x64xf32>
    %154 = tpu.matmul %153, %16, %cst_45 {dimension_numbers = #tpu.dot_dimension_numbers<[1], [0], [0], [1], [0, 0, 1, 1], [], []>} : vector<16x32xf32>, vector<32x64xf32>, vector<16x64xf32> -> vector<16x64xf32>
    %155 = vector.broadcast %20 : vector<1x64xf32> to vector<16x64xf32>
    %156 = arith.addf %154, %155 : vector<16x64xf32>
    %cst_46 = arith.constant 0.000000e+00 : f32
    %157 = vector.broadcast %cst_46 : f32 to vector<16x64xf32>
    %158 = arith.maximumf %156, %157 : vector<16x64xf32>
    %cst_47 = arith.constant dense<0.000000e+00> : vector<16x32xf32>
    %159 = tpu.matmul %158, %22, %cst_47 {dimension_numbers = #tpu.dot_dimension_numbers<[1], [0], [0], [1], [0, 0, 1, 1], [], []>} : vector<16x64xf32>, vector<64x32xf32>, vector<16x32xf32> -> vector<16x32xf32>
    %160 = arith.addf %132, %159 : vector<16x32xf32>
    %161 = vector.broadcast %9 : vector<1x32xf32> to vector<16x32xf32>
    %162 = arith.addf %160, %161 : vector<16x32xf32>
    %c1 = arith.constant 1 : index
    %c0_48 = arith.constant 0 : index
    %c0_49 = arith.constant 0 : index
    %163 = vector.load %arg6[%c1, %c0_48, %c0_49] : memref<2x8x32xf32, #tpu.memory_space<vmem>>, vector<1x8x32xf32>
    %164 = vector.shape_cast %163 : vector<1x8x32xf32> to vector<8x32xf32>
    %165 = vector.extract_strided_slice %164 {offsets = [0, 0], sizes = [1, 32], strides = [1, 1]} : vector<8x32xf32> to vector<1x32xf32>
    %166 = vector.extract_strided_slice %164 {offsets = [1, 0], sizes = [1, 32], strides = [1, 1]} : vector<8x32xf32> to vector<1x32xf32>
    %167 = vector.extract_strided_slice %164 {offsets = [2, 0], sizes = [1, 32], strides = [1, 1]} : vector<8x32xf32> to vector<1x32xf32>
    %168 = vector.extract_strided_slice %164 {offsets = [3, 0], sizes = [1, 32], strides = [1, 1]} : vector<8x32xf32> to vector<1x32xf32>
    %169 = vector.extract_strided_slice %164 {offsets = [4, 0], sizes = [1, 32], strides = [1, 1]} : vector<8x32xf32> to vector<1x32xf32>
    %170 = vector.extract_strided_slice %164 {offsets = [5, 0], sizes = [1, 32], strides = [1, 1]} : vector<8x32xf32> to vector<1x32xf32>
    %c1_50 = arith.constant 1 : index
    %c0_51 = arith.constant 0 : index
    %c0_52 = arith.constant 0 : index
    %171 = vector.load %arg3[%c1_50, %c0_51, %c0_52] : memref<2x32x192xf32, #tpu.memory_space<vmem>>, vector<1x32x192xf32>
    %172 = vector.shape_cast %171 : vector<1x32x192xf32> to vector<32x192xf32>
    %173 = vector.extract_strided_slice %172 {offsets = [0, 0], sizes = [32, 96], strides = [1, 1]} : vector<32x192xf32> to vector<32x96xf32>
    %174 = vector.extract_strided_slice %172 {offsets = [0, 96], sizes = [32, 32], strides = [1, 1]} : vector<32x192xf32> to vector<32x32xf32>
    %175 = vector.extract_strided_slice %172 {offsets = [0, 128], sizes = [32, 64], strides = [1, 1]} : vector<32x192xf32> to vector<32x64xf32>
    %c1_53 = arith.constant 1 : index
    %c0_54 = arith.constant 0 : index
    %c0_55 = arith.constant 0 : index
    %176 = vector.load %arg5[%c1_53, %c0_54, %c0_55] : memref<2x1x160xf32, #tpu.memory_space<vmem>>, vector<1x1x160xf32>
    %177 = vector.shape_cast %176 : vector<1x1x160xf32> to vector<1x160xf32>
    %178 = vector.extract_strided_slice %177 {offsets = [0, 0], sizes = [1, 96], strides = [1, 1]} : vector<1x160xf32> to vector<1x96xf32>
    %179 = vector.extract_strided_slice %177 {offsets = [0, 96], sizes = [1, 64], strides = [1, 1]} : vector<1x160xf32> to vector<1x64xf32>
    %c1_56 = arith.constant 1 : index
    %c0_57 = arith.constant 0 : index
    %c0_58 = arith.constant 0 : index
    %180 = vector.load %arg4[%c1_56, %c0_57, %c0_58] : memref<2x64x32xf32, #tpu.memory_space<vmem>>, vector<1x64x32xf32>
    %181 = vector.shape_cast %180 : vector<1x64x32xf32> to vector<64x32xf32>
    %cst_59 = arith.constant dense<0.000000e+00> : vector<16xf32>
    %182 = vector.multi_reduction <add>, %162, %cst_59 [1] : vector<16x32xf32> to vector<16xf32>
    %183 = vector.shape_cast %182 : vector<16xf32> to vector<16x1xf32>
    %cst_60 = arith.constant 3.200000e+01 : f32
    %184 = vector.broadcast %cst_60 : f32 to vector<16x1xf32>
    %185 = arith.divf %183, %184 : vector<16x1xf32>
    %186 = vector.broadcast %185 : vector<16x1xf32> to vector<16x32xf32>
    %187 = arith.subf %162, %186 : vector<16x32xf32>
    %188 = arith.mulf %187, %187 : vector<16x32xf32>
    %cst_61 = arith.constant dense<0.000000e+00> : vector<16xf32>
    %189 = vector.multi_reduction <add>, %188, %cst_61 [1] : vector<16x32xf32> to vector<16xf32>
    %190 = vector.shape_cast %189 : vector<16xf32> to vector<16x1xf32>
    %cst_62 = arith.constant 0.0322580636 : f32
    %191 = vector.broadcast %cst_62 : f32 to vector<16x1xf32>
    %192 = arith.mulf %190, %191 : vector<16x1xf32>
    %193 = math.sqrt %192 : vector<16x1xf32>
    %194 = vector.broadcast %165 : vector<1x32xf32> to vector<16x32xf32>
    %195 = arith.mulf %194, %187 : vector<16x32xf32>
    %cst_63 = arith.constant 9.99999997E-7 : f32
    %196 = vector.broadcast %cst_63 : f32 to vector<16x1xf32>
    %197 = arith.addf %193, %196 : vector<16x1xf32>
    %198 = tpu.reciprocal %197 : vector<16x1xf32> -> vector<16x1xf32>
    %199 = vector.broadcast %198 : vector<16x1xf32> to vector<16x32xf32>
    %200 = arith.mulf %195, %199 : vector<16x32xf32>
    %201 = vector.broadcast %166 : vector<1x32xf32> to vector<16x32xf32>
    %202 = arith.addf %200, %201 : vector<16x32xf32>
    %cst_64 = arith.constant dense<0.000000e+00> : vector<16x96xf32>
    %203 = tpu.matmul %202, %173, %cst_64 {dimension_numbers = #tpu.dot_dimension_numbers<[1], [0], [0], [1], [0, 0, 1, 1], [], []>} : vector<16x32xf32>, vector<32x96xf32>, vector<16x96xf32> -> vector<16x96xf32>
    %204 = vector.broadcast %178 : vector<1x96xf32> to vector<16x96xf32>
    %205 = arith.addf %203, %204 : vector<16x96xf32>
    %206 = vector.extract_strided_slice %1 {offsets = [0, 0], sizes = [1, 8], strides = [1, 1]} : vector<2x8xf32> to vector<1x8xf32>
    %207 = vector.extract_strided_slice %205 {offsets = [0, 0], sizes = [8, 16], strides = [1, 1]} : vector<16x96xf32> to vector<8x16xf32>
    %208 = vector.extract_strided_slice %205 {offsets = [0, 32], sizes = [8, 16], strides = [1, 1]} : vector<16x96xf32> to vector<8x16xf32>
    %209 = vector.extract_strided_slice %205 {offsets = [0, 64], sizes = [8, 16], strides = [1, 1]} : vector<16x96xf32> to vector<8x16xf32>
    %cst_65 = arith.constant dense<0.000000e+00> : vector<8x8xf32>
    %210 = tpu.matmul %207, %208, %cst_65 {dimension_numbers = #tpu.dot_dimension_numbers<[1], [1], [0], [0], [0, 0, 1, 0], [], []>} : vector<8x16xf32>, vector<8x16xf32>, vector<8x8xf32> -> vector<8x8xf32>
    %211 = vector.broadcast %206 : vector<1x8xf32> to vector<8x8xf32>
    %212 = arith.addf %210, %211 : vector<8x8xf32>
    %cst_66 = arith.constant dense<0xFF800000> : vector<8xf32>
    %213 = vector.multi_reduction <maximumf>, %212, %cst_66 [1] : vector<8x8xf32> to vector<8xf32>
    %214 = vector.shape_cast %213 : vector<8xf32> to vector<8x1xf32>
    %215 = vector.broadcast %214 : vector<8x1xf32> to vector<8x8xf32>
    %216 = arith.subf %212, %215 : vector<8x8xf32>
    %217 = math.exp %216 : vector<8x8xf32>
    %cst_67 = arith.constant dense<0.000000e+00> : vector<8xf32>
    %218 = vector.multi_reduction <add>, %217, %cst_67 [1] : vector<8x8xf32> to vector<8xf32>
    %219 = vector.shape_cast %218 : vector<8xf32> to vector<8x1xf32>
    %220 = tpu.reciprocal %219 : vector<8x1xf32> -> vector<8x1xf32>
    %221 = vector.broadcast %220 : vector<8x1xf32> to vector<8x8xf32>
    %222 = arith.mulf %217, %221 : vector<8x8xf32>
    %cst_68 = arith.constant dense<0.000000e+00> : vector<8x16xf32>
    %223 = tpu.matmul %222, %209, %cst_68 {dimension_numbers = #tpu.dot_dimension_numbers<[1], [0], [0], [1], [0, 0, 1, 1], [], []>} : vector<8x8xf32>, vector<8x16xf32>, vector<8x16xf32> -> vector<8x16xf32>
    %224 = vector.extract_strided_slice %174 {offsets = [0, 0], sizes = [16, 32], strides = [1, 1]} : vector<32x32xf32> to vector<16x32xf32>
    %cst_69 = arith.constant dense<0.000000e+00> : vector<8x32xf32>
    %225 = tpu.matmul %223, %224, %cst_69 {dimension_numbers = #tpu.dot_dimension_numbers<[1], [0], [0], [1], [0, 0, 1, 1], [], []>} : vector<8x16xf32>, vector<16x32xf32>, vector<8x32xf32> -> vector<8x32xf32>
    %226 = vector.broadcast %169 : vector<1x32xf32> to vector<8x32xf32>
    %227 = arith.addf %226, %225 : vector<8x32xf32>
    %228 = vector.extract_strided_slice %205 {offsets = [0, 16], sizes = [8, 16], strides = [1, 1]} : vector<16x96xf32> to vector<8x16xf32>
    %229 = vector.extract_strided_slice %205 {offsets = [0, 48], sizes = [8, 16], strides = [1, 1]} : vector<16x96xf32> to vector<8x16xf32>
    %230 = vector.extract_strided_slice %205 {offsets = [0, 80], sizes = [8, 16], strides = [1, 1]} : vector<16x96xf32> to vector<8x16xf32>
    %cst_70 = arith.constant dense<0.000000e+00> : vector<8x8xf32>
    %231 = tpu.matmul %228, %229, %cst_70 {dimension_numbers = #tpu.dot_dimension_numbers<[1], [1], [0], [0], [0, 0, 1, 0], [], []>} : vector<8x16xf32>, vector<8x16xf32>, vector<8x8xf32> -> vector<8x8xf32>
    %232 = vector.broadcast %206 : vector<1x8xf32> to vector<8x8xf32>
    %233 = arith.addf %231, %232 : vector<8x8xf32>
    %cst_71 = arith.constant dense<0xFF800000> : vector<8xf32>
    %234 = vector.multi_reduction <maximumf>, %233, %cst_71 [1] : vector<8x8xf32> to vector<8xf32>
    %235 = vector.shape_cast %234 : vector<8xf32> to vector<8x1xf32>
    %236 = vector.broadcast %235 : vector<8x1xf32> to vector<8x8xf32>
    %237 = arith.subf %233, %236 : vector<8x8xf32>
    %238 = math.exp %237 : vector<8x8xf32>
    %cst_72 = arith.constant dense<0.000000e+00> : vector<8xf32>
    %239 = vector.multi_reduction <add>, %238, %cst_72 [1] : vector<8x8xf32> to vector<8xf32>
    %240 = vector.shape_cast %239 : vector<8xf32> to vector<8x1xf32>
    %241 = tpu.reciprocal %240 : vector<8x1xf32> -> vector<8x1xf32>
    %242 = vector.broadcast %241 : vector<8x1xf32> to vector<8x8xf32>
    %243 = arith.mulf %238, %242 : vector<8x8xf32>
    %cst_73 = arith.constant dense<0.000000e+00> : vector<8x16xf32>
    %244 = tpu.matmul %243, %230, %cst_73 {dimension_numbers = #tpu.dot_dimension_numbers<[1], [0], [0], [1], [0, 0, 1, 1], [], []>} : vector<8x8xf32>, vector<8x16xf32>, vector<8x16xf32> -> vector<8x16xf32>
    %245 = vector.extract_strided_slice %174 {offsets = [16, 0], sizes = [16, 32], strides = [1, 1]} : vector<32x32xf32> to vector<16x32xf32>
    %cst_74 = arith.constant dense<0.000000e+00> : vector<8x32xf32>
    %246 = tpu.matmul %244, %245, %cst_74 {dimension_numbers = #tpu.dot_dimension_numbers<[1], [0], [0], [1], [0, 0, 1, 1], [], []>} : vector<8x16xf32>, vector<16x32xf32>, vector<8x32xf32> -> vector<8x32xf32>
    %247 = arith.addf %227, %246 : vector<8x32xf32>
    %248 = vector.extract_strided_slice %1 {offsets = [1, 0], sizes = [1, 8], strides = [1, 1]} : vector<2x8xf32> to vector<1x8xf32>
    %249 = vector.extract_strided_slice %205 {offsets = [8, 0], sizes = [8, 16], strides = [1, 1]} : vector<16x96xf32> to vector<8x16xf32>
    %250 = vector.extract_strided_slice %205 {offsets = [8, 32], sizes = [8, 16], strides = [1, 1]} : vector<16x96xf32> to vector<8x16xf32>
    %251 = vector.extract_strided_slice %205 {offsets = [8, 64], sizes = [8, 16], strides = [1, 1]} : vector<16x96xf32> to vector<8x16xf32>
    %cst_75 = arith.constant dense<0.000000e+00> : vector<8x8xf32>
    %252 = tpu.matmul %249, %250, %cst_75 {dimension_numbers = #tpu.dot_dimension_numbers<[1], [1], [0], [0], [0, 0, 1, 0], [], []>} : vector<8x16xf32>, vector<8x16xf32>, vector<8x8xf32> -> vector<8x8xf32>
    %253 = vector.broadcast %248 : vector<1x8xf32> to vector<8x8xf32>
    %254 = arith.addf %252, %253 : vector<8x8xf32>
    %cst_76 = arith.constant dense<0xFF800000> : vector<8xf32>
    %255 = vector.multi_reduction <maximumf>, %254, %cst_76 [1] : vector<8x8xf32> to vector<8xf32>
    %256 = vector.shape_cast %255 : vector<8xf32> to vector<8x1xf32>
    %257 = vector.broadcast %256 : vector<8x1xf32> to vector<8x8xf32>
    %258 = arith.subf %254, %257 : vector<8x8xf32>
    %259 = math.exp %258 : vector<8x8xf32>
    %cst_77 = arith.constant dense<0.000000e+00> : vector<8xf32>
    %260 = vector.multi_reduction <add>, %259, %cst_77 [1] : vector<8x8xf32> to vector<8xf32>
    %261 = vector.shape_cast %260 : vector<8xf32> to vector<8x1xf32>
    %262 = tpu.reciprocal %261 : vector<8x1xf32> -> vector<8x1xf32>
    %263 = vector.broadcast %262 : vector<8x1xf32> to vector<8x8xf32>
    %264 = arith.mulf %259, %263 : vector<8x8xf32>
    %cst_78 = arith.constant dense<0.000000e+00> : vector<8x16xf32>
    %265 = tpu.matmul %264, %251, %cst_78 {dimension_numbers = #tpu.dot_dimension_numbers<[1], [0], [0], [1], [0, 0, 1, 1], [], []>} : vector<8x8xf32>, vector<8x16xf32>, vector<8x16xf32> -> vector<8x16xf32>
    %266 = vector.extract_strided_slice %174 {offsets = [0, 0], sizes = [16, 32], strides = [1, 1]} : vector<32x32xf32> to vector<16x32xf32>
    %cst_79 = arith.constant dense<0.000000e+00> : vector<8x32xf32>
    %267 = tpu.matmul %265, %266, %cst_79 {dimension_numbers = #tpu.dot_dimension_numbers<[1], [0], [0], [1], [0, 0, 1, 1], [], []>} : vector<8x16xf32>, vector<16x32xf32>, vector<8x32xf32> -> vector<8x32xf32>
    %268 = vector.broadcast %169 : vector<1x32xf32> to vector<8x32xf32>
    %269 = arith.addf %268, %267 : vector<8x32xf32>
    %270 = vector.extract_strided_slice %205 {offsets = [8, 16], sizes = [8, 16], strides = [1, 1]} : vector<16x96xf32> to vector<8x16xf32>
    %271 = vector.extract_strided_slice %205 {offsets = [8, 48], sizes = [8, 16], strides = [1, 1]} : vector<16x96xf32> to vector<8x16xf32>
    %272 = vector.extract_strided_slice %205 {offsets = [8, 80], sizes = [8, 16], strides = [1, 1]} : vector<16x96xf32> to vector<8x16xf32>
    %cst_80 = arith.constant dense<0.000000e+00> : vector<8x8xf32>
    %273 = tpu.matmul %270, %271, %cst_80 {dimension_numbers = #tpu.dot_dimension_numbers<[1], [1], [0], [0], [0, 0, 1, 0], [], []>} : vector<8x16xf32>, vector<8x16xf32>, vector<8x8xf32> -> vector<8x8xf32>
    %274 = vector.broadcast %248 : vector<1x8xf32> to vector<8x8xf32>
    %275 = arith.addf %273, %274 : vector<8x8xf32>
    %cst_81 = arith.constant dense<0xFF800000> : vector<8xf32>
    %276 = vector.multi_reduction <maximumf>, %275, %cst_81 [1] : vector<8x8xf32> to vector<8xf32>
    %277 = vector.shape_cast %276 : vector<8xf32> to vector<8x1xf32>
    %278 = vector.broadcast %277 : vector<8x1xf32> to vector<8x8xf32>
    %279 = arith.subf %275, %278 : vector<8x8xf32>
    %280 = math.exp %279 : vector<8x8xf32>
    %cst_82 = arith.constant dense<0.000000e+00> : vector<8xf32>
    %281 = vector.multi_reduction <add>, %280, %cst_82 [1] : vector<8x8xf32> to vector<8xf32>
    %282 = vector.shape_cast %281 : vector<8xf32> to vector<8x1xf32>
    %283 = tpu.reciprocal %282 : vector<8x1xf32> -> vector<8x1xf32>
    %284 = vector.broadcast %283 : vector<8x1xf32> to vector<8x8xf32>
    %285 = arith.mulf %280, %284 : vector<8x8xf32>
    %cst_83 = arith.constant dense<0.000000e+00> : vector<8x16xf32>
    %286 = tpu.matmul %285, %272, %cst_83 {dimension_numbers = #tpu.dot_dimension_numbers<[1], [0], [0], [1], [0, 0, 1, 1], [], []>} : vector<8x8xf32>, vector<8x16xf32>, vector<8x16xf32> -> vector<8x16xf32>
    %287 = vector.extract_strided_slice %174 {offsets = [16, 0], sizes = [16, 32], strides = [1, 1]} : vector<32x32xf32> to vector<16x32xf32>
    %cst_84 = arith.constant dense<0.000000e+00> : vector<8x32xf32>
    %288 = tpu.matmul %286, %287, %cst_84 {dimension_numbers = #tpu.dot_dimension_numbers<[1], [0], [0], [1], [0, 0, 1, 1], [], []>} : vector<8x16xf32>, vector<16x32xf32>, vector<8x32xf32> -> vector<8x32xf32>
    %289 = arith.addf %269, %288 : vector<8x32xf32>
    %290 = tpu.concatenate %247, %289 in 0 : vector<8x32xf32>, vector<8x32xf32> -> vector<16x32xf32>
    %291 = arith.addf %162, %290 : vector<16x32xf32>
    %cst_85 = arith.constant dense<0.000000e+00> : vector<16xf32>
    %292 = vector.multi_reduction <add>, %291, %cst_85 [1] : vector<16x32xf32> to vector<16xf32>
    %293 = vector.shape_cast %292 : vector<16xf32> to vector<16x1xf32>
    %cst_86 = arith.constant 3.200000e+01 : f32
    %294 = vector.broadcast %cst_86 : f32 to vector<16x1xf32>
    %295 = arith.divf %293, %294 : vector<16x1xf32>
    %296 = vector.broadcast %295 : vector<16x1xf32> to vector<16x32xf32>
    %297 = arith.subf %291, %296 : vector<16x32xf32>
    %298 = arith.mulf %297, %297 : vector<16x32xf32>
    %cst_87 = arith.constant dense<0.000000e+00> : vector<16xf32>
    %299 = vector.multi_reduction <add>, %298, %cst_87 [1] : vector<16x32xf32> to vector<16xf32>
    %300 = vector.shape_cast %299 : vector<16xf32> to vector<16x1xf32>
    %cst_88 = arith.constant 0.0322580636 : f32
    %301 = vector.broadcast %cst_88 : f32 to vector<16x1xf32>
    %302 = arith.mulf %300, %301 : vector<16x1xf32>
    %303 = math.sqrt %302 : vector<16x1xf32>
    %304 = vector.broadcast %167 : vector<1x32xf32> to vector<16x32xf32>
    %305 = arith.mulf %304, %297 : vector<16x32xf32>
    %cst_89 = arith.constant 9.99999997E-7 : f32
    %306 = vector.broadcast %cst_89 : f32 to vector<16x1xf32>
    %307 = arith.addf %303, %306 : vector<16x1xf32>
    %308 = tpu.reciprocal %307 : vector<16x1xf32> -> vector<16x1xf32>
    %309 = vector.broadcast %308 : vector<16x1xf32> to vector<16x32xf32>
    %310 = arith.mulf %305, %309 : vector<16x32xf32>
    %311 = vector.broadcast %168 : vector<1x32xf32> to vector<16x32xf32>
    %312 = arith.addf %310, %311 : vector<16x32xf32>
    %cst_90 = arith.constant dense<0.000000e+00> : vector<16x64xf32>
    %313 = tpu.matmul %312, %175, %cst_90 {dimension_numbers = #tpu.dot_dimension_numbers<[1], [0], [0], [1], [0, 0, 1, 1], [], []>} : vector<16x32xf32>, vector<32x64xf32>, vector<16x64xf32> -> vector<16x64xf32>
    %314 = vector.broadcast %179 : vector<1x64xf32> to vector<16x64xf32>
    %315 = arith.addf %313, %314 : vector<16x64xf32>
    %cst_91 = arith.constant 0.000000e+00 : f32
    %316 = vector.broadcast %cst_91 : f32 to vector<16x64xf32>
    %317 = arith.maximumf %315, %316 : vector<16x64xf32>
    %cst_92 = arith.constant dense<0.000000e+00> : vector<16x32xf32>
    %318 = tpu.matmul %317, %181, %cst_92 {dimension_numbers = #tpu.dot_dimension_numbers<[1], [0], [0], [1], [0, 0, 1, 1], [], []>} : vector<16x64xf32>, vector<64x32xf32>, vector<16x32xf32> -> vector<16x32xf32>
    %319 = arith.addf %291, %318 : vector<16x32xf32>
    %320 = vector.broadcast %170 : vector<1x32xf32> to vector<16x32xf32>
    %321 = arith.addf %319, %320 : vector<16x32xf32>
    %cst_93 = arith.constant dense<0.000000e+00> : vector<16xf32>
    %322 = vector.multi_reduction <add>, %321, %cst_93 [1] : vector<16x32xf32> to vector<16xf32>
    %323 = vector.shape_cast %322 : vector<16xf32> to vector<16x1xf32>
    %cst_94 = arith.constant 3.200000e+01 : f32
    %324 = vector.broadcast %cst_94 : f32 to vector<16x1xf32>
    %325 = arith.divf %323, %324 : vector<16x1xf32>
    %326 = vector.broadcast %325 : vector<16x1xf32> to vector<16x32xf32>
    %327 = arith.subf %321, %326 : vector<16x32xf32>
    %328 = arith.mulf %327, %327 : vector<16x32xf32>
    %cst_95 = arith.constant dense<0.000000e+00> : vector<16xf32>
    %329 = vector.multi_reduction <add>, %328, %cst_95 [1] : vector<16x32xf32> to vector<16xf32>
    %330 = vector.shape_cast %329 : vector<16xf32> to vector<16x1xf32>
    %cst_96 = arith.constant 0.0322580636 : f32
    %331 = vector.broadcast %cst_96 : f32 to vector<16x1xf32>
    %332 = arith.mulf %330, %331 : vector<16x1xf32>
    %333 = math.sqrt %332 : vector<16x1xf32>
    %334 = vector.broadcast %10 : vector<1x32xf32> to vector<16x32xf32>
    %335 = arith.mulf %334, %327 : vector<16x32xf32>
    %cst_97 = arith.constant 9.99999997E-7 : f32
    %336 = vector.broadcast %cst_97 : f32 to vector<16x1xf32>
    %337 = arith.addf %333, %336 : vector<16x1xf32>
    %338 = tpu.reciprocal %337 : vector<16x1xf32> -> vector<16x1xf32>
    %339 = vector.broadcast %338 : vector<16x1xf32> to vector<16x32xf32>
    %340 = arith.mulf %335, %339 : vector<16x32xf32>
    %341 = vector.broadcast %11 : vector<1x32xf32> to vector<16x32xf32>
    %342 = arith.addf %340, %341 : vector<16x32xf32>
    %c0_98 = arith.constant 0 : index
    %c0_99 = arith.constant 0 : index
    %343 = vector.load %arg7[%c0_98, %c0_99] : memref<16x32xf32, #tpu.memory_space<vmem>>, vector<16x32xf32>
    tpu.vector_store %arg7[%c0_98, %c0_99], %342 {strides = array<i32>} : memref<16x32xf32, #tpu.memory_space<vmem>>, vector<16x32xf32>,
    return
  }
  func.func @transform_0(%arg0: i32) -> (i32, i32) {
    %c0_i32 = arith.constant 0 : i32
    %c0_i32_0 = arith.constant 0 : i32
    %c0_i32_1 = arith.constant 0 : i32
    return %c0_i32, %c0_i32_0 : i32, i32
  }
  func.func @transform_1(%arg0: i32) -> (i32, i32) {
    %c0_i32 = arith.constant 0 : i32
    %c0_i32_0 = arith.constant 0 : i32
    %c0_i32_1 = arith.constant 0 : i32
    return %c0_i32, %c0_i32_0 : i32, i32
  }
  func.func @transform_2(%arg0: i32) -> (i32, i32, i32) {
    %c0_i32 = arith.constant 0 : i32
    %c0_i32_0 = arith.constant 0 : i32
    %c0_i32_1 = arith.constant 0 : i32
    %c0_i32_2 = arith.constant 0 : i32
    return %c0_i32, %c0_i32_0, %c0_i32_1 : i32, i32, i32
  }
  func.func @transform_3(%arg0: i32) -> (i32, i32, i32) {
    %c0_i32 = arith.constant 0 : i32
    %c0_i32_0 = arith.constant 0 : i32
    %c0_i32_1 = arith.constant 0 : i32
    %c0_i32_2 = arith.constant 0 : i32
    return %c0_i32, %c0_i32_0, %c0_i32_1 : i32, i32, i32
  }
  func.func @transform_4(%arg0: i32) -> (i32, i32, i32) {
    %c0_i32 = arith.constant 0 : i32
    %c0_i32_0 = arith.constant 0 : i32
    %c0_i32_1 = arith.constant 0 : i32
    %c0_i32_2 = arith.constant 0 : i32
    return %c0_i32, %c0_i32_0, %c0_i32_1 : i32, i32, i32
  }
  func.func @transform_5(%arg0: i32) -> (i32, i32, i32) {
    %c0_i32 = arith.constant 0 : i32
    %c0_i32_0 = arith.constant 0 : i32
    %c0_i32_1 = arith.constant 0 : i32
    %c0_i32_2 = arith.constant 0 : i32
    return %c0_i32, %c0_i32_0, %c0_i32_1 : i32, i32, i32
  }
  func.func @transform_6(%arg0: i32) -> (i32, i32) {
    %c0_i32 = arith.constant 0 : i32
    %c0_i32_0 = arith.constant 0 : i32
    %c0_i32_1 = arith.constant 0 : i32
    return %c0_i32, %c0_i32_0 : i32, i32
  }
}

</mosaic_0001>

<llo_original>
// kernel: tpu_custom_call.1
$region0: #{tpu_custom_call.1}
  #allocation0 [shape = 'u32[]', space=smem, size = 0x4, offset = 0x4, fixed_abs, tag = 'smem constant byte address 0x4 - core index']
  #allocation1 [shape = 'u32[144,128]{1,0:T(1,128)}', space=vmem, size = 0x12000, scoped, tag = 'internal scratch']
  %s0 = inlined_call_operand.vmem [shape: f32[16,32], index: 0, kind: input, shape index: {}]
  %s1 = inlined_call_operand.vmem [shape: f32[2,8], index: 1, kind: input, shape index: {}]
  %s2 = inlined_call_operand.vmem [shape: f32[2,32,192], index: 2, kind: input, shape index: {}]
  %s3 = inlined_call_operand.vmem [shape: f32[2,64,32], index: 3, kind: input, shape index: {}]
  %s4 = inlined_call_operand.vmem [shape: f32[2,1,160], index: 4, kind: input, shape index: {}]
  %s5 = inlined_call_operand.vmem [shape: f32[2,8,32], index: 5, kind: input, shape index: {}]
  %s6 = inlined_call_operand.hbm [shape: f32[16,32], index: 6, kind: output, shape index: {}]
  %s7 = sld [smem:[#allocation0]]
  $region34: #{tpu_custom_call.1} parent=0
    _
  %s9 = ssub.s32 1, %s7
  %s10 = scalar_select 0, %s9, %s7
  $region1: #{tpu_custom_call.1} parent=0
    #allocation2 [shape = 'u8[8192]{0}', space=vmem, size = 0x2000, scoped, tag = 'output window, operand 0, single buffered']
    #allocation3 [shape = 's32[1]{0}', space=sflag, size = 0x4, scoped, tag = 'scoped memory for tpu_custom_call.1']
    %11 = vsyncpa [#allocation3], 0
    // Predicated region
    $region2: #{tpu_custom_call.1} parent=1 // pred_check
      _
    $region3: #{tpu_custom_call.1} parent=1 // pred_check_branch
      %13 = sbr.rel (0) target = $region5
    $region4: #{tpu_custom_call.1} parent=1 // pred_region
      _
    $region5: #{tpu_custom_call.1} parent=1 // pred_fallthru
      _
    // Predicated region
    $region6: #{tpu_custom_call.1} parent=1 // pred_check
      _
    $region7: #{tpu_custom_call.1} parent=1 // pred_check_branch
      %15 = sbr.rel (0) target = $region9
    $region8: #{tpu_custom_call.1} parent=1 // pred_region
      _
    $region9: #{tpu_custom_call.1} parent=1 // pred_fallthru
      _
    // Predicated region
    $region10: #{tpu_custom_call.1} parent=1 // pred_check
      _
    $region11: #{tpu_custom_call.1} parent=1 // pred_check_branch
      %17 = sbr.rel (0) target = $region13
    $region12: #{tpu_custom_call.1} parent=1 // pred_region
      _
    $region13: #{tpu_custom_call.1} parent=1 // pred_fallthru
      _
    // Predicated region
    $region14: #{tpu_custom_call.1} parent=1 // pred_check
      _
    $region15: #{tpu_custom_call.1} parent=1 // pred_check_branch
      %19 = sbr.rel (0) target = $region17
    $region16: #{tpu_custom_call.1} parent=1 // pred_region
      _
    $region17: #{tpu_custom_call.1} parent=1 // pred_fallthru
      _
    // Predicated region
    $region18: #{tpu_custom_call.1} parent=1 // pred_check
      _
    $region19: #{tpu_custom_call.1} parent=1 // pred_check_branch
      %21 = sbr.rel (0) target = $region21
    $region20: #{tpu_custom_call.1} parent=1 // pred_region
      _
    $region21: #{tpu_custom_call.1} parent=1 // pred_fallthru
      _
    // Predicated region
    $region22: #{tpu_custom_call.1} parent=1 // pred_check
      _
    $region23: #{tpu_custom_call.1} parent=1 // pred_check_branch
      %23 = sbr.rel (0) target = $region25
    $region24: #{tpu_custom_call.1} parent=1 // pred_region
      _
    $region25: #{tpu_custom_call.1} parent=1 // pred_fallthru
      _
    %v24 = vld [vmem:[%s0] sm:$0xff]
    %v25 = vld [vmem:[%s0 + $0x8] sm:$0xff]
    %v26 = vld [vmem:[%s1] sm:$0x3]
    %v27 = vld [vmem:[%s5] sm:$0xff]
    %v28 = vld [vmem:[%s2] sm:$0xff]
    %v29 = vld [vmem:[%s2 + $0x8] sm:$0xff]
    %v30 = vld [vmem:[%s2 + $0x10] sm:$0xff]
    %v31 = vld [vmem:[%s2 + $0x18] sm:$0xff]
    %v32 = vld [vmem:[%s2 + $0x20] sm:$0xff]
    %v33 = vld [vmem:[%s2 + $0x28] sm:$0xff]
    %v34 = vld [vmem:[%s2 + $0x30] sm:$0xff]
    %v35 = vld [vmem:[%s2 + $0x38] sm:$0xff]
    %v36 = vld [vmem:[%s4] sm:$0x3]
    %v37 = vld [vmem:[%s3] sm:$0xff]
    %v38 = vld [vmem:[%s3 + $0x8] sm:$0xff]
    %v39 = vld [vmem:[%s3 + $0x10] sm:$0xff]
    %v40 = vld [vmem:[%s3 + $0x18] sm:$0xff]
    %v41 = vld [vmem:[%s3 + $0x20] sm:$0xff]
    %v42 = vld [vmem:[%s3 + $0x28] sm:$0xff]
    %v43 = vld [vmem:[%s3 + $0x30] sm:$0xff]
    %v44 = vld [vmem:[%s3 + $0x38] sm:$0xff]
    %vm45 = vcmask 261120
    %v46 = vsel %vm45, %v24, 0.0
    %47 = vadd.xlane.f32.xlu0 %v46
    %v48 = vpop.xlane.xlu0 %47
    %v49 = vsel %vm45, %v25, 0.0
    %50 = vadd.xlane.f32.xlu0 %v49
    %v51 = vpop.xlane.xlu0 %50
    %v52 = vrcp.pop 32.0
    %v53 = vmul.f32 %v48, %v52
    %v54 = vmul.f32 %v51, %v52
    %v55 = vsub.f32 %v24, %v53
    %v56 = vsub.f32 %v25, %v54
    %v57 = vmul.f32 %v55, %v55
    %v58 = vmul.f32 %v56, %v56
    %v59 = vsel %vm45, %v57, 0.0
    %60 = vadd.xlane.f32.xlu0 %v59
    %v61 = vpop.xlane.xlu0 %60
    %v62 = vsel %vm45, %v58, 0.0
    %63 = vadd.xlane.f32.xlu0 %v62
    %v64 = vpop.xlane.xlu0 %63
    %v65 = vmul.f32 %v61, 0.032258064
    %v66 = vmul.f32 %v64, 0.032258064
    %v67 = vrsqrt.pop %v65
    %v68 = vmul.f32 %v65, %v67
    %vm69 = vcmp.eq.f32.partialorder %v65, inf
    %v70 = vsel %vm69, %v65, %v68
    %vm71 = vcmp.eq.f32.partialorder %v65, 0.0
    %v72 = vand.u32 %v65, 2147483648
    %v73 = vsel %vm71, %v72, %v70
    %v74 = vrsqrt.pop %v66
    %v75 = vmul.f32 %v66, %v74
    %vm76 = vcmp.eq.f32.partialorder %v66, inf
    %v77 = vsel %vm76, %v66, %v75
    %vm78 = vcmp.eq.f32.partialorder %v66, 0.0
    %v79 = vand.u32 %v66, 2147483648
    %v80 = vsel %vm78, %v79, %v77
    %v81 = vlaneseq
    %v82 = vshrl.u32 %v81, 7
    %v83 = vsub.s32 0, %v82
    %v84 = vrot.slane %v27, %v83
    %v85 = vmul.f32 %v84, %v55
    %v86 = vmul.f32 %v84, %v56
    %v87 = vadd.f32 %v73, 1e-06
    %v88 = vadd.f32 %v80, 1e-06
    %v89 = vrcp.pop %v87
    %v90 = vrcp.pop %v88
    %v91 = vmul.f32 %v85, %v89
    %v92 = vmul.f32 %v86, %v90
    %v93 = vlaneseq
    %v94 = vshrl.u32 %v93, 7
    %v95 = vsub.s32 1, %v94
    %v96 = vrot.slane %v27, %v95
    %v97 = vadd.f32 %v91, %v96
    %v98 = vadd.f32 %v92, %v96
    %v100 = vlaneseq
    %v101 = vshrl.u32 %v100, 7
    %v102 = vsub.s32 0, %v101
    %v103 = vrot.slane %v36, %v102
    %v106 = vsel %vm45, %v97, 0
    %v109 = vsel %vm45, %v98, 0
    %111 = vmatprep.subr.mxu0 0.0
    %112 = vmatpush1.msra.mxu0 0.0
    %113 = vmatprep.subr.mxu0 0.0
    %114 = vmatpush1.msra.mxu0 0.0
    %115 = vmatprep.subr.mxu0 0.0
    %116 = vmatpush1.msra.mxu0 0.0
    %117 = vmatprep.subr.mxu0 0.0
    %118 = vmatpush1.msra.mxu0 0.0
    %119 = vmatprep.subr.mxu0 0.0
    %120 = vmatpush1.msra.mxu0 0.0
    %121 = vmatprep.subr.mxu0 0.0
    %122 = vmatpush1.msra.mxu0 0.0
    %123 = vmatprep.subr.mxu0 0.0
    %124 = vmatpush1.msra.mxu0 0.0
    %125 = vmatprep.subr.mxu0 0.0
    %126 = vmatpush1.msra.mxu0 0.0
    %127 = vmatprep.subr.mxu0 0.0
    %128 = vmatpush1.msra.mxu0 0.0
    %129 = vmatprep.subr.mxu0 0.0
    %130 = vmatpush1.msra.mxu0 0.0
    %131 = vmatprep.subr.mxu0 0.0
    %132 = vmatpush1.msra.mxu0 0.0
    %133 = vmatprep.subr.mxu0 0.0
    %134 = vmatpush1.msra.mxu0 0.0
    %135 = vmatprep.subr.mxu0 0.0
    %136 = vmatpush1.msra.mxu0 %v34
    %137 = vmatprep.subr.mxu0 0.0
    %138 = vmatpush1.msra.mxu0 %v32
    %139 = vmatprep.subr.mxu0 0.0
    %140 = vmatpush1.msra.mxu0 %v30
    %141 = vmatprep.subr.mxu0 0.0
    %142 = vmatpush1.msra.mxu0 %v28
    %143 = vmatprep.subr.mxu0 0.0
    %144 = vmatpush2.msra.mxu0 0.0
    %145 = vmatprep.subr.mxu0 0.0
    %146 = vmatpush2.msra.mxu0 0.0
    %147 = vmatprep.subr.mxu0 0.0
    %148 = vmatpush2.msra.mxu0 0.0
    %149 = vmatprep.subr.mxu0 0.0
    %150 = vmatpush2.msra.mxu0 0.0
    %151 = vmatprep.subr.mxu0 0.0
    %152 = vmatpush2.msra.mxu0 0.0
    %153 = vmatprep.subr.mxu0 0.0
    %154 = vmatpush2.msra.mxu0 0.0
    %155 = vmatprep.subr.mxu0 0.0
    %156 = vmatpush2.msra.mxu0 0.0
    %157 = vmatprep.subr.mxu0 0.0
    %158 = vmatpush2.msra.mxu0 0.0
    %159 = vmatprep.subr.mxu0 0.0
    %160 = vmatpush2.msra.mxu0 0.0
    %161 = vmatprep.subr.mxu0 0.0
    %162 = vmatpush2.msra.mxu0 0.0
    %163 = vmatprep.subr.mxu0 0.0
    %164 = vmatpush2.msra.mxu0 0.0
    %165 = vmatprep.subr.mxu0 0.0
    %166 = vmatpush2.msra.mxu0 0.0
    %167 = vmatprep.subr.mxu0 0.0
    %168 = vmatpush2.msra.mxu0 0.0
    %169 = vmatprep.subr.mxu0 0.0
    %170 = vmatpush2.msra.mxu0 0.0
    %171 = vmatprep.subr.mxu0 0.0
    %172 = vmatpush2.msra.mxu0 0.0
    %173 = vmatprep.subr.mxu0 0.0
    %174 = vmatpush2.msra.mxu0 0.0
    %175 = vmatprep.mubr.f32.mxu0 0.0
    %176 = vmatmul.mubr.f32.gmra.mxu0 %v106
    %v177 = vpop.f32.mrf.mxu0
    %v178 = vadd.f32 %v103, %v177
    %v179 = vpop.f32.mrf.mxu0
    %180 = vmatprep.mubr.f32.mxu0 0.0
    %181 = vmatmul.mubr.f32.gmra.mxu0 %v109
    %v182 = vpop.f32.mrf.mxu0
    %v183 = vadd.f32 %v103, %v182
    %v184 = vpop.f32.mrf.mxu0
    %185 = vdwg.mxu0
    %v186 = vlaneseq
    %v187 = vshrl.u32 %v186, 7
    %v188 = vsub.s32 0, %v187
    %v189 = vrot.slane %v26, %v188
    %191 = vrot.lane.b32.xlu0 %v178, 96
    %v192 = vpop.permute.xlu0 %191
    %vm193 = vcmask 130048
    %v194 = vsel %vm193, %v178, 0
    %v196 = vsel %vm193, %v192, 0
    %198 = vmatprep.subr.mxu0 0.0
    %199 = vmatpush1.xpose.msra.mxu0 0.0
    %200 = vmatprep.subr.mxu0 0.0
    %201 = vmatpush1.xpose.msra.mxu0 0.0
    %202 = vmatprep.subr.mxu0 0.0
    %203 = vmatpush1.xpose.msra.mxu0 0.0
    %204 = vmatprep.subr.mxu0 0.0
    %205 = vmatpush1.xpose.msra.mxu0 0.0
    %206 = vmatprep.subr.mxu0 0.0
    %207 = vmatpush1.xpose.msra.mxu0 0.0
    %208 = vmatprep.subr.mxu0 0.0
    %209 = vmatpush1.xpose.msra.mxu0 0.0
    %210 = vmatprep.subr.mxu0 0.0
    %211 = vmatpush1.xpose.msra.mxu0 0.0
    %212 = vmatprep.subr.mxu0 0.0
    %213 = vmatpush1.xpose.msra.mxu0 0.0
    %214 = vmatprep.subr.mxu0 0.0
    %215 = vmatpush1.xpose.msra.mxu0 0.0
    %216 = vmatprep.subr.mxu0 0.0
    %217 = vmatpush1.xpose.msra.mxu0 0.0
    %218 = vmatprep.subr.mxu0 0.0
    %219 = vmatpush1.xpose.msra.mxu0 0.0
    %220 = vmatprep.subr.mxu0 0.0
    %221 = vmatpush1.xpose.msra.mxu0 0.0
    %222 = vmatprep.subr.mxu0 0.0
    %223 = vmatpush1.xpose.msra.mxu0 0.0
    %224 = vmatprep.subr.mxu0 0.0
    %225 = vmatpush1.xpose.msra.mxu0 0.0
    %226 = vmatprep.subr.mxu0 0.0
    %227 = vmatpush1.xpose.msra.mxu0 0.0
    %228 = vmatprep.subr.mxu0 0.0
    %229 = vmatpush1.xpose.msra.mxu0 %v196
    %230 = vmatprep.subr.mxu0 0.0
    %231 = vmatpush2.xpose.msra.mxu0 0.0
    %232 = vmatprep.subr.mxu0 0.0
    %233 = vmatpush2.xpose.msra.mxu0 0.0
    %234 = vmatprep.subr.mxu0 0.0
    %235 = vmatpush2.xpose.msra.mxu0 0.0
    %236 = vmatprep.subr.mxu0 0.0
    %237 = vmatpush2.xpose.msra.mxu0 0.0
    %238 = vmatprep.subr.mxu0 0.0
    %239 = vmatpush2.xpose.msra.mxu0 0.0
    %240 = vmatprep.subr.mxu0 0.0
    %241 = vmatpush2.xpose.msra.mxu0 0.0
    %242 = vmatprep.subr.mxu0 0.0
    %243 = vmatpush2.xpose.msra.mxu0 0.0
    %244 = vmatprep.subr.mxu0 0.0
    %245 = vmatpush2.xpose.msra.mxu0 0.0
    %246 = vmatprep.subr.mxu0 0.0
    %247 = vmatpush2.xpose.msra.mxu0 0.0
    %248 = vmatprep.subr.mxu0 0.0
    %249 = vmatpush2.xpose.msra.mxu0 0.0
    %250 = vmatprep.subr.mxu0 0.0
    %251 = vmatpush2.xpose.msra.mxu0 0.0
    %252 = vmatprep.subr.mxu0 0.0
    %253 = vmatpush2.xpose.msra.mxu0 0.0
    %254 = vmatprep.subr.mxu0 0.0
    %255 = vmatpush2.xpose.msra.mxu0 0.0
    %256 = vmatprep.subr.mxu0 0.0
    %257 = vmatpush2.xpose.msra.mxu0 0.0
    %258 = vmatprep.subr.mxu0 0.0
    %259 = vmatpush2.xpose.msra.mxu0 0.0
    %260 = vmatprep.subr.mxu0 0.0
    %261 = vmatpush2.xpose.msra.mxu0 0.0
    %262 = vmatprep.mubr.f32.mxu0 0.0
    %263 = vmatmul.mubr.f32.gmra.mxu0 %v194
    %v264 = vpop.f32.mrf.mxu0
    %v265 = vadd.f32 %v189, %v264
    %v266 = vpop.f32.mrf.mxu0
    %267 = vdwg.mxu0
    %vm268 = vcmask 64512
    %v269 = vsel %vm268, %v265, -inf
    %270 = vmax.xlane.f32.xlu0 %v269
    %v271 = vpop.xlane.xlu0 %270
    %v272 = vsub.f32 %v265, %v271
    %v273 = vmul.f32 %v272, 1.442695
    %v274 = vpow.pop %v273
    %v275 = vsel %vm268, %v274, 0.0
    %276 = vadd.xlane.f32.xlu0 %v275
    %v277 = vpop.xlane.xlu0 %276
    %v278 = vrcp.pop %v277
    %v279 = vmul.f32 %v274, %v278
    %280 = vrot.lane.b32.xlu0 %v178, 64
    %v281 = vpop.permute.xlu0 %280
    %v284 = vsel %vm268, %v279, 0
    %286 = vmatprep.subr.mxu0 0.0
    %287 = vmatpush1.msra.mxu0 0.0
    %288 = vmatprep.subr.mxu0 0.0
    %289 = vmatpush1.msra.mxu0 0.0
    %290 = vmatprep.subr.mxu0 0.0
    %291 = vmatpush1.msra.mxu0 0.0
    %292 = vmatprep.subr.mxu0 0.0
    %293 = vmatpush1.msra.mxu0 0.0
    %294 = vmatprep.subr.mxu0 0.0
    %295 = vmatpush1.msra.mxu0 0.0
    %296 = vmatprep.subr.mxu0 0.0
    %297 = vmatpush1.msra.mxu0 0.0
    %298 = vmatprep.subr.mxu0 0.0
    %299 = vmatpush1.msra.mxu0 0.0
    %300 = vmatprep.subr.mxu0 0.0
    %301 = vmatpush1.msra.mxu0 0.0
    %302 = vmatprep.subr.mxu0 0.0
    %303 = vmatpush1.msra.mxu0 0.0
    %304 = vmatprep.subr.mxu0 0.0
    %305 = vmatpush1.msra.mxu0 0.0
    %306 = vmatprep.subr.mxu0 0.0
    %307 = vmatpush1.msra.mxu0 0.0
    %308 = vmatprep.subr.mxu0 0.0
    %309 = vmatpush1.msra.mxu0 0.0
    %310 = vmatprep.subr.mxu0 0.0
    %311 = vmatpush1.msra.mxu0 0.0
    %312 = vmatprep.subr.mxu0 0.0
    %313 = vmatpush1.msra.mxu0 0.0
    %314 = vmatprep.subr.mxu0 0.0
    %315 = vmatpush1.msra.mxu0 0.0
    %316 = vmatprep.subr.mxu0 0.0
    %317 = vmatpush1.msra.mxu0 %v281
    %318 = vmatprep.subr.mxu0 0.0
    %319 = vmatpush2.msra.mxu0 0.0
    %320 = vmatprep.subr.mxu0 0.0
    %321 = vmatpush2.msra.mxu0 0.0
    %322 = vmatprep.subr.mxu0 0.0
    %323 = vmatpush2.msra.mxu0 0.0
    %324 = vmatprep.subr.mxu0 0.0
    %325 = vmatpush2.msra.mxu0 0.0
    %326 = vmatprep.subr.mxu0 0.0
    %327 = vmatpush2.msra.mxu0 0.0
    %328 = vmatprep.subr.mxu0 0.0
    %329 = vmatpush2.msra.mxu0 0.0
    %330 = vmatprep.subr.mxu0 0.0
    %331 = vmatpush2.msra.mxu0 0.0
    %332 = vmatprep.subr.mxu0 0.0
    %333 = vmatpush2.msra.mxu0 0.0
    %334 = vmatprep.subr.mxu0 0.0
    %335 = vmatpush2.msra.mxu0 0.0
    %336 = vmatprep.subr.mxu0 0.0
    %337 = vmatpush2.msra.mxu0 0.0
    %338 = vmatprep.subr.mxu0 0.0
    %339 = vmatpush2.msra.mxu0 0.0
    %340 = vmatprep.subr.mxu0 0.0
    %341 = vmatpush2.msra.mxu0 0.0
    %342 = vmatprep.subr.mxu0 0.0
    %343 = vmatpush2.msra.mxu0 0.0
    %344 = vmatprep.subr.mxu0 0.0
    %345 = vmatpush2.msra.mxu0 0.0
    %346 = vmatprep.subr.mxu0 0.0
    %347 = vmatpush2.msra.mxu0 0.0
    %348 = vmatprep.subr.mxu0 0.0
    %349 = vmatpush2.msra.mxu0 0.0
    %350 = vmatprep.mubr.f32.mxu0 0.0
    %351 = vmatmul.mubr.f32.gmra.mxu0 %v284
    %v352 = vpop.f32.mrf.mxu0
    %v353 = vadd.f32 0.0, %v352
    %v354 = vpop.f32.mrf.mxu0
    %355 = vdwg.mxu0
    %358 = vrot.lane.b32.xlu0 %v28, 32
    %v359 = vpop.permute.xlu0 %358
    %360 = vrot.lane.b32.xlu0 %v30, 32
    %v361 = vpop.permute.xlu0 %360
    %v365 = vsel %vm193, %v353, 0
    %367 = vmatprep.subr.mxu0 0.0
    %368 = vmatpush1.msra.mxu0 0.0
    %369 = vmatprep.subr.mxu0 0.0
    %370 = vmatpush1.msra.mxu0 0.0
    %371 = vmatprep.subr.mxu0 0.0
    %372 = vmatpush1.msra.mxu0 0.0
    %373 = vmatprep.subr.mxu0 0.0
    %374 = vmatpush1.msra.mxu0 0.0
    %375 = vmatprep.subr.mxu0 0.0
    %376 = vmatpush1.msra.mxu0 0.0
    %377 = vmatprep.subr.mxu0 0.0
    %378 = vmatpush1.msra.mxu0 0.0
    %379 = vmatprep.subr.mxu0 0.0
    %380 = vmatpush1.msra.mxu0 0.0
    %381 = vmatprep.subr.mxu0 0.0
    %382 = vmatpush1.msra.mxu0 0.0
    %383 = vmatprep.subr.mxu0 0.0
    %384 = vmatpush1.msra.mxu0 0.0
    %385 = vmatprep.subr.mxu0 0.0
    %386 = vmatpush1.msra.mxu0 0.0
    %387 = vmatprep.subr.mxu0 0.0
    %388 = vmatpush1.msra.mxu0 0.0
    %389 = vmatprep.subr.mxu0 0.0
    %390 = vmatpush1.msra.mxu0 0.0
    %391 = vmatprep.subr.mxu0 0.0
    %392 = vmatpush1.msra.mxu0 0.0
    %393 = vmatprep.subr.mxu0 0.0
    %394 = vmatpush1.msra.mxu0 0.0
    %395 = vmatprep.subr.mxu0 0.0
    %396 = vmatpush1.msra.mxu0 %v361
    %397 = vmatprep.subr.mxu0 0.0
    %398 = vmatpush1.msra.mxu0 %v359
    %399 = vmatprep.subr.mxu0 0.0
    %400 = vmatpush2.msra.mxu0 0.0
    %401 = vmatprep.subr.mxu0 0.0
    %402 = vmatpush2.msra.mxu0 0.0
    %403 = vmatprep.subr.mxu0 0.0
    %404 = vmatpush2.msra.mxu0 0.0
    %405 = vmatprep.subr.mxu0 0.0
    %406 = vmatpush2.msra.mxu0 0.0
    %407 = vmatprep.subr.mxu0 0.0
    %408 = vmatpush2.msra.mxu0 0.0
    %409 = vmatprep.subr.mxu0 0.0
    %410 = vmatpush2.msra.mxu0 0.0
    %411 = vmatprep.subr.mxu0 0.0
    %412 = vmatpush2.msra.mxu0 0.0
    %413 = vmatprep.subr.mxu0 0.0
    %414 = vmatpush2.msra.mxu0 0.0
    %415 = vmatprep.subr.mxu0 0.0
    %416 = vmatpush2.msra.mxu0 0.0
    %417 = vmatprep.subr.mxu0 0.0
    %418 = vmatpush2.msra.mxu0 0.0
    %419 = vmatprep.subr.mxu0 0.0
    %420 = vmatpush2.msra.mxu0 0.0
    %421 = vmatprep.subr.mxu0 0.0
    %422 = vmatpush2.msra.mxu0 0.0
    %423 = vmatprep.subr.mxu0 0.0
    %424 = vmatpush2.msra.mxu0 0.0
    %425 = vmatprep.subr.mxu0 0.0
    %426 = vmatpush2.msra.mxu0 0.0
    %427 = vmatprep.subr.mxu0 0.0
    %428 = vmatpush2.msra.mxu0 0.0
    %429 = vmatprep.subr.mxu0 0.0
    %430 = vmatpush2.msra.mxu0 0.0
    %431 = vmatprep.mubr.f32.mxu0 0.0
    %432 = vmatmul.mubr.f32.gmra.mxu0 %v365
    %v433 = vpop.f32.mrf.mxu0
    %v434 = vadd.f32 0.0, %v433
    %v435 = vpop.f32.mrf.mxu0
    %436 = vdwg.mxu0
    %v437 = vlaneseq
    %v438 = vshrl.u32 %v437, 7
    %v439 = vsub.s32 4, %v438
    %v440 = vrot.slane %v27, %v439
    %v441 = vadd.f32 %v440, %v434
    %442 = vrot.lane.b32.xlu0 %v178, 112
    %v443 = vpop.permute.xlu0 %442
    %444 = vrot.lane.b32.xlu0 %v178, 80
    %v445 = vpop.permute.xlu0 %444
    %v446 = vsel %vm193, %v443, 0
    %v448 = vsel %vm193, %v445, 0
    %450 = vmatprep.subr.mxu0 0.0
    %451 = vmatpush1.xpose.msra.mxu0 0.0
    %452 = vmatprep.subr.mxu0 0.0
    %453 = vmatpush1.xpose.msra.mxu0 0.0
    %454 = vmatprep.subr.mxu0 0.0
    %455 = vmatpush1.xpose.msra.mxu0 0.0
    %456 = vmatprep.subr.mxu0 0.0
    %457 = vmatpush1.xpose.msra.mxu0 0.0
    %458 = vmatprep.subr.mxu0 0.0
    %459 = vmatpush1.xpose.msra.mxu0 0.0
    %460 = vmatprep.subr.mxu0 0.0
    %461 = vmatpush1.xpose.msra.mxu0 0.0
    %462 = vmatprep.subr.mxu0 0.0
    %463 = vmatpush1.xpose.msra.mxu0 0.0
    %464 = vmatprep.subr.mxu0 0.0
    %465 = vmatpush1.xpose.msra.mxu0 0.0
    %466 = vmatprep.subr.mxu0 0.0
    %467 = vmatpush1.xpose.msra.mxu0 0.0
    %468 = vmatprep.subr.mxu0 0.0
    %469 = vmatpush1.xpose.msra.mxu0 0.0
    %470 = vmatprep.subr.mxu0 0.0
    %471 = vmatpush1.xpose.msra.mxu0 0.0
    %472 = vmatprep.subr.mxu0 0.0
    %473 = vmatpush1.xpose.msra.mxu0 0.0
    %474 = vmatprep.subr.mxu0 0.0
    %475 = vmatpush1.xpose.msra.mxu0 0.0
    %476 = vmatprep.subr.mxu0 0.0
    %477 = vmatpush1.xpose.msra.mxu0 0.0
    %478 = vmatprep.subr.mxu0 0.0
    %479 = vmatpush1.xpose.msra.mxu0 0.0
    %480 = vmatprep.subr.mxu0 0.0
    %481 = vmatpush1.xpose.msra.mxu0 %v448
    %482 = vmatprep.subr.mxu0 0.0
    %483 = vmatpush2.xpose.msra.mxu0 0.0
    %484 = vmatprep.subr.mxu0 0.0
    %485 = vmatpush2.xpose.msra.mxu0 0.0
    %486 = vmatprep.subr.mxu0 0.0
    %487 = vmatpush2.xpose.msra.mxu0 0.0
    %488 = vmatprep.subr.mxu0 0.0
    %489 = vmatpush2.xpose.msra.mxu0 0.0
    %490 = vmatprep.subr.mxu0 0.0
    %491 = vmatpush2.xpose.msra.mxu0 0.0
    %492 = vmatprep.subr.mxu0 0.0
    %493 = vmatpush2.xpose.msra.mxu0 0.0
    %494 = vmatprep.subr.mxu0 0.0
    %495 = vmatpush2.xpose.msra.mxu0 0.0
    %496 = vmatprep.subr.mxu0 0.0
    %497 = vmatpush2.xpose.msra.mxu0 0.0
    %498 = vmatprep.subr.mxu0 0.0
    %499 = vmatpush2.xpose.msra.mxu0 0.0
    %500 = vmatprep.subr.mxu0 0.0
    %501 = vmatpush2.xpose.msra.mxu0 0.0
    %502 = vmatprep.subr.mxu0 0.0
    %503 = vmatpush2.xpose.msra.mxu0 0.0
    %504 = vmatprep.subr.mxu0 0.0
    %505 = vmatpush2.xpose.msra.mxu0 0.0
    %506 = vmatprep.subr.mxu0 0.0
    %507 = vmatpush2.xpose.msra.mxu0 0.0
    %508 = vmatprep.subr.mxu0 0.0
    %509 = vmatpush2.xpose.msra.mxu0 0.0
    %510 = vmatprep.subr.mxu0 0.0
    %511 = vmatpush2.xpose.msra.mxu0 0.0
    %512 = vmatprep.subr.mxu0 0.0
    %513 = vmatpush2.xpose.msra.mxu0 0.0
    %514 = vmatprep.mubr.f32.mxu0 0.0
    %515 = vmatmul.mubr.f32.gmra.mxu0 %v446
    %v516 = vpop.f32.mrf.mxu0
    %v517 = vadd.f32 %v189, %v516
    %v518 = vpop.f32.mrf.mxu0
    %519 = vdwg.mxu0
    %v520 = vsel %vm268, %v517, -inf
    %521 = vmax.xlane.f32.xlu0 %v520
    %v522 = vpop.xlane.xlu0 %521
    %v523 = vsub.f32 %v517, %v522
    %v524 = vmul.f32 %v523, 1.442695
    %v525 = vpow.pop %v524
    %v526 = vsel %vm268, %v525, 0.0
    %527 = vadd.xlane.f32.xlu0 %v526
    %v528 = vpop.xlane.xlu0 %527
    %v529 = vrcp.pop %v528
    %v530 = vmul.f32 %v525, %v529
    %531 = vrot.lane.b32.xlu0 %v178, 48
    %v532 = vpop.permute.xlu0 %531
    %v535 = vsel %vm268, %v530, 0
    %537 = vmatprep.subr.mxu0 0.0
    %538 = vmatpush1.msra.mxu0 0.0
    %539 = vmatprep.subr.mxu0 0.0
    %540 = vmatpush1.msra.mxu0 0.0
    %541 = vmatprep.subr.mxu0 0.0
    %542 = vmatpush1.msra.mxu0 0.0
    %543 = vmatprep.subr.mxu0 0.0
    %544 = vmatpush1.msra.mxu0 0.0
    %545 = vmatprep.subr.mxu0 0.0
    %546 = vmatpush1.msra.mxu0 0.0
    %547 = vmatprep.subr.mxu0 0.0
    %548 = vmatpush1.msra.mxu0 0.0
    %549 = vmatprep.subr.mxu0 0.0
    %550 = vmatpush1.msra.mxu0 0.0
    %551 = vmatprep.subr.mxu0 0.0
    %552 = vmatpush1.msra.mxu0 0.0
    %553 = vmatprep.subr.mxu0 0.0
    %554 = vmatpush1.msra.mxu0 0.0
    %555 = vmatprep.subr.mxu0 0.0
    %556 = vmatpush1.msra.mxu0 0.0
    %557 = vmatprep.subr.mxu0 0.0
    %558 = vmatpush1.msra.mxu0 0.0
    %559 = vmatprep.subr.mxu0 0.0
    %560 = vmatpush1.msra.mxu0 0.0
    %561 = vmatprep.subr.mxu0 0.0
    %562 = vmatpush1.msra.mxu0 0.0
    %563 = vmatprep.subr.mxu0 0.0
    %564 = vmatpush1.msra.mxu0 0.0
    %565 = vmatprep.subr.mxu0 0.0
    %566 = vmatpush1.msra.mxu0 0.0
    %567 = vmatprep.subr.mxu0 0.0
    %568 = vmatpush1.msra.mxu0 %v532
    %569 = vmatprep.subr.mxu0 0.0
    %570 = vmatpush2.msra.mxu0 0.0
    %571 = vmatprep.subr.mxu0 0.0
    %572 = vmatpush2.msra.mxu0 0.0
    %573 = vmatprep.subr.mxu0 0.0
    %574 = vmatpush2.msra.mxu0 0.0
    %575 = vmatprep.subr.mxu0 0.0
    %576 = vmatpush2.msra.mxu0 0.0
    %577 = vmatprep.subr.mxu0 0.0
    %578 = vmatpush2.msra.mxu0 0.0
    %579 = vmatprep.subr.mxu0 0.0
    %580 = vmatpush2.msra.mxu0 0.0
    %581 = vmatprep.subr.mxu0 0.0
    %582 = vmatpush2.msra.mxu0 0.0
    %583 = vmatprep.subr.mxu0 0.0
    %584 = vmatpush2.msra.mxu0 0.0
    %585 = vmatprep.subr.mxu0 0.0
    %586 = vmatpush2.msra.mxu0 0.0
    %587 = vmatprep.subr.mxu0 0.0
    %588 = vmatpush2.msra.mxu0 0.0
    %589 = vmatprep.subr.mxu0 0.0
    %590 = vmatpush2.msra.mxu0 0.0
    %591 = vmatprep.subr.mxu0 0.0
    %592 = vmatpush2.msra.mxu0 0.0
    %593 = vmatprep.subr.mxu0 0.0
    %594 = vmatpush2.msra.mxu0 0.0
    %595 = vmatprep.subr.mxu0 0.0
    %596 = vmatpush2.msra.mxu0 0.0
    %597 = vmatprep.subr.mxu0 0.0
    %598 = vmatpush2.msra.mxu0 0.0
    %599 = vmatprep.subr.mxu0 0.0
    %600 = vmatpush2.msra.mxu0 0.0
    %601 = vmatprep.mubr.f32.mxu0 0.0
    %602 = vmatmul.mubr.f32.gmra.mxu0 %v535
    %v603 = vpop.f32.mrf.mxu0
    %v604 = vadd.f32 0.0, %v603
    %v605 = vpop.f32.mrf.mxu0
    %606 = vdwg.mxu0
    %609 = vrot.lane.b32.xlu0 %v32, 32
    %v610 = vpop.permute.xlu0 %609
    %611 = vrot.lane.b32.xlu0 %v34, 32
    %v612 = vpop.permute.xlu0 %611
    %v616 = vsel %vm193, %v604, 0
    %618 = vmatprep.subr.mxu0 0.0
    %619 = vmatpush1.msra.mxu0 0.0
    %620 = vmatprep.subr.mxu0 0.0
    %621 = vmatpush1.msra.mxu0 0.0
    %622 = vmatprep.subr.mxu0 0.0
    %623 = vmatpush1.msra.mxu0 0.0
    %624 = vmatprep.subr.mxu0 0.0
    %625 = vmatpush1.msra.mxu0 0.0
    %626 = vmatprep.subr.mxu0 0.0
    %627 = vmatpush1.msra.mxu0 0.0
    %628 = vmatprep.subr.mxu0 0.0
    %629 = vmatpush1.msra.mxu0 0.0
    %630 = vmatprep.subr.mxu0 0.0
    %631 = vmatpush1.msra.mxu0 0.0
    %632 = vmatprep.subr.mxu0 0.0
    %633 = vmatpush1.msra.mxu0 0.0
    %634 = vmatprep.subr.mxu0 0.0
    %635 = vmatpush1.msra.mxu0 0.0
    %636 = vmatprep.subr.mxu0 0.0
    %637 = vmatpush1.msra.mxu0 0.0
    %638 = vmatprep.subr.mxu0 0.0
    %639 = vmatpush1.msra.mxu0 0.0
    %640 = vmatprep.subr.mxu0 0.0
    %641 = vmatpush1.msra.mxu0 0.0
    %642 = vmatprep.subr.mxu0 0.0
    %643 = vmatpush1.msra.mxu0 0.0
    %644 = vmatprep.subr.mxu0 0.0
    %645 = vmatpush1.msra.mxu0 0.0
    %646 = vmatprep.subr.mxu0 0.0
    %647 = vmatpush1.msra.mxu0 %v612
    %648 = vmatprep.subr.mxu0 0.0
    %649 = vmatpush1.msra.mxu0 %v610
    %650 = vmatprep.subr.mxu0 0.0
    %651 = vmatpush2.msra.mxu0 0.0
    %652 = vmatprep.subr.mxu0 0.0
    %653 = vmatpush2.msra.mxu0 0.0
    %654 = vmatprep.subr.mxu0 0.0
    %655 = vmatpush2.msra.mxu0 0.0
    %656 = vmatprep.subr.mxu0 0.0
    %657 = vmatpush2.msra.mxu0 0.0
    %658 = vmatprep.subr.mxu0 0.0
    %659 = vmatpush2.msra.mxu0 0.0
    %660 = vmatprep.subr.mxu0 0.0
    %661 = vmatpush2.msra.mxu0 0.0
    %662 = vmatprep.subr.mxu0 0.0
    %663 = vmatpush2.msra.mxu0 0.0
    %664 = vmatprep.subr.mxu0 0.0
    %665 = vmatpush2.msra.mxu0 0.0
    %666 = vmatprep.subr.mxu0 0.0
    %667 = vmatpush2.msra.mxu0 0.0
    %668 = vmatprep.subr.mxu0 0.0
    %669 = vmatpush2.msra.mxu0 0.0
    %670 = vmatprep.subr.mxu0 0.0
    %671 = vmatpush2.msra.mxu0 0.0
    %672 = vmatprep.subr.mxu0 0.0
    %673 = vmatpush2.msra.mxu0 0.0
    %674 = vmatprep.subr.mxu0 0.0
    %675 = vmatpush2.msra.mxu0 0.0
    %676 = vmatprep.subr.mxu0 0.0
    %677 = vmatpush2.msra.mxu0 0.0
    %678 = vmatprep.subr.mxu0 0.0
    %679 = vmatpush2.msra.mxu0 0.0
    %680 = vmatprep.subr.mxu0 0.0
    %681 = vmatpush2.msra.mxu0 0.0
    %682 = vmatprep.mubr.f32.mxu0 0.0
    %683 = vmatmul.mubr.f32.gmra.mxu0 %v616
    %v684 = vpop.f32.mrf.mxu0
    %v685 = vadd.f32 0.0, %v684
    %v686 = vpop.f32.mrf.mxu0
    %687 = vdwg.mxu0
    %v688 = vadd.f32 %v441, %v685
    %v689 = vlaneseq
    %v690 = vshrl.u32 %v689, 7
    %v691 = vsub.s32 1, %v690
    %v692 = vrot.slane %v26, %v691
    %694 = vrot.lane.b32.xlu0 %v183, 96
    %v695 = vpop.permute.xlu0 %694
    %v696 = vsel %vm193, %v183, 0
    %v698 = vsel %vm193, %v695, 0
    %700 = vmatprep.subr.mxu0 0.0
    %701 = vmatpush1.xpose.msra.mxu0 0.0
    %702 = vmatprep.subr.mxu0 0.0
    %703 = vmatpush1.xpose.msra.mxu0 0.0
    %704 = vmatprep.subr.mxu0 0.0
    %705 = vmatpush1.xpose.msra.mxu0 0.0
    %706 = vmatprep.subr.mxu0 0.0
    %707 = vmatpush1.xpose.msra.mxu0 0.0
    %708 = vmatprep.subr.mxu0 0.0
    %709 = vmatpush1.xpose.msra.mxu0 0.0
    %710 = vmatprep.subr.mxu0 0.0
    %711 = vmatpush1.xpose.msra.mxu0 0.0
    %712 = vmatprep.subr.mxu0 0.0
    %713 = vmatpush1.xpose.msra.mxu0 0.0
    %714 = vmatprep.subr.mxu0 0.0
    %715 = vmatpush1.xpose.msra.mxu0 0.0
    %716 = vmatprep.subr.mxu0 0.0
    %717 = vmatpush1.xpose.msra.mxu0 0.0
    %718 = vmatprep.subr.mxu0 0.0
    %719 = vmatpush1.xpose.msra.mxu0 0.0
    %720 = vmatprep.subr.mxu0 0.0
    %721 = vmatpush1.xpose.msra.mxu0 0.0
    %722 = vmatprep.subr.mxu0 0.0
    %723 = vmatpush1.xpose.msra.mxu0 0.0
    %724 = vmatprep.subr.mxu0 0.0
    %725 = vmatpush1.xpose.msra.mxu0 0.0
    %726 = vmatprep.subr.mxu0 0.0
    %727 = vmatpush1.xpose.msra.mxu0 0.0
    %728 = vmatprep.subr.mxu0 0.0
    %729 = vmatpush1.xpose.msra.mxu0 0.0
    %730 = vmatprep.subr.mxu0 0.0
    %731 = vmatpush1.xpose.msra.mxu0 %v698
    %732 = vmatprep.subr.mxu0 0.0
    %733 = vmatpush2.xpose.msra.mxu0 0.0
    %734 = vmatprep.subr.mxu0 0.0
    %735 = vmatpush2.xpose.msra.mxu0 0.0
    %736 = vmatprep.subr.mxu0 0.0
    %737 = vmatpush2.xpose.msra.mxu0 0.0
    %738 = vmatprep.subr.mxu0 0.0
    %739 = vmatpush2.xpose.msra.mxu0 0.0
    %740 = vmatprep.subr.mxu0 0.0
    %741 = vmatpush2.xpose.msra.mxu0 0.0
    %742 = vmatprep.subr.mxu0 0.0
    %743 = vmatpush2.xpose.msra.mxu0 0.0
    %744 = vmatprep.subr.mxu0 0.0
    %745 = vmatpush2.xpose.msra.mxu0 0.0
    %746 = vmatprep.subr.mxu0 0.0
    %747 = vmatpush2.xpose.msra.mxu0 0.0
    %748 = vmatprep.subr.mxu0 0.0
    %749 = vmatpush2.xpose.msra.mxu0 0.0
    %750 = vmatprep.subr.mxu0 0.0
    %751 = vmatpush2.xpose.msra.mxu0 0.0
    %752 = vmatprep.subr.mxu0 0.0
    %753 = vmatpush2.xpose.msra.mxu0 0.0
    %754 = vmatprep.subr.mxu0 0.0
    %755 = vmatpush2.xpose.msra.mxu0 0.0
    %756 = vmatprep.subr.mxu0 0.0
    %757 = vmatpush2.xpose.msra.mxu0 0.0
    %758 = vmatprep.subr.mxu0 0.0
    %759 = vmatpush2.xpose.msra.mxu0 0.0
    %760 = vmatprep.subr.mxu0 0.0
    %761 = vmatpush2.xpose.msra.mxu0 0.0
    %762 = vmatprep.subr.mxu0 0.0
    %763 = vmatpush2.xpose.msra.mxu0 0.0
    %764 = vmatprep.mubr.f32.mxu0 0.0
    %765 = vmatmul.mubr.f32.gmra.mxu0 %v696
    %v766 = vpop.f32.mrf.mxu0
    %v767 = vadd.f32 %v692, %v766
    %v768 = vpop.f32.mrf.mxu0
    %769 = vdwg.mxu0
    %v770 = vsel %vm268, %v767, -inf
    %771 = vmax.xlane.f32.xlu0 %v770
    %v772 = vpop.xlane.xlu0 %771
    %v773 = vsub.f32 %v767, %v772
    %v774 = vmul.f32 %v773, 1.442695
    %v775 = vpow.pop %v774
    %v776 = vsel %vm268, %v775, 0.0
    %777 = vadd.xlane.f32.xlu0 %v776
    %v778 = vpop.xlane.xlu0 %777
    %v779 = vrcp.pop %v778
    %v780 = vmul.f32 %v775, %v779
    %781 = vrot.lane.b32.xlu0 %v183, 64
    %v782 = vpop.permute.xlu0 %781
    %v785 = vsel %vm268, %v780, 0
    %787 = vmatprep.subr.mxu0 0.0
    %788 = vmatpush1.msra.mxu0 0.0
    %789 = vmatprep.subr.mxu0 0.0
    %790 = vmatpush1.msra.mxu0 0.0
    %791 = vmatprep.subr.mxu0 0.0
    %792 = vmatpush1.msra.mxu0 0.0
    %793 = vmatprep.subr.mxu0 0.0
    %794 = vmatpush1.msra.mxu0 0.0
    %795 = vmatprep.subr.mxu0 0.0
    %796 = vmatpush1.msra.mxu0 0.0
    %797 = vmatprep.subr.mxu0 0.0
    %798 = vmatpush1.msra.mxu0 0.0
    %799 = vmatprep.subr.mxu0 0.0
    %800 = vmatpush1.msra.mxu0 0.0
    %801 = vmatprep.subr.mxu0 0.0
    %802 = vmatpush1.msra.mxu0 0.0
    %803 = vmatprep.subr.mxu0 0.0
    %804 = vmatpush1.msra.mxu0 0.0
    %805 = vmatprep.subr.mxu0 0.0
    %806 = vmatpush1.msra.mxu0 0.0
    %807 = vmatprep.subr.mxu0 0.0
    %808 = vmatpush1.msra.mxu0 0.0
    %809 = vmatprep.subr.mxu0 0.0
    %810 = vmatpush1.msra.mxu0 0.0
    %811 = vmatprep.subr.mxu0 0.0
    %812 = vmatpush1.msra.mxu0 0.0
    %813 = vmatprep.subr.mxu0 0.0
    %814 = vmatpush1.msra.mxu0 0.0
    %815 = vmatprep.subr.mxu0 0.0
    %816 = vmatpush1.msra.mxu0 0.0
    %817 = vmatprep.subr.mxu0 0.0
    %818 = vmatpush1.msra.mxu0 %v782
    %819 = vmatprep.subr.mxu0 0.0
    %820 = vmatpush2.msra.mxu0 0.0
    %821 = vmatprep.subr.mxu0 0.0
    %822 = vmatpush2.msra.mxu0 0.0
    %823 = vmatprep.subr.mxu0 0.0
    %824 = vmatpush2.msra.mxu0 0.0
    %825 = vmatprep.subr.mxu0 0.0
    %826 = vmatpush2.msra.mxu0 0.0
    %827 = vmatprep.subr.mxu0 0.0
    %828 = vmatpush2.msra.mxu0 0.0
    %829 = vmatprep.subr.mxu0 0.0
    %830 = vmatpush2.msra.mxu0 0.0
    %831 = vmatprep.subr.mxu0 0.0
    %832 = vmatpush2.msra.mxu0 0.0
    %833 = vmatprep.subr.mxu0 0.0
    %834 = vmatpush2.msra.mxu0 0.0
    %835 = vmatprep.subr.mxu0 0.0
    %836 = vmatpush2.msra.mxu0 0.0
    %837 = vmatprep.subr.mxu0 0.0
    %838 = vmatpush2.msra.mxu0 0.0
    %839 = vmatprep.subr.mxu0 0.0
    %840 = vmatpush2.msra.mxu0 0.0
    %841 = vmatprep.subr.mxu0 0.0
    %842 = vmatpush2.msra.mxu0 0.0
    %843 = vmatprep.subr.mxu0 0.0
    %844 = vmatpush2.msra.mxu0 0.0
    %845 = vmatprep.subr.mxu0 0.0
    %846 = vmatpush2.msra.mxu0 0.0
    %847 = vmatprep.subr.mxu0 0.0
    %848 = vmatpush2.msra.mxu0 0.0
    %849 = vmatprep.subr.mxu0 0.0
    %850 = vmatpush2.msra.mxu0 0.0
    %851 = vmatprep.mubr.f32.mxu0 0.0
    %852 = vmatmul.mubr.f32.gmra.mxu0 %v785
    %v853 = vpop.f32.mrf.mxu0
    %v854 = vadd.f32 0.0, %v853
    %v855 = vpop.f32.mrf.mxu0
    %856 = vdwg.mxu0
    %v858 = vsel %vm193, %v854, 0
    %860 = vmatprep.subr.mxu0 0.0
    %861 = vmatpush1.msra.mxu0 0.0
    %862 = vmatprep.subr.mxu0 0.0
    %863 = vmatpush1.msra.mxu0 0.0
    %864 = vmatprep.subr.mxu0 0.0
    %865 = vmatpush1.msra.mxu0 0.0
    %866 = vmatprep.subr.mxu0 0.0
    %867 = vmatpush1.msra.mxu0 0.0
    %868 = vmatprep.subr.mxu0 0.0
    %869 = vmatpush1.msra.mxu0 0.0
    %870 = vmatprep.subr.mxu0 0.0
    %871 = vmatpush1.msra.mxu0 0.0
    %872 = vmatprep.subr.mxu0 0.0
    %873 = vmatpush1.msra.mxu0 0.0
    %874 = vmatprep.subr.mxu0 0.0
    %875 = vmatpush1.msra.mxu0 0.0
    %876 = vmatprep.subr.mxu0 0.0
    %877 = vmatpush1.msra.mxu0 0.0
    %878 = vmatprep.subr.mxu0 0.0
    %879 = vmatpush1.msra.mxu0 0.0
    %880 = vmatprep.subr.mxu0 0.0
    %881 = vmatpush1.msra.mxu0 0.0
    %882 = vmatprep.subr.mxu0 0.0
    %883 = vmatpush1.msra.mxu0 0.0
    %884 = vmatprep.subr.mxu0 0.0
    %885 = vmatpush1.msra.mxu0 0.0
    %886 = vmatprep.subr.mxu0 0.0
    %887 = vmatpush1.msra.mxu0 0.0
    %888 = vmatprep.subr.mxu0 0.0
    %889 = vmatpush1.msra.mxu0 %v361
    %890 = vmatprep.subr.mxu0 0.0
    %891 = vmatpush1.msra.mxu0 %v359
    %892 = vmatprep.subr.mxu0 0.0
    %893 = vmatpush2.msra.mxu0 0.0
    %894 = vmatprep.subr.mxu0 0.0
    %895 = vmatpush2.msra.mxu0 0.0
    %896 = vmatprep.subr.mxu0 0.0
    %897 = vmatpush2.msra.mxu0 0.0
    %898 = vmatprep.subr.mxu0 0.0
    %899 = vmatpush2.msra.mxu0 0.0
    %900 = vmatprep.subr.mxu0 0.0
    %901 = vmatpush2.msra.mxu0 0.0
    %902 = vmatprep.subr.mxu0 0.0
    %903 = vmatpush2.msra.mxu0 0.0
    %904 = vmatprep.subr.mxu0 0.0
    %905 = vmatpush2.msra.mxu0 0.0
    %906 = vmatprep.subr.mxu0 0.0
    %907 = vmatpush2.msra.mxu0 0.0
    %908 = vmatprep.subr.mxu0 0.0
    %909 = vmatpush2.msra.mxu0 0.0
    %910 = vmatprep.subr.mxu0 0.0
    %911 = vmatpush2.msra.mxu0 0.0
    %912 = vmatprep.subr.mxu0 0.0
    %913 = vmatpush2.msra.mxu0 0.0
    %914 = vmatprep.subr.mxu0 0.0
    %915 = vmatpush2.msra.mxu0 0.0
    %916 = vmatprep.subr.mxu0 0.0
    %917 = vmatpush2.msra.mxu0 0.0
    %918 = vmatprep.subr.mxu0 0.0
    %919 = vmatpush2.msra.mxu0 0.0
    %920 = vmatprep.subr.mxu0 0.0
    %921 = vmatpush2.msra.mxu0 0.0
    %922 = vmatprep.subr.mxu0 0.0
    %923 = vmatpush2.msra.mxu0 0.0
    %924 = vmatprep.mubr.f32.mxu0 0.0
    %925 = vmatmul.mubr.f32.gmra.mxu0 %v858
    %v926 = vpop.f32.mrf.mxu0
    %v927 = vadd.f32 0.0, %v926
    %v928 = vpop.f32.mrf.mxu0
    %929 = vdwg.mxu0
    %v930 = vadd.f32 %v440, %v927
    %931 = vrot.lane.b32.xlu0 %v183, 112
    %v932 = vpop.permute.xlu0 %931
    %933 = vrot.lane.b32.xlu0 %v183, 80
    %v934 = vpop.permute.xlu0 %933
    %v935 = vsel %vm193, %v932, 0
    %v937 = vsel %vm193, %v934, 0
    %939 = vmatprep.subr.mxu0 0.0
    %940 = vmatpush1.xpose.msra.mxu0 0.0
    %941 = vmatprep.subr.mxu0 0.0
    %942 = vmatpush1.xpose.msra.mxu0 0.0
    %943 = vmatprep.subr.mxu0 0.0
    %944 = vmatpush1.xpose.msra.mxu0 0.0
    %945 = vmatprep.subr.mxu0 0.0
    %946 = vmatpush1.xpose.msra.mxu0 0.0
    %947 = vmatprep.subr.mxu0 0.0
    %948 = vmatpush1.xpose.msra.mxu0 0.0
    %949 = vmatprep.subr.mxu0 0.0
    %950 = vmatpush1.xpose.msra.mxu0 0.0
    %951 = vmatprep.subr.mxu0 0.0
    %952 = vmatpush1.xpose.msra.mxu0 0.0
    %953 = vmatprep.subr.mxu0 0.0
    %954 = vmatpush1.xpose.msra.mxu0 0.0
    %955 = vmatprep.subr.mxu0 0.0
    %956 = vmatpush1.xpose.msra.mxu0 0.0
    %957 = vmatprep.subr.mxu0 0.0
    %958 = vmatpush1.xpose.msra.mxu0 0.0
    %959 = vmatprep.subr.mxu0 0.0
    %960 = vmatpush1.xpose.msra.mxu0 0.0
    %961 = vmatprep.subr.mxu0 0.0
    %962 = vmatpush1.xpose.msra.mxu0 0.0
    %963 = vmatprep.subr.mxu0 0.0
    %964 = vmatpush1.xpose.msra.mxu0 0.0
    %965 = vmatprep.subr.mxu0 0.0
    %966 = vmatpush1.xpose.msra.mxu0 0.0
    %967 = vmatprep.subr.mxu0 0.0
    %968 = vmatpush1.xpose.msra.mxu0 0.0
    %969 = vmatprep.subr.mxu0 0.0
    %970 = vmatpush1.xpose.msra.mxu0 %v937
    %971 = vmatprep.subr.mxu0 0.0
    %972 = vmatpush2.xpose.msra.mxu0 0.0
    %973 = vmatprep.subr.mxu0 0.0
    %974 = vmatpush2.xpose.msra.mxu0 0.0
    %975 = vmatprep.subr.mxu0 0.0
    %976 = vmatpush2.xpose.msra.mxu0 0.0
    %977 = vmatprep.subr.mxu0 0.0
    %978 = vmatpush2.xpose.msra.mxu0 0.0
    %979 = vmatprep.subr.mxu0 0.0
    %980 = vmatpush2.xpose.msra.mxu0 0.0
    %981 = vmatprep.subr.mxu0 0.0
    %982 = vmatpush2.xpose.msra.mxu0 0.0
    %983 = vmatprep.subr.mxu0 0.0
    %984 = vmatpush2.xpose.msra.mxu0 0.0
    %985 = vmatprep.subr.mxu0 0.0
    %986 = vmatpush2.xpose.msra.mxu0 0.0
    %987 = vmatprep.subr.mxu0 0.0
    %988 = vmatpush2.xpose.msra.mxu0 0.0
    %989 = vmatprep.subr.mxu0 0.0
    %990 = vmatpush2.xpose.msra.mxu0 0.0
    %991 = vmatprep.subr.mxu0 0.0
    %992 = vmatpush2.xpose.msra.mxu0 0.0
    %993 = vmatprep.subr.mxu0 0.0
    %994 = vmatpush2.xpose.msra.mxu0 0.0
    %995 = vmatprep.subr.mxu0 0.0
    %996 = vmatpush2.xpose.msra.mxu0 0.0
    %997 = vmatprep.subr.mxu0 0.0
    %998 = vmatpush2.xpose.msra.mxu0 0.0
    %999 = vmatprep.subr.mxu0 0.0
    %1000 = vmatpush2.xpose.msra.mxu0 0.0
    %1001 = vmatprep.subr.mxu0 0.0
    %1002 = vmatpush2.xpose.msra.mxu0 0.0
    %1003 = vmatprep.mubr.f32.mxu0 0.0
    %1004 = vmatmul.mubr.f32.gmra.mxu0 %v935
    %v1005 = vpop.f32.mrf.mxu0
    %v1006 = vadd.f32 %v692, %v1005
    %v1007 = vpop.f32.mrf.mxu0
    %1008 = vdwg.mxu0
    %v1009 = vsel %vm268, %v1006, -inf
    %1010 = vmax.xlane.f32.xlu0 %v1009
    %v1011 = vpop.xlane.xlu0 %1010
    %v1012 = vsub.f32 %v1006, %v1011
    %v1013 = vmul.f32 %v1012, 1.442695
    %v1014 = vpow.pop %v1013
    %v1015 = vsel %vm268, %v1014, 0.0
    %1016 = vadd.xlane.f32.xlu0 %v1015
    %v1017 = vpop.xlane.xlu0 %1016
    %v1018 = vrcp.pop %v1017
    %v1019 = vmul.f32 %v1014, %v1018
    %1020 = vrot.lane.b32.xlu0 %v183, 48
    %v1021 = vpop.permute.xlu0 %1020
    %v1024 = vsel %vm268, %v1019, 0
    %1026 = vmatprep.subr.mxu0 0.0
    %1027 = vmatpush1.msra.mxu0 0.0
    %1028 = vmatprep.subr.mxu0 0.0
    %1029 = vmatpush1.msra.mxu0 0.0
    %1030 = vmatprep.subr.mxu0 0.0
    %1031 = vmatpush1.msra.mxu0 0.0
    %1032 = vmatprep.subr.mxu0 0.0
    %1033 = vmatpush1.msra.mxu0 0.0
    %1034 = vmatprep.subr.mxu0 0.0
    %1035 = vmatpush1.msra.mxu0 0.0
    %1036 = vmatprep.subr.mxu0 0.0
    %1037 = vmatpush1.msra.mxu0 0.0
    %1038 = vmatprep.subr.mxu0 0.0
    %1039 = vmatpush1.msra.mxu0 0.0
    %1040 = vmatprep.subr.mxu0 0.0
    %1041 = vmatpush1.msra.mxu0 0.0
    %1042 = vmatprep.subr.mxu0 0.0
    %1043 = vmatpush1.msra.mxu0 0.0
    %1044 = vmatprep.subr.mxu0 0.0
    %1045 = vmatpush1.msra.mxu0 0.0
    %1046 = vmatprep.subr.mxu0 0.0
    %1047 = vmatpush1.msra.mxu0 0.0
    %1048 = vmatprep.subr.mxu0 0.0
    %1049 = vmatpush1.msra.mxu0 0.0
    %1050 = vmatprep.subr.mxu0 0.0
    %1051 = vmatpush1.msra.mxu0 0.0
    %1052 = vmatprep.subr.mxu0 0.0
    %1053 = vmatpush1.msra.mxu0 0.0
    %1054 = vmatprep.subr.mxu0 0.0
    %1055 = vmatpush1.msra.mxu0 0.0
    %1056 = vmatprep.subr.mxu0 0.0
    %1057 = vmatpush1.msra.mxu0 %v1021
    %1058 = vmatprep.subr.mxu0 0.0
    %1059 = vmatpush2.msra.mxu0 0.0
    %1060 = vmatprep.subr.mxu0 0.0
    %1061 = vmatpush2.msra.mxu0 0.0
    %1062 = vmatprep.subr.mxu0 0.0
    %1063 = vmatpush2.msra.mxu0 0.0
    %1064 = vmatprep.subr.mxu0 0.0
    %1065 = vmatpush2.msra.mxu0 0.0
    %1066 = vmatprep.subr.mxu0 0.0
    %1067 = vmatpush2.msra.mxu0 0.0
    %1068 = vmatprep.subr.mxu0 0.0
    %1069 = vmatpush2.msra.mxu0 0.0
    %1070 = vmatprep.subr.mxu0 0.0
    %1071 = vmatpush2.msra.mxu0 0.0
    %1072 = vmatprep.subr.mxu0 0.0
    %1073 = vmatpush2.msra.mxu0 0.0
    %1074 = vmatprep.subr.mxu0 0.0
    %1075 = vmatpush2.msra.mxu0 0.0
    %1076 = vmatprep.subr.mxu0 0.0
    %1077 = vmatpush2.msra.mxu0 0.0
    %1078 = vmatprep.subr.mxu0 0.0
    %1079 = vmatpush2.msra.mxu0 0.0
    %1080 = vmatprep.subr.mxu0 0.0
    %1081 = vmatpush2.msra.mxu0 0.0
    %1082 = vmatprep.subr.mxu0 0.0
    %1083 = vmatpush2.msra.mxu0 0.0
    %1084 = vmatprep.subr.mxu0 0.0
    %1085 = vmatpush2.msra.mxu0 0.0
    %1086 = vmatprep.subr.mxu0 0.0
    %1087 = vmatpush2.msra.mxu0 0.0
    %1088 = vmatprep.subr.mxu0 0.0
    %1089 = vmatpush2.msra.mxu0 0.0
    %1090 = vmatprep.mubr.f32.mxu0 0.0
    %1091 = vmatmul.mubr.f32.gmra.mxu0 %v1024
    %v1092 = vpop.f32.mrf.mxu0
    %v1093 = vadd.f32 0.0, %v1092
    %v1094 = vpop.f32.mrf.mxu0
    %1095 = vdwg.mxu0
    %v1097 = vsel %vm193, %v1093, 0
    %1099 = vmatprep.subr.mxu0 0.0
    %1100 = vmatpush1.msra.mxu0 0.0
    %1101 = vmatprep.subr.mxu0 0.0
    %1102 = vmatpush1.msra.mxu0 0.0
    %1103 = vmatprep.subr.mxu0 0.0
    %1104 = vmatpush1.msra.mxu0 0.0
    %1105 = vmatprep.subr.mxu0 0.0
    %1106 = vmatpush1.msra.mxu0 0.0
    %1107 = vmatprep.subr.mxu0 0.0
    %1108 = vmatpush1.msra.mxu0 0.0
    %1109 = vmatprep.subr.mxu0 0.0
    %1110 = vmatpush1.msra.mxu0 0.0
    %1111 = vmatprep.subr.mxu0 0.0
    %1112 = vmatpush1.msra.mxu0 0.0
    %1113 = vmatprep.subr.mxu0 0.0
    %1114 = vmatpush1.msra.mxu0 0.0
    %1115 = vmatprep.subr.mxu0 0.0
    %1116 = vmatpush1.msra.mxu0 0.0
    %1117 = vmatprep.subr.mxu0 0.0
    %1118 = vmatpush1.msra.mxu0 0.0
    %1119 = vmatprep.subr.mxu0 0.0
    %1120 = vmatpush1.msra.mxu0 0.0
    %1121 = vmatprep.subr.mxu0 0.0
    %1122 = vmatpush1.msra.mxu0 0.0
    %1123 = vmatprep.subr.mxu0 0.0
    %1124 = vmatpush1.msra.mxu0 0.0
    %1125 = vmatprep.subr.mxu0 0.0
    %1126 = vmatpush1.msra.mxu0 0.0
    %1127 = vmatprep.subr.mxu0 0.0
    %1128 = vmatpush1.msra.mxu0 %v612
    %1129 = vmatprep.subr.mxu0 0.0
    %1130 = vmatpush1.msra.mxu0 %v610
    %1131 = vmatprep.subr.mxu0 0.0
    %1132 = vmatpush2.msra.mxu0 0.0
    %1133 = vmatprep.subr.mxu0 0.0
    %1134 = vmatpush2.msra.mxu0 0.0
    %1135 = vmatprep.subr.mxu0 0.0
    %1136 = vmatpush2.msra.mxu0 0.0
    %1137 = vmatprep.subr.mxu0 0.0
    %1138 = vmatpush2.msra.mxu0 0.0
    %1139 = vmatprep.subr.mxu0 0.0
    %1140 = vmatpush2.msra.mxu0 0.0
    %1141 = vmatprep.subr.mxu0 0.0
    %1142 = vmatpush2.msra.mxu0 0.0
    %1143 = vmatprep.subr.mxu0 0.0
    %1144 = vmatpush2.msra.mxu0 0.0
    %1145 = vmatprep.subr.mxu0 0.0
    %1146 = vmatpush2.msra.mxu0 0.0
    %1147 = vmatprep.subr.mxu0 0.0
    %1148 = vmatpush2.msra.mxu0 0.0
    %1149 = vmatprep.subr.mxu0 0.0
    %1150 = vmatpush2.msra.mxu0 0.0
    %1151 = vmatprep.subr.mxu0 0.0
    %1152 = vmatpush2.msra.mxu0 0.0
    %1153 = vmatprep.subr.mxu0 0.0
    %1154 = vmatpush2.msra.mxu0 0.0
    %1155 = vmatprep.subr.mxu0 0.0
    %1156 = vmatpush2.msra.mxu0 0.0
    %1157 = vmatprep.subr.mxu0 0.0
    %1158 = vmatpush2.msra.mxu0 0.0
    %1159 = vmatprep.subr.mxu0 0.0
    %1160 = vmatpush2.msra.mxu0 0.0
    %1161 = vmatprep.subr.mxu0 0.0
    %1162 = vmatpush2.msra.mxu0 0.0
    %1163 = vmatprep.mubr.f32.mxu0 0.0
    %1164 = vmatmul.mubr.f32.gmra.mxu0 %v1097
    %v1165 = vpop.f32.mrf.mxu0
    %v1166 = vadd.f32 0.0, %v1165
    %v1167 = vpop.f32.mrf.mxu0
    %1168 = vdwg.mxu0
    %v1169 = vadd.f32 %v930, %v1166
    %v1170 = vadd.f32 %v24, %v688
    %v1171 = vadd.f32 %v25, %v1169
    %v1172 = vsel %vm45, %v1170, 0.0
    %1173 = vadd.xlane.f32.xlu0 %v1172
    %v1174 = vpop.xlane.xlu0 %1173
    %v1175 = vsel %vm45, %v1171, 0.0
    %1176 = vadd.xlane.f32.xlu0 %v1175
    %v1177 = vpop.xlane.xlu0 %1176
    %v1178 = vmul.f32 %v1174, %v52
    %v1179 = vmul.f32 %v1177, %v52
    %v1180 = vsub.f32 %v1170, %v1178
    %v1181 = vsub.f32 %v1171, %v1179
    %v1182 = vmul.f32 %v1180, %v1180
    %v1183 = vmul.f32 %v1181, %v1181
    %v1184 = vsel %vm45, %v1182, 0.0
    %1185 = vadd.xlane.f32.xlu0 %v1184
    %v1186 = vpop.xlane.xlu0 %1185
    %v1187 = vsel %vm45, %v1183, 0.0
    %1188 = vadd.xlane.f32.xlu0 %v1187
    %v1189 = vpop.xlane.xlu0 %1188
    %v1190 = vmul.f32 %v1186, 0.032258064
    %v1191 = vmul.f32 %v1189, 0.032258064
    %v1192 = vrsqrt.pop %v1190
    %v1193 = vmul.f32 %v1190, %v1192
    %vm1194 = vcmp.eq.f32.partialorder %v1190, inf
    %v1195 = vsel %vm1194, %v1190, %v1193
    %vm1196 = vcmp.eq.f32.partialorder %v1190, 0.0
    %v1197 = vand.u32 %v1190, 2147483648
    %v1198 = vsel %vm1196, %v1197, %v1195
    %v1199 = vrsqrt.pop %v1191
    %v1200 = vmul.f32 %v1191, %v1199
    %vm1201 = vcmp.eq.f32.partialorder %v1191, inf
    %v1202 = vsel %vm1201, %v1191, %v1200
    %vm1203 = vcmp.eq.f32.partialorder %v1191, 0.0
    %v1204 = vand.u32 %v1191, 2147483648
    %v1205 = vsel %vm1203, %v1204, %v1202
    %v1206 = vlaneseq
    %v1207 = vshrl.u32 %v1206, 7
    %v1208 = vsub.s32 2, %v1207
    %v1209 = vrot.slane %v27, %v1208
    %v1210 = vmul.f32 %v1209, %v1180
    %v1211 = vmul.f32 %v1209, %v1181
    %v1212 = vadd.f32 %v1198, 1e-06
    %v1213 = vadd.f32 %v1205, 1e-06
    %v1214 = vrcp.pop %v1212
    %v1215 = vrcp.pop %v1213
    %v1216 = vmul.f32 %v1210, %v1214
    %v1217 = vmul.f32 %v1211, %v1215
    %v1218 = vlaneseq
    %v1219 = vshrl.u32 %v1218, 7
    %v1220 = vsub.s32 3, %v1219
    %v1221 = vrot.slane %v27, %v1220
    %v1222 = vadd.f32 %v1216, %v1221
    %v1223 = vadd.f32 %v1217, %v1221
    %v1224 = vlaneseq
    %v1225 = vshrl.u32 %v1224, 7
    %v1226 = vsub.s32 1, %v1225
    %v1227 = vrot.slane %v36, %v1226
    %1228 = vrot.lane.b32.xlu0 %v103, 32
    %v1229 = vpop.permute.xlu0 %1228
    %1230 = vrot.lane.b32.xlu0 %v1227, 32
    %v1231 = vpop.permute.xlu0 %1230
    %v1232 = vsel %vm45, %v1229, %v1231
    %v1235 = vsel %vm45, %v1222, 0
    %v1238 = vsel %vm45, %v1223, 0
    %1240 = vmatprep.subr.mxu0 0.0
    %1241 = vmatpush1.msra.mxu0 0.0
    %1242 = vmatprep.subr.mxu0 0.0
    %1243 = vmatpush1.msra.mxu0 0.0
    %1244 = vmatprep.subr.mxu0 0.0
    %1245 = vmatpush1.msra.mxu0 0.0
    %1246 = vmatprep.subr.mxu0 0.0
    %1247 = vmatpush1.msra.mxu0 0.0
    %1248 = vmatprep.subr.mxu0 0.0
    %1249 = vmatpush1.msra.mxu0 0.0
    %1250 = vmatprep.subr.mxu0 0.0
    %1251 = vmatpush1.msra.mxu0 0.0
    %1252 = vmatprep.subr.mxu0 0.0
    %1253 = vmatpush1.msra.mxu0 0.0
    %1254 = vmatprep.subr.mxu0 0.0
    %1255 = vmatpush1.msra.mxu0 0.0
    %1256 = vmatprep.subr.mxu0 0.0
    %1257 = vmatpush1.msra.mxu0 0.0
    %1258 = vmatprep.subr.mxu0 0.0
    %1259 = vmatpush1.msra.mxu0 0.0
    %1260 = vmatprep.subr.mxu0 0.0
    %1261 = vmatpush1.msra.mxu0 0.0
    %1262 = vmatprep.subr.mxu0 0.0
    %1263 = vmatpush1.msra.mxu0 0.0
    %1264 = vmatprep.subr.mxu0 0.0
    %1265 = vmatpush1.msra.mxu0 %v35
    %1266 = vmatprep.subr.mxu0 0.0
    %1267 = vmatpush1.msra.mxu0 %v33
    %1268 = vmatprep.subr.mxu0 0.0
    %1269 = vmatpush1.msra.mxu0 %v31
    %1270 = vmatprep.subr.mxu0 0.0
    %1271 = vmatpush1.msra.mxu0 %v29
    %1272 = vmatprep.subr.mxu0 0.0
    %1273 = vmatpush2.msra.mxu0 0.0
    %1274 = vmatprep.subr.mxu0 0.0
    %1275 = vmatpush2.msra.mxu0 0.0
    %1276 = vmatprep.subr.mxu0 0.0
    %1277 = vmatpush2.msra.mxu0 0.0
    %1278 = vmatprep.subr.mxu0 0.0
    %1279 = vmatpush2.msra.mxu0 0.0
    %1280 = vmatprep.subr.mxu0 0.0
    %1281 = vmatpush2.msra.mxu0 0.0
    %1282 = vmatprep.subr.mxu0 0.0
    %1283 = vmatpush2.msra.mxu0 0.0
    %1284 = vmatprep.subr.mxu0 0.0
    %1285 = vmatpush2.msra.mxu0 0.0
    %1286 = vmatprep.subr.mxu0 0.0
    %1287 = vmatpush2.msra.mxu0 0.0
    %1288 = vmatprep.subr.mxu0 0.0
    %1289 = vmatpush2.msra.mxu0 0.0
    %1290 = vmatprep.subr.mxu0 0.0
    %1291 = vmatpush2.msra.mxu0 0.0
    %1292 = vmatprep.subr.mxu0 0.0
    %1293 = vmatpush2.msra.mxu0 0.0
    %1294 = vmatprep.subr.mxu0 0.0
    %1295 = vmatpush2.msra.mxu0 0.0
    %1296 = vmatprep.subr.mxu0 0.0
    %1297 = vmatpush2.msra.mxu0 0.0
    %1298 = vmatprep.subr.mxu0 0.0
    %1299 = vmatpush2.msra.mxu0 0.0
    %1300 = vmatprep.subr.mxu0 0.0
    %1301 = vmatpush2.msra.mxu0 0.0
    %1302 = vmatprep.subr.mxu0 0.0
    %1303 = vmatpush2.msra.mxu0 0.0
    %1304 = vmatprep.mubr.f32.mxu0 0.0
    %1305 = vmatmul.mubr.f32.gmra.mxu0 %v1235
    %v1306 = vpop.f32.mrf.mxu0
    %v1307 = vadd.f32 %v1232, %v1306
    %v1308 = vpop.f32.mrf.mxu0
    %1309 = vmatprep.mubr.f32.mxu0 0.0
    %1310 = vmatmul.mubr.f32.gmra.mxu0 %v1238
    %v1311 = vpop.f32.mrf.mxu0
    %v1312 = vadd.f32 %v1232, %v1311
    %v1313 = vpop.f32.mrf.mxu0
    %1314 = vdwg.mxu0
    %v1315 = vmax.f32 %v1307, 0.0
    %v1316 = vmax.f32 %v1312, 0.0
    %vm1317 = vcmask 523264
    %v1319 = vsel %vm1317, %v1315, 0
    %v1322 = vsel %vm1317, %v1316, 0
    %1324 = vmatprep.subr.mxu0 0.0
    %1325 = vmatpush1.msra.mxu0 0.0
    %1326 = vmatprep.subr.mxu0 0.0
    %1327 = vmatpush1.msra.mxu0 0.0
    %1328 = vmatprep.subr.mxu0 0.0
    %1329 = vmatpush1.msra.mxu0 0.0
    %1330 = vmatprep.subr.mxu0 0.0
    %1331 = vmatpush1.msra.mxu0 0.0
    %1332 = vmatprep.subr.mxu0 0.0
    %1333 = vmatpush1.msra.mxu0 0.0
    %1334 = vmatprep.subr.mxu0 0.0
    %1335 = vmatpush1.msra.mxu0 0.0
    %1336 = vmatprep.subr.mxu0 0.0
    %1337 = vmatpush1.msra.mxu0 0.0
    %1338 = vmatprep.subr.mxu0 0.0
    %1339 = vmatpush1.msra.mxu0 0.0
    %1340 = vmatprep.subr.mxu0 0.0
    %1341 = vmatpush1.msra.mxu0 %v44
    %1342 = vmatprep.subr.mxu0 0.0
    %1343 = vmatpush1.msra.mxu0 %v43
    %1344 = vmatprep.subr.mxu0 0.0
    %1345 = vmatpush1.msra.mxu0 %v42
    %1346 = vmatprep.subr.mxu0 0.0
    %1347 = vmatpush1.msra.mxu0 %v41
    %1348 = vmatprep.subr.mxu0 0.0
    %1349 = vmatpush1.msra.mxu0 %v40
    %1350 = vmatprep.subr.mxu0 0.0
    %1351 = vmatpush1.msra.mxu0 %v39
    %1352 = vmatprep.subr.mxu0 0.0
    %1353 = vmatpush1.msra.mxu0 %v38
    %1354 = vmatprep.subr.mxu0 0.0
    %1355 = vmatpush1.msra.mxu0 %v37
    %1356 = vmatprep.subr.mxu0 0.0
    %1357 = vmatpush2.msra.mxu0 0.0
    %1358 = vmatprep.subr.mxu0 0.0
    %1359 = vmatpush2.msra.mxu0 0.0
    %1360 = vmatprep.subr.mxu0 0.0
    %1361 = vmatpush2.msra.mxu0 0.0
    %1362 = vmatprep.subr.mxu0 0.0
    %1363 = vmatpush2.msra.mxu0 0.0
    %1364 = vmatprep.subr.mxu0 0.0
    %1365 = vmatpush2.msra.mxu0 0.0
    %1366 = vmatprep.subr.mxu0 0.0
    %1367 = vmatpush2.msra.mxu0 0.0
    %1368 = vmatprep.subr.mxu0 0.0
    %1369 = vmatpush2.msra.mxu0 0.0
    %1370 = vmatprep.subr.mxu0 0.0
    %1371 = vmatpush2.msra.mxu0 0.0
    %1372 = vmatprep.subr.mxu0 0.0
    %1373 = vmatpush2.msra.mxu0 0.0
    %1374 = vmatprep.subr.mxu0 0.0
    %1375 = vmatpush2.msra.mxu0 0.0
    %1376 = vmatprep.subr.mxu0 0.0
    %1377 = vmatpush2.msra.mxu0 0.0
    %1378 = vmatprep.subr.mxu0 0.0
    %1379 = vmatpush2.msra.mxu0 0.0
    %1380 = vmatprep.subr.mxu0 0.0
    %1381 = vmatpush2.msra.mxu0 0.0
    %1382 = vmatprep.subr.mxu0 0.0
    %1383 = vmatpush2.msra.mxu0 0.0
    %1384 = vmatprep.subr.mxu0 0.0
    %1385 = vmatpush2.msra.mxu0 0.0
    %1386 = vmatprep.subr.mxu0 0.0
    %1387 = vmatpush2.msra.mxu0 0.0
    %1388 = vmatprep.mubr.f32.mxu0 0.0
    %1389 = vmatmul.mubr.f32.gmra.mxu0 %v1319
    %v1390 = vpop.f32.mrf.mxu0
    %v1391 = vadd.f32 0.0, %v1390
    %v1392 = vpop.f32.mrf.mxu0
    %1393 = vmatprep.mubr.f32.mxu0 0.0
    %1394 = vmatmul.mubr.f32.gmra.mxu0 %v1322
    %v1395 = vpop.f32.mrf.mxu0
    %v1396 = vadd.f32 0.0, %v1395
    %v1397 = vpop.f32.mrf.mxu0
    %1398 = vdwg.mxu0
    %v1399 = vadd.f32 %v1170, %v1391
    %v1400 = vadd.f32 %v1171, %v1396
    %v1401 = vlaneseq
    %v1402 = vshrl.u32 %v1401, 7
    %v1403 = vsub.s32 5, %v1402
    %v1404 = vrot.slane %v27, %v1403
    %v1405 = vadd.f32 %v1399, %v1404
    %v1406 = vadd.f32 %v1400, %v1404
    %s1407 = scalar_lea.vmem %s5, 8
    %v1408 = vld [vmem:[%s1407] sm:$0xff]
    %s1409 = scalar_lea.vmem %s2, 64
    %v1410 = vld [vmem:[%s1409] sm:$0xff]
    %v1411 = vld [vmem:[%s1409 + $0x8] sm:$0xff]
    %v1412 = vld [vmem:[%s1409 + $0x10] sm:$0xff]
    %v1413 = vld [vmem:[%s1409 + $0x18] sm:$0xff]
    %v1414 = vld [vmem:[%s1409 + $0x20] sm:$0xff]
    %v1415 = vld [vmem:[%s1409 + $0x28] sm:$0xff]
    %v1416 = vld [vmem:[%s1409 + $0x30] sm:$0xff]
    %v1417 = vld [vmem:[%s1409 + $0x38] sm:$0xff]
    %s1418 = scalar_lea.vmem %s4, 2
    %v1419 = vld [vmem:[%s1418] sm:$0x3]
    %s1420 = scalar_lea.vmem %s3, 64
    %v1421 = vld [vmem:[%s1420] sm:$0xff]
    %v1422 = vld [vmem:[%s1420 + $0x8] sm:$0xff]
    %v1423 = vld [vmem:[%s1420 + $0x10] sm:$0xff]
    %v1424 = vld [vmem:[%s1420 + $0x18] sm:$0xff]
    %v1425 = vld [vmem:[%s1420 + $0x20] sm:$0xff]
    %v1426 = vld [vmem:[%s1420 + $0x28] sm:$0xff]
    %v1427 = vld [vmem:[%s1420 + $0x30] sm:$0xff]
    %v1428 = vld [vmem:[%s1420 + $0x38] sm:$0xff]
    %v1429 = vsel %vm45, %v1405, 0.0
    %1430 = vadd.xlane.f32.xlu0 %v1429
    %v1431 = vpop.xlane.xlu0 %1430
    %v1432 = vsel %vm45, %v1406, 0.0
    %1433 = vadd.xlane.f32.xlu0 %v1432
    %v1434 = vpop.xlane.xlu0 %1433
    %v1435 = vmul.f32 %v1431, %v52
    %v1436 = vmul.f32 %v1434, %v52
    %v1437 = vsub.f32 %v1405, %v1435
    %v1438 = vsub.f32 %v1406, %v1436
    %v1439 = vmul.f32 %v1437, %v1437
    %v1440 = vmul.f32 %v1438, %v1438
    %v1441 = vsel %vm45, %v1439, 0.0
    %1442 = vadd.xlane.f32.xlu0 %v1441
    %v1443 = vpop.xlane.xlu0 %1442
    %v1444 = vsel %vm45, %v1440, 0.0
    %1445 = vadd.xlane.f32.xlu0 %v1444
    %v1446 = vpop.xlane.xlu0 %1445
    %v1447 = vmul.f32 %v1443, 0.032258064
    %v1448 = vmul.f32 %v1446, 0.032258064
    %v1449 = vrsqrt.pop %v1447
    %v1450 = vmul.f32 %v1447, %v1449
    %vm1451 = vcmp.eq.f32.partialorder %v1447, inf
    %v1452 = vsel %vm1451, %v1447, %v1450
    %vm1453 = vcmp.eq.f32.partialorder %v1447, 0.0
    %v1454 = vand.u32 %v1447, 2147483648
    %v1455 = vsel %vm1453, %v1454, %v1452
    %v1456 = vrsqrt.pop %v1448
    %v1457 = vmul.f32 %v1448, %v1456
    %vm1458 = vcmp.eq.f32.partialorder %v1448, inf
    %v1459 = vsel %vm1458, %v1448, %v1457
    %vm1460 = vcmp.eq.f32.partialorder %v1448, 0.0
    %v1461 = vand.u32 %v1448, 2147483648
    %v1462 = vsel %vm1460, %v1461, %v1459
    %v1463 = vlaneseq
    %v1464 = vshrl.u32 %v1463, 7
    %v1465 = vsub.s32 0, %v1464
    %v1466 = vrot.slane %v1408, %v1465
    %v1467 = vmul.f32 %v1466, %v1437
    %v1468 = vmul.f32 %v1466, %v1438
    %v1469 = vadd.f32 %v1455, 1e-06
    %v1470 = vadd.f32 %v1462, 1e-06
    %v1471 = vrcp.pop %v1469
    %v1472 = vrcp.pop %v1470
    %v1473 = vmul.f32 %v1467, %v1471
    %v1474 = vmul.f32 %v1468, %v1472
    %v1475 = vlaneseq
    %v1476 = vshrl.u32 %v1475, 7
    %v1477 = vsub.s32 1, %v1476
    %v1478 = vrot.slane %v1408, %v1477
    %v1479 = vadd.f32 %v1473, %v1478
    %v1480 = vadd.f32 %v1474, %v1478
    %v1482 = vlaneseq
    %v1483 = vshrl.u32 %v1482, 7
    %v1484 = vsub.s32 0, %v1483
    %v1485 = vrot.slane %v1419, %v1484
    %v1488 = vsel %vm45, %v1479, 0
    %v1491 = vsel %vm45, %v1480, 0
    %1493 = vmatprep.subr.mxu0 0.0
    %1494 = vmatpush1.msra.mxu0 0.0
    %1495 = vmatprep.subr.mxu0 0.0
    %1496 = vmatpush1.msra.mxu0 0.0
    %1497 = vmatprep.subr.mxu0 0.0
    %1498 = vmatpush1.msra.mxu0 0.0
    %1499 = vmatprep.subr.mxu0 0.0
    %1500 = vmatpush1.msra.mxu0 0.0
    %1501 = vmatprep.subr.mxu0 0.0
    %1502 = vmatpush1.msra.mxu0 0.0
    %1503 = vmatprep.subr.mxu0 0.0
    %1504 = vmatpush1.msra.mxu0 0.0
    %1505 = vmatprep.subr.mxu0 0.0
    %1506 = vmatpush1.msra.mxu0 0.0
    %1507 = vmatprep.subr.mxu0 0.0
    %1508 = vmatpush1.msra.mxu0 0.0
    %1509 = vmatprep.subr.mxu0 0.0
    %1510 = vmatpush1.msra.mxu0 0.0
    %1511 = vmatprep.subr.mxu0 0.0
    %1512 = vmatpush1.msra.mxu0 0.0
    %1513 = vmatprep.subr.mxu0 0.0
    %1514 = vmatpush1.msra.mxu0 0.0
    %1515 = vmatprep.subr.mxu0 0.0
    %1516 = vmatpush1.msra.mxu0 0.0
    %1517 = vmatprep.subr.mxu0 0.0
    %1518 = vmatpush1.msra.mxu0 %v1416
    %1519 = vmatprep.subr.mxu0 0.0
    %1520 = vmatpush1.msra.mxu0 %v1414
    %1521 = vmatprep.subr.mxu0 0.0
    %1522 = vmatpush1.msra.mxu0 %v1412
    %1523 = vmatprep.subr.mxu0 0.0
    %1524 = vmatpush1.msra.mxu0 %v1410
    %1525 = vmatprep.subr.mxu0 0.0
    %1526 = vmatpush2.msra.mxu0 0.0
    %1527 = vmatprep.subr.mxu0 0.0
    %1528 = vmatpush2.msra.mxu0 0.0
    %1529 = vmatprep.subr.mxu0 0.0
    %1530 = vmatpush2.msra.mxu0 0.0
    %1531 = vmatprep.subr.mxu0 0.0
    %1532 = vmatpush2.msra.mxu0 0.0
    %1533 = vmatprep.subr.mxu0 0.0
    %1534 = vmatpush2.msra.mxu0 0.0
    %1535 = vmatprep.subr.mxu0 0.0
    %1536 = vmatpush2.msra.mxu0 0.0
    %1537 = vmatprep.subr.mxu0 0.0
    %1538 = vmatpush2.msra.mxu0 0.0
    %1539 = vmatprep.subr.mxu0 0.0
    %1540 = vmatpush2.msra.mxu0 0.0
    %1541 = vmatprep.subr.mxu0 0.0
    %1542 = vmatpush2.msra.mxu0 0.0
    %1543 = vmatprep.subr.mxu0 0.0
    %1544 = vmatpush2.msra.mxu0 0.0
    %1545 = vmatprep.subr.mxu0 0.0
    %1546 = vmatpush2.msra.mxu0 0.0
    %1547 = vmatprep.subr.mxu0 0.0
    %1548 = vmatpush2.msra.mxu0 0.0
    %1549 = vmatprep.subr.mxu0 0.0
    %1550 = vmatpush2.msra.mxu0 0.0
    %1551 = vmatprep.subr.mxu0 0.0
    %1552 = vmatpush2.msra.mxu0 0.0
    %1553 = vmatprep.subr.mxu0 0.0
    %1554 = vmatpush2.msra.mxu0 0.0
    %1555 = vmatprep.subr.mxu0 0.0
    %1556 = vmatpush2.msra.mxu0 0.0
    %1557 = vmatprep.mubr.f32.mxu0 0.0
    %1558 = vmatmul.mubr.f32.gmra.mxu0 %v1488
    %v1559 = vpop.f32.mrf.mxu0
    %v1560 = vadd.f32 %v1485, %v1559
    %v1561 = vpop.f32.mrf.mxu0
    %1562 = vmatprep.mubr.f32.mxu0 0.0
    %1563 = vmatmul.mubr.f32.gmra.mxu0 %v1491
    %v1564 = vpop.f32.mrf.mxu0
    %v1565 = vadd.f32 %v1485, %v1564
    %v1566 = vpop.f32.mrf.mxu0
    %1567 = vdwg.mxu0
    %1569 = vrot.lane.b32.xlu0 %v1560, 96
    %v1570 = vpop.permute.xlu0 %1569
    %v1571 = vsel %vm193, %v1560, 0
    %v1573 = vsel %vm193, %v1570, 0
    %1575 = vmatprep.subr.mxu0 0.0
    %1576 = vmatpush1.xpose.msra.mxu0 0.0
    %1577 = vmatprep.subr.mxu0 0.0
    %1578 = vmatpush1.xpose.msra.mxu0 0.0
    %1579 = vmatprep.subr.mxu0 0.0
    %1580 = vmatpush1.xpose.msra.mxu0 0.0
    %1581 = vmatprep.subr.mxu0 0.0
    %1582 = vmatpush1.xpose.msra.mxu0 0.0
    %1583 = vmatprep.subr.mxu0 0.0
    %1584 = vmatpush1.xpose.msra.mxu0 0.0
    %1585 = vmatprep.subr.mxu0 0.0
    %1586 = vmatpush1.xpose.msra.mxu0 0.0
    %1587 = vmatprep.subr.mxu0 0.0
    %1588 = vmatpush1.xpose.msra.mxu0 0.0
    %1589 = vmatprep.subr.mxu0 0.0
    %1590 = vmatpush1.xpose.msra.mxu0 0.0
    %1591 = vmatprep.subr.mxu0 0.0
    %1592 = vmatpush1.xpose.msra.mxu0 0.0
    %1593 = vmatprep.subr.mxu0 0.0
    %1594 = vmatpush1.xpose.msra.mxu0 0.0
    %1595 = vmatprep.subr.mxu0 0.0
    %1596 = vmatpush1.xpose.msra.mxu0 0.0
    %1597 = vmatprep.subr.mxu0 0.0
    %1598 = vmatpush1.xpose.msra.mxu0 0.0
    %1599 = vmatprep.subr.mxu0 0.0
    %1600 = vmatpush1.xpose.msra.mxu0 0.0
    %1601 = vmatprep.subr.mxu0 0.0
    %1602 = vmatpush1.xpose.msra.mxu0 0.0
    %1603 = vmatprep.subr.mxu0 0.0
    %1604 = vmatpush1.xpose.msra.mxu0 0.0
    %1605 = vmatprep.subr.mxu0 0.0
    %1606 = vmatpush1.xpose.msra.mxu0 %v1573
    %1607 = vmatprep.subr.mxu0 0.0
    %1608 = vmatpush2.xpose.msra.mxu0 0.0
    %1609 = vmatprep.subr.mxu0 0.0
    %1610 = vmatpush2.xpose.msra.mxu0 0.0
    %1611 = vmatprep.subr.mxu0 0.0
    %1612 = vmatpush2.xpose.msra.mxu0 0.0
    %1613 = vmatprep.subr.mxu0 0.0
    %1614 = vmatpush2.xpose.msra.mxu0 0.0
    %1615 = vmatprep.subr.mxu0 0.0
    %1616 = vmatpush2.xpose.msra.mxu0 0.0
    %1617 = vmatprep.subr.mxu0 0.0
    %1618 = vmatpush2.xpose.msra.mxu0 0.0
    %1619 = vmatprep.subr.mxu0 0.0
    %1620 = vmatpush2.xpose.msra.mxu0 0.0
    %1621 = vmatprep.subr.mxu0 0.0
    %1622 = vmatpush2.xpose.msra.mxu0 0.0
    %1623 = vmatprep.subr.mxu0 0.0
    %1624 = vmatpush2.xpose.msra.mxu0 0.0
    %1625 = vmatprep.subr.mxu0 0.0
    %1626 = vmatpush2.xpose.msra.mxu0 0.0
    %1627 = vmatprep.subr.mxu0 0.0
    %1628 = vmatpush2.xpose.msra.mxu0 0.0
    %1629 = vmatprep.subr.mxu0 0.0
    %1630 = vmatpush2.xpose.msra.mxu0 0.0
    %1631 = vmatprep.subr.mxu0 0.0
    %1632 = vmatpush2.xpose.msra.mxu0 0.0
    %1633 = vmatprep.subr.mxu0 0.0
    %1634 = vmatpush2.xpose.msra.mxu0 0.0
    %1635 = vmatprep.subr.mxu0 0.0
    %1636 = vmatpush2.xpose.msra.mxu0 0.0
    %1637 = vmatprep.subr.mxu0 0.0
    %1638 = vmatpush2.xpose.msra.mxu0 0.0
    %1639 = vmatprep.mubr.f32.mxu0 0.0
    %1640 = vmatmul.mubr.f32.gmra.mxu0 %v1571
    %v1641 = vpop.f32.mrf.mxu0
    %v1642 = vadd.f32 %v189, %v1641
    %v1643 = vpop.f32.mrf.mxu0
    %1644 = vdwg.mxu0
    %v1645 = vsel %vm268, %v1642, -inf
    %1646 = vmax.xlane.f32.xlu0 %v1645
    %v1647 = vpop.xlane.xlu0 %1646
    %v1648 = vsub.f32 %v1642, %v1647
    %v1649 = vmul.f32 %v1648, 1.442695
    %v1650 = vpow.pop %v1649
    %v1651 = vsel %vm268, %v1650, 0.0
    %1652 = vadd.xlane.f32.xlu0 %v1651
    %v1653 = vpop.xlane.xlu0 %1652
    %v1654 = vrcp.pop %v1653
    %v1655 = vmul.f32 %v1650, %v1654
    %1656 = vrot.lane.b32.xlu0 %v1560, 64
    %v1657 = vpop.permute.xlu0 %1656
    %v1660 = vsel %vm268, %v1655, 0
    %1662 = vmatprep.subr.mxu0 0.0
    %1663 = vmatpush1.msra.mxu0 0.0
    %1664 = vmatprep.subr.mxu0 0.0
    %1665 = vmatpush1.msra.mxu0 0.0
    %1666 = vmatprep.subr.mxu0 0.0
    %1667 = vmatpush1.msra.mxu0 0.0
    %1668 = vmatprep.subr.mxu0 0.0
    %1669 = vmatpush1.msra.mxu0 0.0
    %1670 = vmatprep.subr.mxu0 0.0
    %1671 = vmatpush1.msra.mxu0 0.0
    %1672 = vmatprep.subr.mxu0 0.0
    %1673 = vmatpush1.msra.mxu0 0.0
    %1674 = vmatprep.subr.mxu0 0.0
    %1675 = vmatpush1.msra.mxu0 0.0
    %1676 = vmatprep.subr.mxu0 0.0
    %1677 = vmatpush1.msra.mxu0 0.0
    %1678 = vmatprep.subr.mxu0 0.0
    %1679 = vmatpush1.msra.mxu0 0.0
    %1680 = vmatprep.subr.mxu0 0.0
    %1681 = vmatpush1.msra.mxu0 0.0
    %1682 = vmatprep.subr.mxu0 0.0
    %1683 = vmatpush1.msra.mxu0 0.0
    %1684 = vmatprep.subr.mxu0 0.0
    %1685 = vmatpush1.msra.mxu0 0.0
    %1686 = vmatprep.subr.mxu0 0.0
    %1687 = vmatpush1.msra.mxu0 0.0
    %1688 = vmatprep.subr.mxu0 0.0
    %1689 = vmatpush1.msra.mxu0 0.0
    %1690 = vmatprep.subr.mxu0 0.0
    %1691 = vmatpush1.msra.mxu0 0.0
    %1692 = vmatprep.subr.mxu0 0.0
    %1693 = vmatpush1.msra.mxu0 %v1657
    %1694 = vmatprep.subr.mxu0 0.0
    %1695 = vmatpush2.msra.mxu0 0.0
    %1696 = vmatprep.subr.mxu0 0.0
    %1697 = vmatpush2.msra.mxu0 0.0
    %1698 = vmatprep.subr.mxu0 0.0
    %1699 = vmatpush2.msra.mxu0 0.0
    %1700 = vmatprep.subr.mxu0 0.0
    %1701 = vmatpush2.msra.mxu0 0.0
    %1702 = vmatprep.subr.mxu0 0.0
    %1703 = vmatpush2.msra.mxu0 0.0
    %1704 = vmatprep.subr.mxu0 0.0
    %1705 = vmatpush2.msra.mxu0 0.0
    %1706 = vmatprep.subr.mxu0 0.0
    %1707 = vmatpush2.msra.mxu0 0.0
    %1708 = vmatprep.subr.mxu0 0.0
    %1709 = vmatpush2.msra.mxu0 0.0
    %1710 = vmatprep.subr.mxu0 0.0
    %1711 = vmatpush2.msra.mxu0 0.0
    %1712 = vmatprep.subr.mxu0 0.0
    %1713 = vmatpush2.msra.mxu0 0.0
    %1714 = vmatprep.subr.mxu0 0.0
    %1715 = vmatpush2.msra.mxu0 0.0
    %1716 = vmatprep.subr.mxu0 0.0
    %1717 = vmatpush2.msra.mxu0 0.0
    %1718 = vmatprep.subr.mxu0 0.0
    %1719 = vmatpush2.msra.mxu0 0.0
    %1720 = vmatprep.subr.mxu0 0.0
    %1721 = vmatpush2.msra.mxu0 0.0
    %1722 = vmatprep.subr.mxu0 0.0
    %1723 = vmatpush2.msra.mxu0 0.0
    %1724 = vmatprep.subr.mxu0 0.0
    %1725 = vmatpush2.msra.mxu0 0.0
    %1726 = vmatprep.mubr.f32.mxu0 0.0
    %1727 = vmatmul.mubr.f32.gmra.mxu0 %v1660
    %v1728 = vpop.f32.mrf.mxu0
    %v1729 = vadd.f32 0.0, %v1728
    %v1730 = vpop.f32.mrf.mxu0
    %1731 = vdwg.mxu0
    %1734 = vrot.lane.b32.xlu0 %v1410, 32
    %v1735 = vpop.permute.xlu0 %1734
    %1736 = vrot.lane.b32.xlu0 %v1412, 32
    %v1737 = vpop.permute.xlu0 %1736
    %v1741 = vsel %vm193, %v1729, 0
    %1743 = vmatprep.subr.mxu0 0.0
    %1744 = vmatpush1.msra.mxu0 0.0
    %1745 = vmatprep.subr.mxu0 0.0
    %1746 = vmatpush1.msra.mxu0 0.0
    %1747 = vmatprep.subr.mxu0 0.0
    %1748 = vmatpush1.msra.mxu0 0.0
    %1749 = vmatprep.subr.mxu0 0.0
    %1750 = vmatpush1.msra.mxu0 0.0
    %1751 = vmatprep.subr.mxu0 0.0
    %1752 = vmatpush1.msra.mxu0 0.0
    %1753 = vmatprep.subr.mxu0 0.0
    %1754 = vmatpush1.msra.mxu0 0.0
    %1755 = vmatprep.subr.mxu0 0.0
    %1756 = vmatpush1.msra.mxu0 0.0
    %1757 = vmatprep.subr.mxu0 0.0
    %1758 = vmatpush1.msra.mxu0 0.0
    %1759 = vmatprep.subr.mxu0 0.0
    %1760 = vmatpush1.msra.mxu0 0.0
    %1761 = vmatprep.subr.mxu0 0.0
    %1762 = vmatpush1.msra.mxu0 0.0
    %1763 = vmatprep.subr.mxu0 0.0
    %1764 = vmatpush1.msra.mxu0 0.0
    %1765 = vmatprep.subr.mxu0 0.0
    %1766 = vmatpush1.msra.mxu0 0.0
    %1767 = vmatprep.subr.mxu0 0.0
    %1768 = vmatpush1.msra.mxu0 0.0
    %1769 = vmatprep.subr.mxu0 0.0
    %1770 = vmatpush1.msra.mxu0 0.0
    %1771 = vmatprep.subr.mxu0 0.0
    %1772 = vmatpush1.msra.mxu0 %v1737
    %1773 = vmatprep.subr.mxu0 0.0
    %1774 = vmatpush1.msra.mxu0 %v1735
    %1775 = vmatprep.subr.mxu0 0.0
    %1776 = vmatpush2.msra.mxu0 0.0
    %1777 = vmatprep.subr.mxu0 0.0
    %1778 = vmatpush2.msra.mxu0 0.0
    %1779 = vmatprep.subr.mxu0 0.0
    %1780 = vmatpush2.msra.mxu0 0.0
    %1781 = vmatprep.subr.mxu0 0.0
    %1782 = vmatpush2.msra.mxu0 0.0
    %1783 = vmatprep.subr.mxu0 0.0
    %1784 = vmatpush2.msra.mxu0 0.0
    %1785 = vmatprep.subr.mxu0 0.0
    %1786 = vmatpush2.msra.mxu0 0.0
    %1787 = vmatprep.subr.mxu0 0.0
    %1788 = vmatpush2.msra.mxu0 0.0
    %1789 = vmatprep.subr.mxu0 0.0
    %1790 = vmatpush2.msra.mxu0 0.0
    %1791 = vmatprep.subr.mxu0 0.0
    %1792 = vmatpush2.msra.mxu0 0.0
    %1793 = vmatprep.subr.mxu0 0.0
    %1794 = vmatpush2.msra.mxu0 0.0
    %1795 = vmatprep.subr.mxu0 0.0
    %1796 = vmatpush2.msra.mxu0 0.0
    %1797 = vmatprep.subr.mxu0 0.0
    %1798 = vmatpush2.msra.mxu0 0.0
    %1799 = vmatprep.subr.mxu0 0.0
    %1800 = vmatpush2.msra.mxu0 0.0
    %1801 = vmatprep.subr.mxu0 0.0
    %1802 = vmatpush2.msra.mxu0 0.0
    %1803 = vmatprep.subr.mxu0 0.0
    %1804 = vmatpush2.msra.mxu0 0.0
    %1805 = vmatprep.subr.mxu0 0.0
    %1806 = vmatpush2.msra.mxu0 0.0
    %1807 = vmatprep.mubr.f32.mxu0 0.0
    %1808 = vmatmul.mubr.f32.gmra.mxu0 %v1741
    %v1809 = vpop.f32.mrf.mxu0
    %v1810 = vadd.f32 0.0, %v1809
    %v1811 = vpop.f32.mrf.mxu0
    %1812 = vdwg.mxu0
    %v1813 = vlaneseq
    %v1814 = vshrl.u32 %v1813, 7
    %v1815 = vsub.s32 4, %v1814
    %v1816 = vrot.slane %v1408, %v1815
    %v1817 = vadd.f32 %v1816, %v1810
    %1818 = vrot.lane.b32.xlu0 %v1560, 112
    %v1819 = vpop.permute.xlu0 %1818
    %1820 = vrot.lane.b32.xlu0 %v1560, 80
    %v1821 = vpop.permute.xlu0 %1820
    %v1822 = vsel %vm193, %v1819, 0
    %v1824 = vsel %vm193, %v1821, 0
    %1826 = vmatprep.subr.mxu0 0.0
    %1827 = vmatpush1.xpose.msra.mxu0 0.0
    %1828 = vmatprep.subr.mxu0 0.0
    %1829 = vmatpush1.xpose.msra.mxu0 0.0
    %1830 = vmatprep.subr.mxu0 0.0
    %1831 = vmatpush1.xpose.msra.mxu0 0.0
    %1832 = vmatprep.subr.mxu0 0.0
    %1833 = vmatpush1.xpose.msra.mxu0 0.0
    %1834 = vmatprep.subr.mxu0 0.0
    %1835 = vmatpush1.xpose.msra.mxu0 0.0
    %1836 = vmatprep.subr.mxu0 0.0
    %1837 = vmatpush1.xpose.msra.mxu0 0.0
    %1838 = vmatprep.subr.mxu0 0.0
    %1839 = vmatpush1.xpose.msra.mxu0 0.0
    %1840 = vmatprep.subr.mxu0 0.0
    %1841 = vmatpush1.xpose.msra.mxu0 0.0
    %1842 = vmatprep.subr.mxu0 0.0
    %1843 = vmatpush1.xpose.msra.mxu0 0.0
    %1844 = vmatprep.subr.mxu0 0.0
    %1845 = vmatpush1.xpose.msra.mxu0 0.0
    %1846 = vmatprep.subr.mxu0 0.0
    %1847 = vmatpush1.xpose.msra.mxu0 0.0
    %1848 = vmatprep.subr.mxu0 0.0
    %1849 = vmatpush1.xpose.msra.mxu0 0.0
    %1850 = vmatprep.subr.mxu0 0.0
    %1851 = vmatpush1.xpose.msra.mxu0 0.0
    %1852 = vmatprep.subr.mxu0 0.0
    %1853 = vmatpush1.xpose.msra.mxu0 0.0
    %1854 = vmatprep.subr.mxu0 0.0
    %1855 = vmatpush1.xpose.msra.mxu0 0.0
    %1856 = vmatprep.subr.mxu0 0.0
    %1857 = vmatpush1.xpose.msra.mxu0 %v1824
    %1858 = vmatprep.subr.mxu0 0.0
    %1859 = vmatpush2.xpose.msra.mxu0 0.0
    %1860 = vmatprep.subr.mxu0 0.0
    %1861 = vmatpush2.xpose.msra.mxu0 0.0
    %1862 = vmatprep.subr.mxu0 0.0
    %1863 = vmatpush2.xpose.msra.mxu0 0.0
    %1864 = vmatprep.subr.mxu0 0.0
    %1865 = vmatpush2.xpose.msra.mxu0 0.0
    %1866 = vmatprep.subr.mxu0 0.0
    %1867 = vmatpush2.xpose.msra.mxu0 0.0
    %1868 = vmatprep.subr.mxu0 0.0
    %1869 = vmatpush2.xpose.msra.mxu0 0.0
    %1870 = vmatprep.subr.mxu0 0.0
    %1871 = vmatpush2.xpose.msra.mxu0 0.0
    %1872 = vmatprep.subr.mxu0 0.0
    %1873 = vmatpush2.xpose.msra.mxu0 0.0
    %1874 = vmatprep.subr.mxu0 0.0
    %1875 = vmatpush2.xpose.msra.mxu0 0.0
    %1876 = vmatprep.subr.mxu0 0.0
    %1877 = vmatpush2.xpose.msra.mxu0 0.0
    %1878 = vmatprep.subr.mxu0 0.0
    %1879 = vmatpush2.xpose.msra.mxu0 0.0
    %1880 = vmatprep.subr.mxu0 0.0
    %1881 = vmatpush2.xpose.msra.mxu0 0.0
    %1882 = vmatprep.subr.mxu0 0.0
    %1883 = vmatpush2.xpose.msra.mxu0 0.0
    %1884 = vmatprep.subr.mxu0 0.0
    %1885 = vmatpush2.xpose.msra.mxu0 0.0
    %1886 = vmatprep.subr.mxu0 0.0
    %1887 = vmatpush2.xpose.msra.mxu0 0.0
    %1888 = vmatprep.subr.mxu0 0.0
    %1889 = vmatpush2.xpose.msra.mxu0 0.0
    %1890 = vmatprep.mubr.f32.mxu0 0.0
    %1891 = vmatmul.mubr.f32.gmra.mxu0 %v1822
    %v1892 = vpop.f32.mrf.mxu0
    %v1893 = vadd.f32 %v189, %v1892
    %v1894 = vpop.f32.mrf.mxu0
    %1895 = vdwg.mxu0
    %v1896 = vsel %vm268, %v1893, -inf
    %1897 = vmax.xlane.f32.xlu0 %v1896
    %v1898 = vpop.xlane.xlu0 %1897
    %v1899 = vsub.f32 %v1893, %v1898
    %v1900 = vmul.f32 %v1899, 1.442695
    %v1901 = vpow.pop %v1900
    %v1902 = vsel %vm268, %v1901, 0.0
    %1903 = vadd.xlane.f32.xlu0 %v1902
    %v1904 = vpop.xlane.xlu0 %1903
    %v1905 = vrcp.pop %v1904
    %v1906 = vmul.f32 %v1901, %v1905
    %1907 = vrot.lane.b32.xlu0 %v1560, 48
    %v1908 = vpop.permute.xlu0 %1907
    %v1911 = vsel %vm268, %v1906, 0
    %1913 = vmatprep.subr.mxu0 0.0
    %1914 = vmatpush1.msra.mxu0 0.0
    %1915 = vmatprep.subr.mxu0 0.0
    %1916 = vmatpush1.msra.mxu0 0.0
    %1917 = vmatprep.subr.mxu0 0.0
    %1918 = vmatpush1.msra.mxu0 0.0
    %1919 = vmatprep.subr.mxu0 0.0
    %1920 = vmatpush1.msra.mxu0 0.0
    %1921 = vmatprep.subr.mxu0 0.0
    %1922 = vmatpush1.msra.mxu0 0.0
    %1923 = vmatprep.subr.mxu0 0.0
    %1924 = vmatpush1.msra.mxu0 0.0
    %1925 = vmatprep.subr.mxu0 0.0
    %1926 = vmatpush1.msra.mxu0 0.0
    %1927 = vmatprep.subr.mxu0 0.0
    %1928 = vmatpush1.msra.mxu0 0.0
    %1929 = vmatprep.subr.mxu0 0.0
    %1930 = vmatpush1.msra.mxu0 0.0
    %1931 = vmatprep.subr.mxu0 0.0
    %1932 = vmatpush1.msra.mxu0 0.0
    %1933 = vmatprep.subr.mxu0 0.0
    %1934 = vmatpush1.msra.mxu0 0.0
    %1935 = vmatprep.subr.mxu0 0.0
    %1936 = vmatpush1.msra.mxu0 0.0
    %1937 = vmatprep.subr.mxu0 0.0
    %1938 = vmatpush1.msra.mxu0 0.0
    %1939 = vmatprep.subr.mxu0 0.0
    %1940 = vmatpush1.msra.mxu0 0.0
    %1941 = vmatprep.subr.mxu0 0.0
    %1942 = vmatpush1.msra.mxu0 0.0
    %1943 = vmatprep.subr.mxu0 0.0
    %1944 = vmatpush1.msra.mxu0 %v1908
    %1945 = vmatprep.subr.mxu0 0.0
    %1946 = vmatpush2.msra.mxu0 0.0
    %1947 = vmatprep.subr.mxu0 0.0
    %1948 = vmatpush2.msra.mxu0 0.0
    %1949 = vmatprep.subr.mxu0 0.0
    %1950 = vmatpush2.msra.mxu0 0.0
    %1951 = vmatprep.subr.mxu0 0.0
    %1952 = vmatpush2.msra.mxu0 0.0
    %1953 = vmatprep.subr.mxu0 0.0
    %1954 = vmatpush2.msra.mxu0 0.0
    %1955 = vmatprep.subr.mxu0 0.0
    %1956 = vmatpush2.msra.mxu0 0.0
    %1957 = vmatprep.subr.mxu0 0.0
    %1958 = vmatpush2.msra.mxu0 0.0
    %1959 = vmatprep.subr.mxu0 0.0
    %1960 = vmatpush2.msra.mxu0 0.0
    %1961 = vmatprep.subr.mxu0 0.0
    %1962 = vmatpush2.msra.mxu0 0.0
    %1963 = vmatprep.subr.mxu0 0.0
    %1964 = vmatpush2.msra.mxu0 0.0
    %1965 = vmatprep.subr.mxu0 0.0
    %1966 = vmatpush2.msra.mxu0 0.0
    %1967 = vmatprep.subr.mxu0 0.0
    %1968 = vmatpush2.msra.mxu0 0.0
    %1969 = vmatprep.subr.mxu0 0.0
    %1970 = vmatpush2.msra.mxu0 0.0
    %1971 = vmatprep.subr.mxu0 0.0
    %1972 = vmatpush2.msra.mxu0 0.0
    %1973 = vmatprep.subr.mxu0 0.0
    %1974 = vmatpush2.msra.mxu0 0.0
    %1975 = vmatprep.subr.mxu0 0.0
    %1976 = vmatpush2.msra.mxu0 0.0
    %1977 = vmatprep.mubr.f32.mxu0 0.0
    %1978 = vmatmul.mubr.f32.gmra.mxu0 %v1911
    %v1979 = vpop.f32.mrf.mxu0
    %v1980 = vadd.f32 0.0, %v1979
    %v1981 = vpop.f32.mrf.mxu0
    %1982 = vdwg.mxu0
    %1985 = vrot.lane.b32.xlu0 %v1414, 32
    %v1986 = vpop.permute.xlu0 %1985
    %1987 = vrot.lane.b32.xlu0 %v1416, 32
    %v1988 = vpop.permute.xlu0 %1987
    %v1992 = vsel %vm193, %v1980, 0
    %1994 = vmatprep.subr.mxu0 0.0
    %1995 = vmatpush1.msra.mxu0 0.0
    %1996 = vmatprep.subr.mxu0 0.0
    %1997 = vmatpush1.msra.mxu0 0.0
    %1998 = vmatprep.subr.mxu0 0.0
    %1999 = vmatpush1.msra.mxu0 0.0
    %2000 = vmatprep.subr.mxu0 0.0
    %2001 = vmatpush1.msra.mxu0 0.0
    %2002 = vmatprep.subr.mxu0 0.0
    %2003 = vmatpush1.msra.mxu0 0.0
    %2004 = vmatprep.subr.mxu0 0.0
    %2005 = vmatpush1.msra.mxu0 0.0
    %2006 = vmatprep.subr.mxu0 0.0
    %2007 = vmatpush1.msra.mxu0 0.0
    %2008 = vmatprep.subr.mxu0 0.0
    %2009 = vmatpush1.msra.mxu0 0.0
    %2010 = vmatprep.subr.mxu0 0.0
    %2011 = vmatpush1.msra.mxu0 0.0
    %2012 = vmatprep.subr.mxu0 0.0
    %2013 = vmatpush1.msra.mxu0 0.0
    %2014 = vmatprep.subr.mxu0 0.0
    %2015 = vmatpush1.msra.mxu0 0.0
    %2016 = vmatprep.subr.mxu0 0.0
    %2017 = vmatpush1.msra.mxu0 0.0
    %2018 = vmatprep.subr.mxu0 0.0
    %2019 = vmatpush1.msra.mxu0 0.0
    %2020 = vmatprep.subr.mxu0 0.0
    %2021 = vmatpush1.msra.mxu0 0.0
    %2022 = vmatprep.subr.mxu0 0.0
    %2023 = vmatpush1.msra.mxu0 %v1988
    %2024 = vmatprep.subr.mxu0 0.0
    %2025 = vmatpush1.msra.mxu0 %v1986
    %2026 = vmatprep.subr.mxu0 0.0
    %2027 = vmatpush2.msra.mxu0 0.0
    %2028 = vmatprep.subr.mxu0 0.0
    %2029 = vmatpush2.msra.mxu0 0.0
    %2030 = vmatprep.subr.mxu0 0.0
    %2031 = vmatpush2.msra.mxu0 0.0
    %2032 = vmatprep.subr.mxu0 0.0
    %2033 = vmatpush2.msra.mxu0 0.0
    %2034 = vmatprep.subr.mxu0 0.0
    %2035 = vmatpush2.msra.mxu0 0.0
    %2036 = vmatprep.subr.mxu0 0.0
    %2037 = vmatpush2.msra.mxu0 0.0
    %2038 = vmatprep.subr.mxu0 0.0
    %2039 = vmatpush2.msra.mxu0 0.0
    %2040 = vmatprep.subr.mxu0 0.0
    %2041 = vmatpush2.msra.mxu0 0.0
    %2042 = vmatprep.subr.mxu0 0.0
    %2043 = vmatpush2.msra.mxu0 0.0
    %2044 = vmatprep.subr.mxu0 0.0
    %2045 = vmatpush2.msra.mxu0 0.0
    %2046 = vmatprep.subr.mxu0 0.0
    %2047 = vmatpush2.msra.mxu0 0.0
    %2048 = vmatprep.subr.mxu0 0.0
    %2049 = vmatpush2.msra.mxu0 0.0
    %2050 = vmatprep.subr.mxu0 0.0
    %2051 = vmatpush2.msra.mxu0 0.0
    %2052 = vmatprep.subr.mxu0 0.0
    %2053 = vmatpush2.msra.mxu0 0.0
    %2054 = vmatprep.subr.mxu0 0.0
    %2055 = vmatpush2.msra.mxu0 0.0
    %2056 = vmatprep.subr.mxu0 0.0
    %2057 = vmatpush2.msra.mxu0 0.0
    %2058 = vmatprep.mubr.f32.mxu0 0.0
    %2059 = vmatmul.mubr.f32.gmra.mxu0 %v1992
    %v2060 = vpop.f32.mrf.mxu0
    %v2061 = vadd.f32 0.0, %v2060
    %v2062 = vpop.f32.mrf.mxu0
    %2063 = vdwg.mxu0
    %v2064 = vadd.f32 %v1817, %v2061
    %2066 = vrot.lane.b32.xlu0 %v1565, 96
    %v2067 = vpop.permute.xlu0 %2066
    %v2068 = vsel %vm193, %v1565, 0
    %v2070 = vsel %vm193, %v2067, 0
    %2072 = vmatprep.subr.mxu0 0.0
    %2073 = vmatpush1.xpose.msra.mxu0 0.0
    %2074 = vmatprep.subr.mxu0 0.0
    %2075 = vmatpush1.xpose.msra.mxu0 0.0
    %2076 = vmatprep.subr.mxu0 0.0
    %2077 = vmatpush1.xpose.msra.mxu0 0.0
    %2078 = vmatprep.subr.mxu0 0.0
    %2079 = vmatpush1.xpose.msra.mxu0 0.0
    %2080 = vmatprep.subr.mxu0 0.0
    %2081 = vmatpush1.xpose.msra.mxu0 0.0
    %2082 = vmatprep.subr.mxu0 0.0
    %2083 = vmatpush1.xpose.msra.mxu0 0.0
    %2084 = vmatprep.subr.mxu0 0.0
    %2085 = vmatpush1.xpose.msra.mxu0 0.0
    %2086 = vmatprep.subr.mxu0 0.0
    %2087 = vmatpush1.xpose.msra.mxu0 0.0
    %2088 = vmatprep.subr.mxu0 0.0
    %2089 = vmatpush1.xpose.msra.mxu0 0.0
    %2090 = vmatprep.subr.mxu0 0.0
    %2091 = vmatpush1.xpose.msra.mxu0 0.0
    %2092 = vmatprep.subr.mxu0 0.0
    %2093 = vmatpush1.xpose.msra.mxu0 0.0
    %2094 = vmatprep.subr.mxu0 0.0
    %2095 = vmatpush1.xpose.msra.mxu0 0.0
    %2096 = vmatprep.subr.mxu0 0.0
    %2097 = vmatpush1.xpose.msra.mxu0 0.0
    %2098 = vmatprep.subr.mxu0 0.0
    %2099 = vmatpush1.xpose.msra.mxu0 0.0
    %2100 = vmatprep.subr.mxu0 0.0
    %2101 = vmatpush1.xpose.msra.mxu0 0.0
    %2102 = vmatprep.subr.mxu0 0.0
    %2103 = vmatpush1.xpose.msra.mxu0 %v2070
    %2104 = vmatprep.subr.mxu0 0.0
    %2105 = vmatpush2.xpose.msra.mxu0 0.0
    %2106 = vmatprep.subr.mxu0 0.0
    %2107 = vmatpush2.xpose.msra.mxu0 0.0
    %2108 = vmatprep.subr.mxu0 0.0
    %2109 = vmatpush2.xpose.msra.mxu0 0.0
    %2110 = vmatprep.subr.mxu0 0.0
    %2111 = vmatpush2.xpose.msra.mxu0 0.0
    %2112 = vmatprep.subr.mxu0 0.0
    %2113 = vmatpush2.xpose.msra.mxu0 0.0
    %2114 = vmatprep.subr.mxu0 0.0
    %2115 = vmatpush2.xpose.msra.mxu0 0.0
    %2116 = vmatprep.subr.mxu0 0.0
    %2117 = vmatpush2.xpose.msra.mxu0 0.0
    %2118 = vmatprep.subr.mxu0 0.0
    %2119 = vmatpush2.xpose.msra.mxu0 0.0
    %2120 = vmatprep.subr.mxu0 0.0
    %2121 = vmatpush2.xpose.msra.mxu0 0.0
    %2122 = vmatprep.subr.mxu0 0.0
    %2123 = vmatpush2.xpose.msra.mxu0 0.0
    %2124 = vmatprep.subr.mxu0 0.0
    %2125 = vmatpush2.xpose.msra.mxu0 0.0
    %2126 = vmatprep.subr.mxu0 0.0
    %2127 = vmatpush2.xpose.msra.mxu0 0.0
    %2128 = vmatprep.subr.mxu0 0.0
    %2129 = vmatpush2.xpose.msra.mxu0 0.0
    %2130 = vmatprep.subr.mxu0 0.0
    %2131 = vmatpush2.xpose.msra.mxu0 0.0
    %2132 = vmatprep.subr.mxu0 0.0
    %2133 = vmatpush2.xpose.msra.mxu0 0.0
    %2134 = vmatprep.subr.mxu0 0.0
    %2135 = vmatpush2.xpose.msra.mxu0 0.0
    %2136 = vmatprep.mubr.f32.mxu0 0.0
    %2137 = vmatmul.mubr.f32.gmra.mxu0 %v2068
    %v2138 = vpop.f32.mrf.mxu0
    %v2139 = vadd.f32 %v692, %v2138
    %v2140 = vpop.f32.mrf.mxu0
    %2141 = vdwg.mxu0
    %v2142 = vsel %vm268, %v2139, -inf
    %2143 = vmax.xlane.f32.xlu0 %v2142
    %v2144 = vpop.xlane.xlu0 %2143
    %v2145 = vsub.f32 %v2139, %v2144
    %v2146 = vmul.f32 %v2145, 1.442695
    %v2147 = vpow.pop %v2146
    %v2148 = vsel %vm268, %v2147, 0.0
    %2149 = vadd.xlane.f32.xlu0 %v2148
    %v2150 = vpop.xlane.xlu0 %2149
    %v2151 = vrcp.pop %v2150
    %v2152 = vmul.f32 %v2147, %v2151
    %2153 = vrot.lane.b32.xlu0 %v1565, 64
    %v2154 = vpop.permute.xlu0 %2153
    %v2157 = vsel %vm268, %v2152, 0
    %2159 = vmatprep.subr.mxu0 0.0
    %2160 = vmatpush1.msra.mxu0 0.0
    %2161 = vmatprep.subr.mxu0 0.0
    %2162 = vmatpush1.msra.mxu0 0.0
    %2163 = vmatprep.subr.mxu0 0.0
    %2164 = vmatpush1.msra.mxu0 0.0
    %2165 = vmatprep.subr.mxu0 0.0
    %2166 = vmatpush1.msra.mxu0 0.0
    %2167 = vmatprep.subr.mxu0 0.0
    %2168 = vmatpush1.msra.mxu0 0.0
    %2169 = vmatprep.subr.mxu0 0.0
    %2170 = vmatpush1.msra.mxu0 0.0
    %2171 = vmatprep.subr.mxu0 0.0
    %2172 = vmatpush1.msra.mxu0 0.0
    %2173 = vmatprep.subr.mxu0 0.0
    %2174 = vmatpush1.msra.mxu0 0.0
    %2175 = vmatprep.subr.mxu0 0.0
    %2176 = vmatpush1.msra.mxu0 0.0
    %2177 = vmatprep.subr.mxu0 0.0
    %2178 = vmatpush1.msra.mxu0 0.0
    %2179 = vmatprep.subr.mxu0 0.0
    %2180 = vmatpush1.msra.mxu0 0.0
    %2181 = vmatprep.subr.mxu0 0.0
    %2182 = vmatpush1.msra.mxu0 0.0
    %2183 = vmatprep.subr.mxu0 0.0
    %2184 = vmatpush1.msra.mxu0 0.0
    %2185 = vmatprep.subr.mxu0 0.0
    %2186 = vmatpush1.msra.mxu0 0.0
    %2187 = vmatprep.subr.mxu0 0.0
    %2188 = vmatpush1.msra.mxu0 0.0
    %2189 = vmatprep.subr.mxu0 0.0
    %2190 = vmatpush1.msra.mxu0 %v2154
    %2191 = vmatprep.subr.mxu0 0.0
    %2192 = vmatpush2.msra.mxu0 0.0
    %2193 = vmatprep.subr.mxu0 0.0
    %2194 = vmatpush2.msra.mxu0 0.0
    %2195 = vmatprep.subr.mxu0 0.0
    %2196 = vmatpush2.msra.mxu0 0.0
    %2197 = vmatprep.subr.mxu0 0.0
    %2198 = vmatpush2.msra.mxu0 0.0
    %2199 = vmatprep.subr.mxu0 0.0
    %2200 = vmatpush2.msra.mxu0 0.0
    %2201 = vmatprep.subr.mxu0 0.0
    %2202 = vmatpush2.msra.mxu0 0.0
    %2203 = vmatprep.subr.mxu0 0.0
    %2204 = vmatpush2.msra.mxu0 0.0
    %2205 = vmatprep.subr.mxu0 0.0
    %2206 = vmatpush2.msra.mxu0 0.0
    %2207 = vmatprep.subr.mxu0 0.0
    %2208 = vmatpush2.msra.mxu0 0.0
    %2209 = vmatprep.subr.mxu0 0.0
    %2210 = vmatpush2.msra.mxu0 0.0
    %2211 = vmatprep.subr.mxu0 0.0
    %2212 = vmatpush2.msra.mxu0 0.0
    %2213 = vmatprep.subr.mxu0 0.0
    %2214 = vmatpush2.msra.mxu0 0.0
    %2215 = vmatprep.subr.mxu0 0.0
    %2216 = vmatpush2.msra.mxu0 0.0
    %2217 = vmatprep.subr.mxu0 0.0
    %2218 = vmatpush2.msra.mxu0 0.0
    %2219 = vmatprep.subr.mxu0 0.0
    %2220 = vmatpush2.msra.mxu0 0.0
    %2221 = vmatprep.subr.mxu0 0.0
    %2222 = vmatpush2.msra.mxu0 0.0
    %2223 = vmatprep.mubr.f32.mxu0 0.0
    %2224 = vmatmul.mubr.f32.gmra.mxu0 %v2157
    %v2225 = vpop.f32.mrf.mxu0
    %v2226 = vadd.f32 0.0, %v2225
    %v2227 = vpop.f32.mrf.mxu0
    %2228 = vdwg.mxu0
    %v2230 = vsel %vm193, %v2226, 0
    %2232 = vmatprep.subr.mxu0 0.0
    %2233 = vmatpush1.msra.mxu0 0.0
    %2234 = vmatprep.subr.mxu0 0.0
    %2235 = vmatpush1.msra.mxu0 0.0
    %2236 = vmatprep.subr.mxu0 0.0
    %2237 = vmatpush1.msra.mxu0 0.0
    %2238 = vmatprep.subr.mxu0 0.0
    %2239 = vmatpush1.msra.mxu0 0.0
    %2240 = vmatprep.subr.mxu0 0.0
    %2241 = vmatpush1.msra.mxu0 0.0
    %2242 = vmatprep.subr.mxu0 0.0
    %2243 = vmatpush1.msra.mxu0 0.0
    %2244 = vmatprep.subr.mxu0 0.0
    %2245 = vmatpush1.msra.mxu0 0.0
    %2246 = vmatprep.subr.mxu0 0.0
    %2247 = vmatpush1.msra.mxu0 0.0
    %2248 = vmatprep.subr.mxu0 0.0
    %2249 = vmatpush1.msra.mxu0 0.0
    %2250 = vmatprep.subr.mxu0 0.0
    %2251 = vmatpush1.msra.mxu0 0.0
    %2252 = vmatprep.subr.mxu0 0.0
    %2253 = vmatpush1.msra.mxu0 0.0
    %2254 = vmatprep.subr.mxu0 0.0
    %2255 = vmatpush1.msra.mxu0 0.0
    %2256 = vmatprep.subr.mxu0 0.0
    %2257 = vmatpush1.msra.mxu0 0.0
    %2258 = vmatprep.subr.mxu0 0.0
    %2259 = vmatpush1.msra.mxu0 0.0
    %2260 = vmatprep.subr.mxu0 0.0
    %2261 = vmatpush1.msra.mxu0 %v1737
    %2262 = vmatprep.subr.mxu0 0.0
    %2263 = vmatpush1.msra.mxu0 %v1735
    %2264 = vmatprep.subr.mxu0 0.0
    %2265 = vmatpush2.msra.mxu0 0.0
    %2266 = vmatprep.subr.mxu0 0.0
    %2267 = vmatpush2.msra.mxu0 0.0
    %2268 = vmatprep.subr.mxu0 0.0
    %2269 = vmatpush2.msra.mxu0 0.0
    %2270 = vmatprep.subr.mxu0 0.0
    %2271 = vmatpush2.msra.mxu0 0.0
    %2272 = vmatprep.subr.mxu0 0.0
    %2273 = vmatpush2.msra.mxu0 0.0
    %2274 = vmatprep.subr.mxu0 0.0
    %2275 = vmatpush2.msra.mxu0 0.0
    %2276 = vmatprep.subr.mxu0 0.0
    %2277 = vmatpush2.msra.mxu0 0.0
    %2278 = vmatprep.subr.mxu0 0.0
    %2279 = vmatpush2.msra.mxu0 0.0
    %2280 = vmatprep.subr.mxu0 0.0
    %2281 = vmatpush2.msra.mxu0 0.0
    %2282 = vmatprep.subr.mxu0 0.0
    %2283 = vmatpush2.msra.mxu0 0.0
    %2284 = vmatprep.subr.mxu0 0.0
    %2285 = vmatpush2.msra.mxu0 0.0
    %2286 = vmatprep.subr.mxu0 0.0
    %2287 = vmatpush2.msra.mxu0 0.0
    %2288 = vmatprep.subr.mxu0 0.0
    %2289 = vmatpush2.msra.mxu0 0.0
    %2290 = vmatprep.subr.mxu0 0.0
    %2291 = vmatpush2.msra.mxu0 0.0
    %2292 = vmatprep.subr.mxu0 0.0
    %2293 = vmatpush2.msra.mxu0 0.0
    %2294 = vmatprep.subr.mxu0 0.0
    %2295 = vmatpush2.msra.mxu0 0.0
    %2296 = vmatprep.mubr.f32.mxu0 0.0
    %2297 = vmatmul.mubr.f32.gmra.mxu0 %v2230
    %v2298 = vpop.f32.mrf.mxu0
    %v2299 = vadd.f32 0.0, %v2298
    %v2300 = vpop.f32.mrf.mxu0
    %2301 = vdwg.mxu0
    %v2302 = vadd.f32 %v1816, %v2299
    %2303 = vrot.lane.b32.xlu0 %v1565, 112
    %v2304 = vpop.permute.xlu0 %2303
    %2305 = vrot.lane.b32.xlu0 %v1565, 80
    %v2306 = vpop.permute.xlu0 %2305
    %v2307 = vsel %vm193, %v2304, 0
    %v2309 = vsel %vm193, %v2306, 0
    %2311 = vmatprep.subr.mxu0 0.0
    %2312 = vmatpush1.xpose.msra.mxu0 0.0
    %2313 = vmatprep.subr.mxu0 0.0
    %2314 = vmatpush1.xpose.msra.mxu0 0.0
    %2315 = vmatprep.subr.mxu0 0.0
    %2316 = vmatpush1.xpose.msra.mxu0 0.0
    %2317 = vmatprep.subr.mxu0 0.0
    %2318 = vmatpush1.xpose.msra.mxu0 0.0
    %2319 = vmatprep.subr.mxu0 0.0
    %2320 = vmatpush1.xpose.msra.mxu0 0.0
    %2321 = vmatprep.subr.mxu0 0.0
    %2322 = vmatpush1.xpose.msra.mxu0 0.0
    %2323 = vmatprep.subr.mxu0 0.0
    %2324 = vmatpush1.xpose.msra.mxu0 0.0
    %2325 = vmatprep.subr.mxu0 0.0
    %2326 = vmatpush1.xpose.msra.mxu0 0.0
    %2327 = vmatprep.subr.mxu0 0.0
    %2328 = vmatpush1.xpose.msra.mxu0 0.0
    %2329 = vmatprep.subr.mxu0 0.0
    %2330 = vmatpush1.xpose.msra.mxu0 0.0
    %2331 = vmatprep.subr.mxu0 0.0
    %2332 = vmatpush1.xpose.msra.mxu0 0.0
    %2333 = vmatprep.subr.mxu0 0.0
    %2334 = vmatpush1.xpose.msra.mxu0 0.0
    %2335 = vmatprep.subr.mxu0 0.0
    %2336 = vmatpush1.xpose.msra.mxu0 0.0
    %2337 = vmatprep.subr.mxu0 0.0
    %2338 = vmatpush1.xpose.msra.mxu0 0.0
    %2339 = vmatprep.subr.mxu0 0.0
    %2340 = vmatpush1.xpose.msra.mxu0 0.0
    %2341 = vmatprep.subr.mxu0 0.0
    %2342 = vmatpush1.xpose.msra.mxu0 %v2309
    %2343 = vmatprep.subr.mxu0 0.0
    %2344 = vmatpush2.xpose.msra.mxu0 0.0
    %2345 = vmatprep.subr.mxu0 0.0
    %2346 = vmatpush2.xpose.msra.mxu0 0.0
    %2347 = vmatprep.subr.mxu0 0.0
    %2348 = vmatpush2.xpose.msra.mxu0 0.0
    %2349 = vmatprep.subr.mxu0 0.0
    %2350 = vmatpush2.xpose.msra.mxu0 0.0
    %2351 = vmatprep.subr.mxu0 0.0
    %2352 = vmatpush2.xpose.msra.mxu0 0.0
    %2353 = vmatprep.subr.mxu0 0.0
    %2354 = vmatpush2.xpose.msra.mxu0 0.0
    %2355 = vmatprep.subr.mxu0 0.0
    %2356 = vmatpush2.xpose.msra.mxu0 0.0
    %2357 = vmatprep.subr.mxu0 0.0
    %2358 = vmatpush2.xpose.msra.mxu0 0.0
    %2359 = vmatprep.subr.mxu0 0.0
    %2360 = vmatpush2.xpose.msra.mxu0 0.0
    %2361 = vmatprep.subr.mxu0 0.0
    %2362 = vmatpush2.xpose.msra.mxu0 0.0
    %2363 = vmatprep.subr.mxu0 0.0
    %2364 = vmatpush2.xpose.msra.mxu0 0.0
    %2365 = vmatprep.subr.mxu0 0.0
    %2366 = vmatpush2.xpose.msra.mxu0 0.0
    %2367 = vmatprep.subr.mxu0 0.0
    %2368 = vmatpush2.xpose.msra.mxu0 0.0
    %2369 = vmatprep.subr.mxu0 0.0
    %2370 = vmatpush2.xpose.msra.mxu0 0.0
    %2371 = vmatprep.subr.mxu0 0.0
    %2372 = vmatpush2.xpose.msra.mxu0 0.0
    %2373 = vmatprep.subr.mxu0 0.0
    %2374 = vmatpush2.xpose.msra.mxu0 0.0
    %2375 = vmatprep.mubr.f32.mxu0 0.0
    %2376 = vmatmul.mubr.f32.gmra.mxu0 %v2307
    %v2377 = vpop.f32.mrf.mxu0
    %v2378 = vadd.f32 %v692, %v2377
    %v2379 = vpop.f32.mrf.mxu0
    %2380 = vdwg.mxu0
    %v2381 = vsel %vm268, %v2378, -inf
    %2382 = vmax.xlane.f32.xlu0 %v2381
    %v2383 = vpop.xlane.xlu0 %2382
    %v2384 = vsub.f32 %v2378, %v2383
    %v2385 = vmul.f32 %v2384, 1.442695
    %v2386 = vpow.pop %v2385
    %v2387 = vsel %vm268, %v2386, 0.0
    %2388 = vadd.xlane.f32.xlu0 %v2387
    %v2389 = vpop.xlane.xlu0 %2388
    %v2390 = vrcp.pop %v2389
    %v2391 = vmul.f32 %v2386, %v2390
    %2392 = vrot.lane.b32.xlu0 %v1565, 48
    %v2393 = vpop.permute.xlu0 %2392
    %v2396 = vsel %vm268, %v2391, 0
    %2398 = vmatprep.subr.mxu0 0.0
    %2399 = vmatpush1.msra.mxu0 0.0
    %2400 = vmatprep.subr.mxu0 0.0
    %2401 = vmatpush1.msra.mxu0 0.0
    %2402 = vmatprep.subr.mxu0 0.0
    %2403 = vmatpush1.msra.mxu0 0.0
    %2404 = vmatprep.subr.mxu0 0.0
    %2405 = vmatpush1.msra.mxu0 0.0
    %2406 = vmatprep.subr.mxu0 0.0
    %2407 = vmatpush1.msra.mxu0 0.0
    %2408 = vmatprep.subr.mxu0 0.0
    %2409 = vmatpush1.msra.mxu0 0.0
    %2410 = vmatprep.subr.mxu0 0.0
    %2411 = vmatpush1.msra.mxu0 0.0
    %2412 = vmatprep.subr.mxu0 0.0
    %2413 = vmatpush1.msra.mxu0 0.0
    %2414 = vmatprep.subr.mxu0 0.0
    %2415 = vmatpush1.msra.mxu0 0.0
    %2416 = vmatprep.subr.mxu0 0.0
    %2417 = vmatpush1.msra.mxu0 0.0
    %2418 = vmatprep.subr.mxu0 0.0
    %2419 = vmatpush1.msra.mxu0 0.0
    %2420 = vmatprep.subr.mxu0 0.0
    %2421 = vmatpush1.msra.mxu0 0.0
    %2422 = vmatprep.subr.mxu0 0.0
    %2423 = vmatpush1.msra.mxu0 0.0
    %2424 = vmatprep.subr.mxu0 0.0
    %2425 = vmatpush1.msra.mxu0 0.0
    %2426 = vmatprep.subr.mxu0 0.0
    %2427 = vmatpush1.msra.mxu0 0.0
    %2428 = vmatprep.subr.mxu0 0.0
    %2429 = vmatpush1.msra.mxu0 %v2393
    %2430 = vmatprep.subr.mxu0 0.0
    %2431 = vmatpush2.msra.mxu0 0.0
    %2432 = vmatprep.subr.mxu0 0.0
    %2433 = vmatpush2.msra.mxu0 0.0
    %2434 = vmatprep.subr.mxu0 0.0
    %2435 = vmatpush2.msra.mxu0 0.0
    %2436 = vmatprep.subr.mxu0 0.0
    %2437 = vmatpush2.msra.mxu0 0.0
    %2438 = vmatprep.subr.mxu0 0.0
    %2439 = vmatpush2.msra.mxu0 0.0
    %2440 = vmatprep.subr.mxu0 0.0
    %2441 = vmatpush2.msra.mxu0 0.0
    %2442 = vmatprep.subr.mxu0 0.0
    %2443 = vmatpush2.msra.mxu0 0.0
    %2444 = vmatprep.subr.mxu0 0.0
    %2445 = vmatpush2.msra.mxu0 0.0
    %2446 = vmatprep.subr.mxu0 0.0
    %2447 = vmatpush2.msra.mxu0 0.0
    %2448 = vmatprep.subr.mxu0 0.0
    %2449 = vmatpush2.msra.mxu0 0.0
    %2450 = vmatprep.subr.mxu0 0.0
    %2451 = vmatpush2.msra.mxu0 0.0
    %2452 = vmatprep.subr.mxu0 0.0
    %2453 = vmatpush2.msra.mxu0 0.0
    %2454 = vmatprep.subr.mxu0 0.0
    %2455 = vmatpush2.msra.mxu0 0.0
    %2456 = vmatprep.subr.mxu0 0.0
    %2457 = vmatpush2.msra.mxu0 0.0
    %2458 = vmatprep.subr.mxu0 0.0
    %2459 = vmatpush2.msra.mxu0 0.0
    %2460 = vmatprep.subr.mxu0 0.0
    %2461 = vmatpush2.msra.mxu0 0.0
    %2462 = vmatprep.mubr.f32.mxu0 0.0
    %2463 = vmatmul.mubr.f32.gmra.mxu0 %v2396
    %v2464 = vpop.f32.mrf.mxu0
    %v2465 = vadd.f32 0.0, %v2464
    %v2466 = vpop.f32.mrf.mxu0
    %2467 = vdwg.mxu0
    %v2469 = vsel %vm193, %v2465, 0
    %2471 = vmatprep.subr.mxu0 0.0
    %2472 = vmatpush1.msra.mxu0 0.0
    %2473 = vmatprep.subr.mxu0 0.0
    %2474 = vmatpush1.msra.mxu0 0.0
    %2475 = vmatprep.subr.mxu0 0.0
    %2476 = vmatpush1.msra.mxu0 0.0
    %2477 = vmatprep.subr.mxu0 0.0
    %2478 = vmatpush1.msra.mxu0 0.0
    %2479 = vmatprep.subr.mxu0 0.0
    %2480 = vmatpush1.msra.mxu0 0.0
    %2481 = vmatprep.subr.mxu0 0.0
    %2482 = vmatpush1.msra.mxu0 0.0
    %2483 = vmatprep.subr.mxu0 0.0
    %2484 = vmatpush1.msra.mxu0 0.0
    %2485 = vmatprep.subr.mxu0 0.0
    %2486 = vmatpush1.msra.mxu0 0.0
    %2487 = vmatprep.subr.mxu0 0.0
    %2488 = vmatpush1.msra.mxu0 0.0
    %2489 = vmatprep.subr.mxu0 0.0
    %2490 = vmatpush1.msra.mxu0 0.0
    %2491 = vmatprep.subr.mxu0 0.0
    %2492 = vmatpush1.msra.mxu0 0.0
    %2493 = vmatprep.subr.mxu0 0.0
    %2494 = vmatpush1.msra.mxu0 0.0
    %2495 = vmatprep.subr.mxu0 0.0
    %2496 = vmatpush1.msra.mxu0 0.0
    %2497 = vmatprep.subr.mxu0 0.0
    %2498 = vmatpush1.msra.mxu0 0.0
    %2499 = vmatprep.subr.mxu0 0.0
    %2500 = vmatpush1.msra.mxu0 %v1988
    %2501 = vmatprep.subr.mxu0 0.0
    %2502 = vmatpush1.msra.mxu0 %v1986
    %2503 = vmatprep.subr.mxu0 0.0
    %2504 = vmatpush2.msra.mxu0 0.0
    %2505 = vmatprep.subr.mxu0 0.0
    %2506 = vmatpush2.msra.mxu0 0.0
    %2507 = vmatprep.subr.mxu0 0.0
    %2508 = vmatpush2.msra.mxu0 0.0
    %2509 = vmatprep.subr.mxu0 0.0
    %2510 = vmatpush2.msra.mxu0 0.0
    %2511 = vmatprep.subr.mxu0 0.0
    %2512 = vmatpush2.msra.mxu0 0.0
    %2513 = vmatprep.subr.mxu0 0.0
    %2514 = vmatpush2.msra.mxu0 0.0
    %2515 = vmatprep.subr.mxu0 0.0
    %2516 = vmatpush2.msra.mxu0 0.0
    %2517 = vmatprep.subr.mxu0 0.0
    %2518 = vmatpush2.msra.mxu0 0.0
    %2519 = vmatprep.subr.mxu0 0.0
    %2520 = vmatpush2.msra.mxu0 0.0
    %2521 = vmatprep.subr.mxu0 0.0
    %2522 = vmatpush2.msra.mxu0 0.0
    %2523 = vmatprep.subr.mxu0 0.0
    %2524 = vmatpush2.msra.mxu0 0.0
    %2525 = vmatprep.subr.mxu0 0.0
    %2526 = vmatpush2.msra.mxu0 0.0
    %2527 = vmatprep.subr.mxu0 0.0
    %2528 = vmatpush2.msra.mxu0 0.0
    %2529 = vmatprep.subr.mxu0 0.0
    %2530 = vmatpush2.msra.mxu0 0.0
    %2531 = vmatprep.subr.mxu0 0.0
    %2532 = vmatpush2.msra.mxu0 0.0
    %2533 = vmatprep.subr.mxu0 0.0
    %2534 = vmatpush2.msra.mxu0 0.0
    %2535 = vmatprep.mubr.f32.mxu0 0.0
    %2536 = vmatmul.mubr.f32.gmra.mxu0 %v2469
    %v2537 = vpop.f32.mrf.mxu0
    %v2538 = vadd.f32 0.0, %v2537
    %v2539 = vpop.f32.mrf.mxu0
    %2540 = vdwg.mxu0
    %v2541 = vadd.f32 %v2302, %v2538
    %v2542 = vadd.f32 %v1405, %v2064
    %v2543 = vadd.f32 %v1406, %v2541
    %v2544 = vsel %vm45, %v2542, 0.0
    %2545 = vadd.xlane.f32.xlu0 %v2544
    %v2546 = vpop.xlane.xlu0 %2545
    %v2547 = vsel %vm45, %v2543, 0.0
    %2548 = vadd.xlane.f32.xlu0 %v2547
    %v2549 = vpop.xlane.xlu0 %2548
    %v2550 = vmul.f32 %v2546, %v52
    %v2551 = vmul.f32 %v2549, %v52
    %v2552 = vsub.f32 %v2542, %v2550
    %v2553 = vsub.f32 %v2543, %v2551
    %v2554 = vmul.f32 %v2552, %v2552
    %v2555 = vmul.f32 %v2553, %v2553
    %v2556 = vsel %vm45, %v2554, 0.0
    %2557 = vadd.xlane.f32.xlu0 %v2556
    %v2558 = vpop.xlane.xlu0 %2557
    %v2559 = vsel %vm45, %v2555, 0.0
    %2560 = vadd.xlane.f32.xlu0 %v2559
    %v2561 = vpop.xlane.xlu0 %2560
    %v2562 = vmul.f32 %v2558, 0.032258064
    %v2563 = vmul.f32 %v2561, 0.032258064
    %v2564 = vrsqrt.pop %v2562
    %v2565 = vmul.f32 %v2562, %v2564
    %vm2566 = vcmp.eq.f32.partialorder %v2562, inf
    %v2567 = vsel %vm2566, %v2562, %v2565
    %vm2568 = vcmp.eq.f32.partialorder %v2562, 0.0
    %v2569 = vand.u32 %v2562, 2147483648
    %v2570 = vsel %vm2568, %v2569, %v2567
    %v2571 = vrsqrt.pop %v2563
    %v2572 = vmul.f32 %v2563, %v2571
    %vm2573 = vcmp.eq.f32.partialorder %v2563, inf
    %v2574 = vsel %vm2573, %v2563, %v2572
    %vm2575 = vcmp.eq.f32.partialorder %v2563, 0.0
    %v2576 = vand.u32 %v2563, 2147483648
    %v2577 = vsel %vm2575, %v2576, %v2574
    %v2578 = vlaneseq
    %v2579 = vshrl.u32 %v2578, 7
    %v2580 = vsub.s32 2, %v2579
    %v2581 = vrot.slane %v1408, %v2580
    %v2582 = vmul.f32 %v2581, %v2552
    %v2583 = vmul.f32 %v2581, %v2553
    %v2584 = vadd.f32 %v2570, 1e-06
    %v2585 = vadd.f32 %v2577, 1e-06
    %v2586 = vrcp.pop %v2584
    %v2587 = vrcp.pop %v2585
    %v2588 = vmul.f32 %v2582, %v2586
    %v2589 = vmul.f32 %v2583, %v2587
    %v2590 = vlaneseq
    %v2591 = vshrl.u32 %v2590, 7
    %v2592 = vsub.s32 3, %v2591
    %v2593 = vrot.slane %v1408, %v2592
    %v2594 = vadd.f32 %v2588, %v2593
    %v2595 = vadd.f32 %v2589, %v2593
    %v2596 = vlaneseq
    %v2597 = vshrl.u32 %v2596, 7
    %v2598 = vsub.s32 1, %v2597
    %v2599 = vrot.slane %v1419, %v2598
    %2600 = vrot.lane.b32.xlu0 %v1485, 32
    %v2601 = vpop.permute.xlu0 %2600
    %2602 = vrot.lane.b32.xlu0 %v2599, 32
    %v2603 = vpop.permute.xlu0 %2602
    %v2604 = vsel %vm45, %v2601, %v2603
    %v2607 = vsel %vm45, %v2594, 0
    %v2610 = vsel %vm45, %v2595, 0
    %2612 = vmatprep.subr.mxu0 0.0
    %2613 = vmatpush1.msra.mxu0 0.0
    %2614 = vmatprep.subr.mxu0 0.0
    %2615 = vmatpush1.msra.mxu0 0.0
    %2616 = vmatprep.subr.mxu0 0.0
    %2617 = vmatpush1.msra.mxu0 0.0
    %2618 = vmatprep.subr.mxu0 0.0
    %2619 = vmatpush1.msra.mxu0 0.0
    %2620 = vmatprep.subr.mxu0 0.0
    %2621 = vmatpush1.msra.mxu0 0.0
    %2622 = vmatprep.subr.mxu0 0.0
    %2623 = vmatpush1.msra.mxu0 0.0
    %2624 = vmatprep.subr.mxu0 0.0
    %2625 = vmatpush1.msra.mxu0 0.0
    %2626 = vmatprep.subr.mxu0 0.0
    %2627 = vmatpush1.msra.mxu0 0.0
    %2628 = vmatprep.subr.mxu0 0.0
    %2629 = vmatpush1.msra.mxu0 0.0
    %2630 = vmatprep.subr.mxu0 0.0
    %2631 = vmatpush1.msra.mxu0 0.0
    %2632 = vmatprep.subr.mxu0 0.0
    %2633 = vmatpush1.msra.mxu0 0.0
    %2634 = vmatprep.subr.mxu0 0.0
    %2635 = vmatpush1.msra.mxu0 0.0
    %2636 = vmatprep.subr.mxu0 0.0
    %2637 = vmatpush1.msra.mxu0 %v1417
    %2638 = vmatprep.subr.mxu0 0.0
    %2639 = vmatpush1.msra.mxu0 %v1415
    %2640 = vmatprep.subr.mxu0 0.0
    %2641 = vmatpush1.msra.mxu0 %v1413
    %2642 = vmatprep.subr.mxu0 0.0
    %2643 = vmatpush1.msra.mxu0 %v1411
    %2644 = vmatprep.subr.mxu0 0.0
    %2645 = vmatpush2.msra.mxu0 0.0
    %2646 = vmatprep.subr.mxu0 0.0
    %2647 = vmatpush2.msra.mxu0 0.0
    %2648 = vmatprep.subr.mxu0 0.0
    %2649 = vmatpush2.msra.mxu0 0.0
    %2650 = vmatprep.subr.mxu0 0.0
    %2651 = vmatpush2.msra.mxu0 0.0
    %2652 = vmatprep.subr.mxu0 0.0
    %2653 = vmatpush2.msra.mxu0 0.0
    %2654 = vmatprep.subr.mxu0 0.0
    %2655 = vmatpush2.msra.mxu0 0.0
    %2656 = vmatprep.subr.mxu0 0.0
    %2657 = vmatpush2.msra.mxu0 0.0
    %2658 = vmatprep.subr.mxu0 0.0
    %2659 = vmatpush2.msra.mxu0 0.0
    %2660 = vmatprep.subr.mxu0 0.0
    %2661 = vmatpush2.msra.mxu0 0.0
    %2662 = vmatprep.subr.mxu0 0.0
    %2663 = vmatpush2.msra.mxu0 0.0
    %2664 = vmatprep.subr.mxu0 0.0
    %2665 = vmatpush2.msra.mxu0 0.0
    %2666 = vmatprep.subr.mxu0 0.0
    %2667 = vmatpush2.msra.mxu0 0.0
    %2668 = vmatprep.subr.mxu0 0.0
    %2669 = vmatpush2.msra.mxu0 0.0
    %2670 = vmatprep.subr.mxu0 0.0
    %2671 = vmatpush2.msra.mxu0 0.0
    %2672 = vmatprep.subr.mxu0 0.0
    %2673 = vmatpush2.msra.mxu0 0.0
    %2674 = vmatprep.subr.mxu0 0.0
    %2675 = vmatpush2.msra.mxu0 0.0
    %2676 = vmatprep.mubr.f32.mxu0 0.0
    %2677 = vmatmul.mubr.f32.gmra.mxu0 %v2607
    %v2678 = vpop.f32.mrf.mxu0
    %v2679 = vadd.f32 %v2604, %v2678
    %v2680 = vpop.f32.mrf.mxu0
    %2681 = vmatprep.mubr.f32.mxu0 0.0
    %2682 = vmatmul.mubr.f32.gmra.mxu0 %v2610
    %v2683 = vpop.f32.mrf.mxu0
    %v2684 = vadd.f32 %v2604, %v2683
    %v2685 = vpop.f32.mrf.mxu0
    %2686 = vdwg.mxu0
    %v2687 = vmax.f32 %v2679, 0.0
    %v2688 = vmax.f32 %v2684, 0.0
    %v2690 = vsel %vm1317, %v2687, 0
    %v2693 = vsel %vm1317, %v2688, 0
    %2695 = vmatprep.subr.mxu0 0.0
    %2696 = vmatpush1.msra.mxu0 0.0
    %2697 = vmatprep.subr.mxu0 0.0
    %2698 = vmatpush1.msra.mxu0 0.0
    %2699 = vmatprep.subr.mxu0 0.0
    %2700 = vmatpush1.msra.mxu0 0.0
    %2701 = vmatprep.subr.mxu0 0.0
    %2702 = vmatpush1.msra.mxu0 0.0
    %2703 = vmatprep.subr.mxu0 0.0
    %2704 = vmatpush1.msra.mxu0 0.0
    %2705 = vmatprep.subr.mxu0 0.0
    %2706 = vmatpush1.msra.mxu0 0.0
    %2707 = vmatprep.subr.mxu0 0.0
    %2708 = vmatpush1.msra.mxu0 0.0
    %2709 = vmatprep.subr.mxu0 0.0
    %2710 = vmatpush1.msra.mxu0 0.0
    %2711 = vmatprep.subr.mxu0 0.0
    %2712 = vmatpush1.msra.mxu0 %v1428
    %2713 = vmatprep.subr.mxu0 0.0
    %2714 = vmatpush1.msra.mxu0 %v1427
    %2715 = vmatprep.subr.mxu0 0.0
    %2716 = vmatpush1.msra.mxu0 %v1426
    %2717 = vmatprep.subr.mxu0 0.0
    %2718 = vmatpush1.msra.mxu0 %v1425
    %2719 = vmatprep.subr.mxu0 0.0
    %2720 = vmatpush1.msra.mxu0 %v1424
    %2721 = vmatprep.subr.mxu0 0.0
    %2722 = vmatpush1.msra.mxu0 %v1423
    %2723 = vmatprep.subr.mxu0 0.0
    %2724 = vmatpush1.msra.mxu0 %v1422
    %2725 = vmatprep.subr.mxu0 0.0
    %2726 = vmatpush1.msra.mxu0 %v1421
    %2727 = vmatprep.subr.mxu0 0.0
    %2728 = vmatpush2.msra.mxu0 0.0
    %2729 = vmatprep.subr.mxu0 0.0
    %2730 = vmatpush2.msra.mxu0 0.0
    %2731 = vmatprep.subr.mxu0 0.0
    %2732 = vmatpush2.msra.mxu0 0.0
    %2733 = vmatprep.subr.mxu0 0.0
    %2734 = vmatpush2.msra.mxu0 0.0
    %2735 = vmatprep.subr.mxu0 0.0
    %2736 = vmatpush2.msra.mxu0 0.0
    %2737 = vmatprep.subr.mxu0 0.0
    %2738 = vmatpush2.msra.mxu0 0.0
    %2739 = vmatprep.subr.mxu0 0.0
    %2740 = vmatpush2.msra.mxu0 0.0
    %2741 = vmatprep.subr.mxu0 0.0
    %2742 = vmatpush2.msra.mxu0 0.0
    %2743 = vmatprep.subr.mxu0 0.0
    %2744 = vmatpush2.msra.mxu0 0.0
    %2745 = vmatprep.subr.mxu0 0.0
    %2746 = vmatpush2.msra.mxu0 0.0
    %2747 = vmatprep.subr.mxu0 0.0
    %2748 = vmatpush2.msra.mxu0 0.0
    %2749 = vmatprep.subr.mxu0 0.0
    %2750 = vmatpush2.msra.mxu0 0.0
    %2751 = vmatprep.subr.mxu0 0.0
    %2752 = vmatpush2.msra.mxu0 0.0
    %2753 = vmatprep.subr.mxu0 0.0
    %2754 = vmatpush2.msra.mxu0 0.0
    %2755 = vmatprep.subr.mxu0 0.0
    %2756 = vmatpush2.msra.mxu0 0.0
    %2757 = vmatprep.subr.mxu0 0.0
    %2758 = vmatpush2.msra.mxu0 0.0
    %2759 = vmatprep.mubr.f32.mxu0 0.0
    %2760 = vmatmul.mubr.f32.gmra.mxu0 %v2690
    %v2761 = vpop.f32.mrf.mxu0
    %v2762 = vadd.f32 0.0, %v2761
    %v2763 = vpop.f32.mrf.mxu0
    %2764 = vmatprep.mubr.f32.mxu0 0.0
    %2765 = vmatmul.mubr.f32.gmra.mxu0 %v2693
    %v2766 = vpop.f32.mrf.mxu0
    %v2767 = vadd.f32 0.0, %v2766
    %v2768 = vpop.f32.mrf.mxu0
    %2769 = vdwg.mxu0
    %v2770 = vadd.f32 %v2542, %v2762
    %v2771 = vadd.f32 %v2543, %v2767
    %v2772 = vlaneseq
    %v2773 = vshrl.u32 %v2772, 7
    %v2774 = vsub.s32 5, %v2773
    %v2775 = vrot.slane %v1408, %v2774
    %v2776 = vadd.f32 %v2770, %v2775
    %v2777 = vadd.f32 %v2771, %v2775
    %v2778 = vsel %vm45, %v2776, 0.0
    %2779 = vadd.xlane.f32.xlu0 %v2778
    %v2780 = vpop.xlane.xlu0 %2779
    %v2781 = vsel %vm45, %v2777, 0.0
    %2782 = vadd.xlane.f32.xlu0 %v2781
    %v2783 = vpop.xlane.xlu0 %2782
    %v2784 = vmul.f32 %v2780, %v52
    %v2785 = vmul.f32 %v2783, %v52
    %v2786 = vsub.f32 %v2776, %v2784
    %v2787 = vsub.f32 %v2777, %v2785
    %v2788 = vmul.f32 %v2786, %v2786
    %v2789 = vmul.f32 %v2787, %v2787
    %v2790 = vsel %vm45, %v2788, 0.0
    %2791 = vadd.xlane.f32.xlu0 %v2790
    %v2792 = vpop.xlane.xlu0 %2791
    %v2793 = vsel %vm45, %v2789, 0.0
    %2794 = vadd.xlane.f32.xlu0 %v2793
    %v2795 = vpop.xlane.xlu0 %2794
    %v2796 = vmul.f32 %v2792, 0.032258064
    %v2797 = vmul.f32 %v2795, 0.032258064
    %v2798 = vrsqrt.pop %v2796
    %v2799 = vmul.f32 %v2796, %v2798
    %vm2800 = vcmp.eq.f32.partialorder %v2796, inf
    %v2801 = vsel %vm2800, %v2796, %v2799
    %vm2802 = vcmp.eq.f32.partialorder %v2796, 0.0
    %v2803 = vand.u32 %v2796, 2147483648
    %v2804 = vsel %vm2802, %v2803, %v2801
    %v2805 = vrsqrt.pop %v2797
    %v2806 = vmul.f32 %v2797, %v2805
    %vm2807 = vcmp.eq.f32.partialorder %v2797, inf
    %v2808 = vsel %vm2807, %v2797, %v2806
    %vm2809 = vcmp.eq.f32.partialorder %v2797, 0.0
    %v2810 = vand.u32 %v2797, 2147483648
    %v2811 = vsel %vm2809, %v2810, %v2808
    %v2812 = vlaneseq
    %v2813 = vshrl.u32 %v2812, 7
    %v2814 = vsub.s32 6, %v2813
    %v2815 = vrot.slane %v27, %v2814
    %v2816 = vmul.f32 %v2815, %v2786
    %v2817 = vmul.f32 %v2815, %v2787
    %v2818 = vadd.f32 %v2804, 1e-06
    %v2819 = vadd.f32 %v2811, 1e-06
    %v2820 = vrcp.pop %v2818
    %v2821 = vrcp.pop %v2819
    %v2822 = vmul.f32 %v2816, %v2820
    %v2823 = vmul.f32 %v2817, %v2821
    %v2824 = vlaneseq
    %v2825 = vshrl.u32 %v2824, 7
    %v2826 = vsub.s32 7, %v2825
    %v2827 = vrot.slane %v27, %v2826
    %v2828 = vadd.f32 %v2822, %v2827
    %v2829 = vadd.f32 %v2823, %v2827
    %2830 = vst.msk [vmem:[#allocation2] sm:$0xff] %vm45, %v2828
    %2831 = vst.msk [vmem:[#allocation2 + $0x8] sm:$0xff] %vm45, %v2829
    // Predicated region
    $region26: #{tpu_custom_call.1} parent=1 // pred_check
      _
    $region27: #{tpu_custom_call.1} parent=1 // pred_check_branch
      %2833 = sbr.rel (0) target = $region29
    $region28: #{tpu_custom_call.1} parent=1 // pred_region
      %s2835 = ssub.s32 256, 256
      %2836 = vsyncadd [#allocation3], %s2835
      %s2837 = sshll.u32 [#allocation2], 4
      %s2838 = int_to_ptr.vmem [resolvable:$true] %s2837
      %2843 = dma.vmem_to_hbm [thread:$0]  %s2838, 256, %s6, [#allocation3], 128, 128, 8
    $region29: #{tpu_custom_call.1} parent=1 // pred_fallthru
      _
    // Predicated region
    $region30: #{tpu_custom_call.1} parent=1 // pred_check
      _
    $region31: #{tpu_custom_call.1} parent=1 // pred_check_branch
      %2845 = sbr.rel (0) target = $region33
    $region32: #{tpu_custom_call.1} parent=1 // pred_region
      %2846 = dma.done [#allocation3], 256
    $region33: #{tpu_custom_call.1} parent=1 // pred_fallthru
      _
    %2847 = vsyncpa [#allocation3], 1

</llo_original>
